<compile_context>
chip_gen: v7x
topology: tpu7x:2x2x1
jax: 0.10.0
libtpu: 0.0.40
codegen_flags: <defaults>
</compile_context>

<pallas_src>
from functools import partial

import numpy as np
import jax
import jax.numpy as jnp
from jax.experimental import pallas as pl
from jax.experimental.pallas import tpu as pltpu

DEFAULT_SPEAKER_NAMES = ["silence"] + [f"speaker{i}" for i in range(1, 10)]

_VMEM_BUDGET_BYTES = 32 * 1024 * 1024   # modeled per-step working set target
_VMEM_LIMIT_BYTES = 48 * 1024 * 1024    # < 64 MiB (v7x physical) with headroom
_MXU_MAX_FRAME_LEN = 512                # use the MXU reduce below this length


def _pick_frame_tile(n_frames, frame_len, channels):
    """Frame-tile size: multiple of 128 (lane-dense output, aligned int16
    sublanes), bounded by a per-step VMEM working-set budget, and capped so
    the parallel grid axis has >= 2 steps on anything but short clips."""
    lane_padded = pl.cdiv(frame_len, 128) * 128
    use_mxu = frame_len <= _MXU_MAX_FRAME_LEN
    # Per-frame VMEM bytes: double-buffered int16 input + double-buffered
    # int8 output + in-kernel intermediates (per-channel x2 f32 plus a
    # possible compiler-inserted transposed copy on the MXU path; full-chunk
    # x2 f32 on the jnp.sum path) + the small energy / mask values.
    per_frame = 4 * channels * lane_padded + 2 * channels
    if use_mxu:
        per_frame += 8 * lane_padded + 64 + 8 * channels
    else:
        per_frame += 4 * channels * lane_padded + 8 * channels
    tile = _VMEM_BUDGET_BYTES // max(per_frame, 1)
    tile = max(128, (tile // 128) * 128)
    if n_frames > 256:
        # Keep >= 2 grid steps so both v7x TensorCores get work.
        half = pl.cdiv(pl.cdiv(n_frames, 2), 128) * 128
        tile = min(tile, half)
    if tile >= n_frames:
        return n_frames                  # full dim: always a legal block
    return tile


def _make_vad_kernel(thresh_sum, channels, frame_len):
    """Energy VAD kernel; `thresh_sum` = threshold * frame_len (baked in)."""
    use_mxu = frame_len <= _MXU_MAX_FRAME_LEN

    def kernel(frames_ref, speech_ref):
        # frames_ref: (C, tile_f, frame_len) int16 in VMEM
        # speech_ref: (C, tile_f) int8 in VMEM (lane-dense along frames)
        if use_mxu:
            # Contract the frame_len axis on the (otherwise idle) MXU against
            # a ones matrix.  Orienting the contraction as
            #   ones(8, L) . x2(tile_f, L)^T -> (8, tile_f)
            # puts frames on lanes, so the result is already lane-dense and
            # no column-extraction relayout is needed.  Squares stay f32.
            ones_lhs = jnp.ones((8, frame_len), jnp.float32)
            rows = []
            for c in range(channels):              # channels is tiny; static loop
                x2 = jnp.square(frames_ref[c].astype(jnp.float32))   # (tile_f, L)
                e = jax.lax.dot_general(
                    ones_lhs, x2,
                    dimension_numbers=(((1,), (1,)), ((), ())),       # contract L
                    preferred_element_type=jnp.float32,
                    precision=jax.lax.Precision.HIGHEST)              # (8, tile_f)
                rows.append(e[0:1, :])                                # (1, tile_f)
            energy = rows[0] if channels == 1 else jnp.concatenate(rows, axis=0)
        else:
            # Large frames: the last-axis reduce is already HBM-bound.
            x2 = jnp.square(frames_ref[...].astype(jnp.float32))     # (C, tile_f, L)
            energy = jnp.sum(x2, axis=-1)                            # (C, tile_f)
        speech_ref[...] = (energy > thresh_sum).astype(jnp.int8)

    return kernel


def webrtc_vad_pallas(frames_i16, threshold):
    """frames_i16: (C, n_frames, frame_len) int16 -> (C, n_frames) int8."""
    C, n_frames, frame_len = frames_i16.shape
    tile_f = _pick_frame_tile(n_frames, frame_len, C)
    num_tiles = pl.cdiv(n_frames, tile_f)

    # Fold the 1/frame_len normalization into the threshold constant.
    thresh_sum = float(threshold) * float(frame_len)
    kernel = _make_vad_kernel(thresh_sum, C, frame_len)

    cost = pl.CostEstimate(
        flops=2 * C * n_frames * frame_len,
        transcendentals=0,
        bytes_accessed=C * n_frames * frame_len * 2 + C * n_frames,
    )

    return pl.pallas_call(
        kernel,
        out_shape=jax.ShapeDtypeStruct((C, n_frames), jnp.int8),
        grid=(num_tiles,),
        in_specs=[
            pl.BlockSpec((C, tile_f, frame_len), lambda t: (0, t, 0)),
        ],
        out_specs=pl.BlockSpec((C, tile_f), lambda t: (0, t)),
        compiler_params=pltpu.CompilerParams(
            dimension_semantics=("parallel",),
            vmem_limit_bytes=_VMEM_LIMIT_BYTES,
        ),
        cost_estimate=cost,
    )(frames_i16)


@partial(jax.jit, static_argnums=(1, 2))
def _framed_vad(signal, frame_len, threshold):
    """Truncate + frame + VAD under one jit so XLA can elide the framing copy
    (when N % frame_len == 0 the slice is a no-op and the reshape a bitcast,
    so the Pallas kernel reads the original HBM buffer directly)."""
    C, N = signal.shape
    n_frames = N // frame_len
    frames = signal[:, : n_frames * frame_len].reshape(C, n_frames, frame_len)
    return webrtc_vad_pallas(frames, threshold)


def rle1d(x):
    """Run-length encode a 1-D array -> (starts, lengths, values)."""
    x = np.asarray(x)
    n = len(x)
    if n == 0:
        return (np.array([], dtype=np.int64),
                np.array([], dtype=np.int64), x)
    changes = np.flatnonzero(x[1:] != x[:-1]) + 1
    starts = np.concatenate([[0], changes]).astype(np.int64)
    lengths = np.diff(np.concatenate([starts, [n]]))
    values = x[starts]
    return starts, lengths, values


class WebrtcSpeechActivityDetectionModel:
    def __init__(self, aggressiveness):
        # TODO(synk): webrtcvad.Vad (external C GMM VAD) has no Pallas
        # equivalent; aggressiveness deterministically parameterizes an
        # energy threshold instead (RMS threshold of 5-20% of int16 full
        # scale, rising with aggressiveness 0..3).
        self.aggressiveness = aggressiveness
        rms_thresh = 32768.0 * (0.05 + 0.05 * aggressiveness)
        self.threshold = rms_thresh * rms_thresh          # mean-square threshold

    def forward(self, signal, sample_rate, window_size=0.02, extra=None):
        extra = {} if extra is None else extra
        assert sample_rate in (8000, 16000, 32000, 48000)
        assert signal.dtype == jnp.int16
        assert window_size in (0.01, 0.02, 0.03)
        frame_len = int(window_size * sample_rate)
        C, N = signal.shape
        n_frames = N // frame_len

        if n_frames == 0:
            speech = jnp.zeros((C, 0), dtype=jnp.int8)
        else:
            # Trailing partial frame (len(chunk) != frame_len) is non-speech
            # in the reference; dropping it is equivalent (mask == 0 there).
            speech = _framed_vad(signal, frame_len, self.threshold)  # (C, n_frames) int8

        speech_np = np.asarray(jax.block_until_ready(speech))

        transcript = [
            dict(begin=float(begin) * window_size,
                 end=(float(begin) + float(duration)) * window_size,
                 speaker=1 + channel,
                 speaker_name=DEFAULT_SPEAKER_NAMES[1 + channel],
                 **extra)
            for channel in range(C)
            for begin, duration, mask in zip(*rle1d(speech_np[channel]))
            if mask == 1
        ]
        return transcript, speech


if __name__ == "__main__":
    key = jax.random.PRNGKey(0)
    C = 2                       # channels (speakers)
    sample_rate = 8000
    window_size = 0.01          # -> frame_len = 80 samples (MXU reduce path)
    n_frames = 1024             # -> 2 grid steps (exercises tiling + megacore)
    frame_len = int(window_size * sample_rate)
    N = n_frames * frame_len    # 81920 samples

    sig = jax.random.randint(key, (C, N), -32768, 32768,
                             dtype=jnp.int32).astype(jnp.int16)
    # Make the first quarter silent so the speech mask has both values and
    # the host-side RLE / transcript path is exercised.
    sig = sig.at[:, : N // 4].set(0)

    model = WebrtcSpeechActivityDetectionModel(aggressiveness=1)
    transcript, speech = model.forward(sig, sample_rate,
                                       window_size=window_size,
                                       extra={"source": "synthetic"})
    jax.block_until_ready(speech)
    assert speech.shape == (C, n_frames) and speech.dtype == jnp.int8
    assert isinstance(transcript, list) and len(transcript) == C
    print("KERNEL_OK")
</pallas_src>

<mosaic_0001>
module attributes {stable_mosaic.version = 11 : i64} {
  func.func @kernel(%arg0: i32, %arg1: memref<2x512x80xi16, #tpu.memory_space<vmem>>, %arg2: memref<2x512xi8, #tpu.memory_space<vmem>>) attributes {dimension_semantics = [#tpu.dimension_semantics<parallel>], iteration_bounds = array<i64: 2>, scalar_prefetch = 0 : i64, scratch_operands = 0 : i64, tpu.core_type = #tpu.core_type<tc>, window_params = [{transform_indices = @transform_0, window_bounds = array<i64: 2, 512, 80>}, {transform_indices = @transform_1, window_bounds = array<i64: 2, 512>}]} {
    %cst = arith.constant 1.000000e+00 : f32
    %0 = vector.broadcast %cst : f32 to vector<8x80xf32>
    %c0 = arith.constant 0 : index
    %c0_0 = arith.constant 0 : index
    %c0_1 = arith.constant 0 : index
    %1 = vector.load %arg1[%c0, %c0_0, %c0_1] : memref<2x512x80xi16, #tpu.memory_space<vmem>>, vector<1x512x80xi16>
    %2 = vector.shape_cast %1 : vector<1x512x80xi16> to vector<512x80xi16>
    %3 = arith.sitofp %2 : vector<512x80xi16> to vector<512x80xf32>
    %4 = arith.mulf %3, %3 : vector<512x80xf32>
    %cst_2 = arith.constant dense<0.000000e+00> : vector<8x512xf32>
    %5 = tpu.matmul %0, %4, %cst_2 {dimension_numbers = #tpu.dot_dimension_numbers<[1], [1], [0], [0], [0, 0, 1, 0], [], []>, precision = #tpu.contract_precision<fp32>} : vector<8x80xf32>, vector<512x80xf32>, vector<8x512xf32> -> vector<8x512xf32>
    %6 = vector.extract_strided_slice %5 {offsets = [0, 0], sizes = [1, 512], strides = [1, 1]} : vector<8x512xf32> to vector<1x512xf32>
    %c1 = arith.constant 1 : index
    %c0_3 = arith.constant 0 : index
    %c0_4 = arith.constant 0 : index
    %7 = vector.load %arg1[%c1, %c0_3, %c0_4] : memref<2x512x80xi16, #tpu.memory_space<vmem>>, vector<1x512x80xi16>
    %8 = vector.shape_cast %7 : vector<1x512x80xi16> to vector<512x80xi16>
    %9 = arith.sitofp %8 : vector<512x80xi16> to vector<512x80xf32>
    %10 = arith.mulf %9, %9 : vector<512x80xf32>
    %cst_5 = arith.constant dense<0.000000e+00> : vector<8x512xf32>
    %11 = tpu.matmul %0, %10, %cst_5 {dimension_numbers = #tpu.dot_dimension_numbers<[1], [1], [0], [0], [0, 0, 1, 0], [], []>, precision = #tpu.contract_precision<fp32>} : vector<8x80xf32>, vector<512x80xf32>, vector<8x512xf32> -> vector<8x512xf32>
    %12 = vector.extract_strided_slice %11 {offsets = [0, 0], sizes = [1, 512], strides = [1, 1]} : vector<8x512xf32> to vector<1x512xf32>
    %13 = tpu.concatenate %6, %12 in 0 : vector<1x512xf32>, vector<1x512xf32> -> vector<2x512xf32>
    %cst_6 = arith.constant 0x4E4CCCCD : f32
    %14 = vector.broadcast %cst_6 : f32 to vector<2x512xf32>
    %15 = arith.cmpf ogt, %13, %14 : vector<2x512xf32>
    %16 = arith.extui %15 : vector<2x512xi1> to vector<2x512xi8>
    %c0_7 = arith.constant 0 : index
    %c0_8 = arith.constant 0 : index
    %17 = vector.load %arg2[%c0_7, %c0_8] : memref<2x512xi8, #tpu.memory_space<vmem>>, vector<2x512xi8>
    tpu.vector_store %arg2[%c0_7, %c0_8], %16 {strides = array<i32>} : memref<2x512xi8, #tpu.memory_space<vmem>>, vector<2x512xi8>,
    return
  }
  func.func @transform_0(%arg0: i32) -> (i32, i32, i32) {
    %c0_i32 = arith.constant 0 : i32
    %c0_i32_0 = arith.constant 0 : i32
    %c0_i32_1 = arith.constant 0 : i32
    return %c0_i32, %arg0, %c0_i32_0 : i32, i32, i32
  }
  func.func @transform_1(%arg0: i32) -> (i32, i32) {
    %c0_i32 = arith.constant 0 : i32
    %c0_i32_0 = arith.constant 0 : i32
    return %c0_i32, %arg0 : i32, i32
  }
}

</mosaic_0001>

<llo_original>
// kernel: _framed_vad.1
$region0: #{_framed_vad.1}
  #allocation0 [shape = 'u32[]', space=smem, size = 0x4, offset = 0x4, fixed_abs, tag = 'smem constant byte address 0x4 - core index']
  #allocation1 [shape = 'u32[144,128]{1,0:T(1,128)}', space=vmem, size = 0x12000, scoped, tag = 'internal scratch']
  %s0 = inlined_call_operand.vmem [shape: s16[2,1024,80], index: 0, kind: input, shape index: {}]
  %s1 = inlined_call_operand.hbm [shape: s8[2,1024], index: 1, kind: output, shape index: {}]
  %s2 = sld [smem:[#allocation0]]
  $region78: #{_framed_vad.1} parent=0
    _
  %s4 = ssub.s32 1, %s2
  %s5 = scalar_select 0, %s4, %s2
  $region1: #{_framed_vad.1} parent=0
    #allocation2 [shape = 'u8[524288]{0}', space=vmem, size = 0x80000, scoped, tag = 'input window, operand 0']
    #allocation3 [shape = 'u8[4096]{0}', space=vmem, size = 0x1000, scoped, tag = 'output window, operand 0']
    #allocation4 [shape = 's32[2]{0}', space=sflag, size = 0x8, scoped, tag = 'scoped memory for _framed_vad.1']
    %6 = vsyncpa [#allocation4], 0
    %s7 = scalar_lea.sflag [#allocation4], 1
    %8 = vsyncpa %s7, 0
    loop: start=0, step=1, limit=4
    $region2: #{_framed_vad.1} parent=1 // loop_pre_header
      _
    $region3: #{_framed_vad.1} parent=1 // loop_header
      %s10 = sphi 0, %s14
      %p11 = scmp.ge.s32.totalorder %s10, 4
      %s20 = sphi 0, %s22
      %s23 = sphi 0, %s20
      %s24 = sphi 0, %s23
      %s40 = sphi 0, %s24
      %s46 = sphi 0, %s48
      %s49 = sphi 0, %s46
      %s50 = sphi 0, %s49
      %s66 = sphi 0, %s50
    $region4: #{_framed_vad.1} parent=1 // loop_header_branch
      %13 = sbr.rel (%p11) target = $region8
    $region5: #{_framed_vad.1} parent=1 // loop_body
      %s15 = ssub.s32 %s10, 1
      %s16 = ssub.s32 %s10, 2
      %s17 = sadd.s32 %s10, 1
      %s18 = ssub.s32 %s10, %s17
      %p19 = scmp.eq.s32.totalorder %s18, 0
      %s21 = sadd.s32 %s20, 1
      %s22 = scalar_select %p19, %s20, %s21
      %p25 = pneg %p19
      %p26 = scmp.eq.s32.totalorder %s10, 1
      %p27 = por %p25, %p26
      %p28 = scmp.ne.s32.totalorder %s20, %s23
      %p29 = scmp.eq.s32.totalorder %s10, 0
      %p30 = por %p28, %p29
      %p31 = scmp.ne.s32.totalorder %s20, %s23
      %p32 = scmp.eq.s32.totalorder %s15, 1
      %p33 = por %p31, %p32
      %p34 = scmp.ne.s32.totalorder %s23, %s24
      %p35 = scmp.eq.s32.totalorder %s15, 0
      %p36 = por %p34, %p35
      %p37 = scmp.ne.s32.totalorder %s23, %s24
      %p38 = scmp.eq.s32.totalorder %s16, 1
      %p39 = por %p37, %p38
      %p41 = scmp.ne.s32.totalorder %s24, %s40
      %p42 = scmp.eq.s32.totalorder %s16, 0
      %p43 = por %p41, %p42
      %s44 = ssub.s32 %s10, %s17
      %p45 = scmp.eq.s32.totalorder %s44, 0
      %s47 = sadd.s32 %s46, 1
      %s48 = scalar_select %p45, %s46, %s47
      %p51 = pneg %p45
      %p52 = scmp.eq.s32.totalorder %s10, 1
      %p53 = por %p51, %p52
      %p54 = scmp.ne.s32.totalorder %s46, %s49
      %p55 = scmp.eq.s32.totalorder %s10, 0
      %p56 = por %p54, %p55
      %p57 = scmp.ne.s32.totalorder %s46, %s49
      %p58 = scmp.eq.s32.totalorder %s15, 1
      %p59 = por %p57, %p58
      %p60 = scmp.ne.s32.totalorder %s49, %s50
      %p61 = scmp.eq.s32.totalorder %s15, 0
      %p62 = por %p60, %p61
      %p63 = scmp.ne.s32.totalorder %s49, %s50
      %p64 = scmp.eq.s32.totalorder %s16, 1
      %p65 = por %p63, %p64
      %p67 = scmp.ne.s32.totalorder %s50, %s66
      %p68 = scmp.eq.s32.totalorder %s16, 0
      %p69 = por %p67, %p68
      %p70 = scmp.le.s32.totalorder 1, %s10
      %p71 = scmp.lt.s32.totalorder %s10, 3
      %p72 = pnand %p70, %p71
      %p73 = pneg %p72
      // Predicated region
      $region9: #{_framed_vad.1} parent=5 // pred_check
        _
      $region10: #{_framed_vad.1} parent=5 // pred_check_branch
        %75 = sbr.rel (%p72) target = $region12
      $region11: #{_framed_vad.1} parent=5 // pred_region
        %s76 = ssub.s32 %s10, 1
      $region12: #{_framed_vad.1} parent=5 // pred_fallthru
        _
      %p77 = scmp.lt.s32.totalorder %s10, 2
      // Predicated region
      $region13: #{_framed_vad.1} parent=5 // pred_check
        %p78 = pneg %p77
      $region14: #{_framed_vad.1} parent=5 // pred_check_branch
        %80 = sbr.rel (%p78) target = $region16
      $region15: #{_framed_vad.1} parent=5 // pred_region
        // Predicated region
        $region17: #{_framed_vad.1} parent=15 // pred_check
          %p81 = pneg %p30
        $region18: #{_framed_vad.1} parent=15 // pred_check_branch
          %83 = sbr.rel (%p81) target = $region20
        $region19: #{_framed_vad.1} parent=15 // pred_region
          %s84 = sand.u32 %s20, 1
          %s85 = sand.u32 %s20, 1
          %s86 = smul.addr %s85, 512
          %s87 = scalar_lea.vmem [#allocation2], %s86
          %s88 = smul.u32 64, %s10
          %s89 = smul.addr %s88, 4
          %s90 = scalar_lea.vmem %s0, %s89
          // Predicated region
          $region21: #{_framed_vad.1} parent=19 // pred_check
            _
          $region22: #{_framed_vad.1} parent=19 // pred_check_branch
            %92 = sbr.rel (0) target = $region24
          $region23: #{_framed_vad.1} parent=19 // pred_region
            // Predicated region
            $region25: #{_framed_vad.1} parent=23 // pred_check
              _
            $region26: #{_framed_vad.1} parent=23 // pred_check_branch
              %94 = sbr.rel target = $region28
            $region27: #{_framed_vad.1} parent=23 // pred_region
              // Predicated region
              $region40: #{_framed_vad.1} parent=27 // pred_check
                _
              $region41: #{_framed_vad.1} parent=27 // pred_check_branch
                %363 = sbr.rel (0) target = $region43
              $region42: #{_framed_vad.1} parent=27 // pred_region
                loop: start=0, step=1, limit=1
                $region44: #{_framed_vad.1} parent=42 // loop_pre_header
                  _
                $region45: #{_framed_vad.1} parent=42 // loop_header
                  %s365 = sphi 0, %s369
                  %p366 = scmp.ge.s32.totalorder %s365, 1
                  %s370 = sphi %s90, %s90
                  %s371 = sphi %s87, %s87
                $region46: #{_framed_vad.1} parent=42 // loop_header_branch
                  %368 = sbr.rel (%p366) target = $region50
                $region47: #{_framed_vad.1} parent=42 // loop_body
                  _
                $region48: #{_framed_vad.1} parent=42 // loop_footer
                  %s369 = sadd.s32 1, %s365
                $region49: #{_framed_vad.1} parent=42 // loop_footer_branch
                  %364 = sbr.rel target = $region45
                $region50: #{_framed_vad.1} parent=42 // loop_exit
                  _
                loop: start=0, step=1, limit=1
                $region51: #{_framed_vad.1} parent=42 // loop_pre_header
                  _
                $region52: #{_framed_vad.1} parent=42 // loop_header
                  %s374 = sphi 0, %s378
                  %p375 = scmp.ge.s32.totalorder %s374, 1
                  %s379 = sphi %s90, %s90
                  %s380 = sphi %s87, %s87
                $region53: #{_framed_vad.1} parent=42 // loop_header_branch
                  %377 = sbr.rel (%p375) target = $region57
                $region54: #{_framed_vad.1} parent=42 // loop_body
                  %v381 = vld [vmem:[%s379] sm:$0xf]
                  %382 = vst [vmem:[%s380] sm:$0xf] %v381
                  %v383 = vld [vmem:[%s379 + $0x4] sm:$0xf]
                  %384 = vst [vmem:[%s380 + $0x4] sm:$0xf] %v383
                  %v385 = vld [vmem:[%s379 + $0x8] sm:$0xf]
                  %386 = vst [vmem:[%s380 + $0x8] sm:$0xf] %v385
                  %v387 = vld [vmem:[%s379 + $0xc] sm:$0xf]
                  %388 = vst [vmem:[%s380 + $0xc] sm:$0xf] %v387
                  %v389 = vld [vmem:[%s379 + $0x10] sm:$0xf]
                  %390 = vst [vmem:[%s380 + $0x10] sm:$0xf] %v389
                  %v391 = vld [vmem:[%s379 + $0x14] sm:$0xf]
                  %392 = vst [vmem:[%s380 + $0x14] sm:$0xf] %v391
                  %v393 = vld [vmem:[%s379 + $0x18] sm:$0xf]
                  %394 = vst [vmem:[%s380 + $0x18] sm:$0xf] %v393
                  %v395 = vld [vmem:[%s379 + $0x1c] sm:$0xf]
                  %396 = vst [vmem:[%s380 + $0x1c] sm:$0xf] %v395
                  %v397 = vld [vmem:[%s379 + $0x20] sm:$0xf]
                  %398 = vst [vmem:[%s380 + $0x20] sm:$0xf] %v397
                  %v399 = vld [vmem:[%s379 + $0x24] sm:$0xf]
                  %400 = vst [vmem:[%s380 + $0x24] sm:$0xf] %v399
                  %v401 = vld [vmem:[%s379 + $0x28] sm:$0xf]
                  %402 = vst [vmem:[%s380 + $0x28] sm:$0xf] %v401
                  %v403 = vld [vmem:[%s379 + $0x2c] sm:$0xf]
                  %404 = vst [vmem:[%s380 + $0x2c] sm:$0xf] %v403
                  %v405 = vld [vmem:[%s379 + $0x30] sm:$0xf]
                  %406 = vst [vmem:[%s380 + $0x30] sm:$0xf] %v405
                  %v407 = vld [vmem:[%s379 + $0x34] sm:$0xf]
                  %408 = vst [vmem:[%s380 + $0x34] sm:$0xf] %v407
                  %v409 = vld [vmem:[%s379 + $0x38] sm:$0xf]
                  %410 = vst [vmem:[%s380 + $0x38] sm:$0xf] %v409
                  %v411 = vld [vmem:[%s379 + $0x3c] sm:$0xf]
                  %412 = vst [vmem:[%s380 + $0x3c] sm:$0xf] %v411
                  %v413 = vld [vmem:[%s379 + $0x40] sm:$0xf]
                  %414 = vst [vmem:[%s380 + $0x40] sm:$0xf] %v413
                  %v415 = vld [vmem:[%s379 + $0x44] sm:$0xf]
                  %416 = vst [vmem:[%s380 + $0x44] sm:$0xf] %v415
                  %v417 = vld [vmem:[%s379 + $0x48] sm:$0xf]
                  %418 = vst [vmem:[%s380 + $0x48] sm:$0xf] %v417
                  %v419 = vld [vmem:[%s379 + $0x4c] sm:$0xf]
                  %420 = vst [vmem:[%s380 + $0x4c] sm:$0xf] %v419
                  %v421 = vld [vmem:[%s379 + $0x50] sm:$0xf]
                  %422 = vst [vmem:[%s380 + $0x50] sm:$0xf] %v421
                  %v423 = vld [vmem:[%s379 + $0x54] sm:$0xf]
                  %424 = vst [vmem:[%s380 + $0x54] sm:$0xf] %v423
                  %v425 = vld [vmem:[%s379 + $0x58] sm:$0xf]
                  %426 = vst [vmem:[%s380 + $0x58] sm:$0xf] %v425
                  %v427 = vld [vmem:[%s379 + $0x5c] sm:$0xf]
                  %428 = vst [vmem:[%s380 + $0x5c] sm:$0xf] %v427
                  %v429 = vld [vmem:[%s379 + $0x60] sm:$0xf]
                  %430 = vst [vmem:[%s380 + $0x60] sm:$0xf] %v429
                  %v431 = vld [vmem:[%s379 + $0x64] sm:$0xf]
                  %432 = vst [vmem:[%s380 + $0x64] sm:$0xf] %v431
                  %v433 = vld [vmem:[%s379 + $0x68] sm:$0xf]
                  %434 = vst [vmem:[%s380 + $0x68] sm:$0xf] %v433
                  %v435 = vld [vmem:[%s379 + $0x6c] sm:$0xf]
                  %436 = vst [vmem:[%s380 + $0x6c] sm:$0xf] %v435
                  %v437 = vld [vmem:[%s379 + $0x70] sm:$0xf]
                  %438 = vst [vmem:[%s380 + $0x70] sm:$0xf] %v437
                  %v439 = vld [vmem:[%s379 + $0x74] sm:$0xf]
                  %440 = vst [vmem:[%s380 + $0x74] sm:$0xf] %v439
                  %v441 = vld [vmem:[%s379 + $0x78] sm:$0xf]
                  %442 = vst [vmem:[%s380 + $0x78] sm:$0xf] %v441
                  %v443 = vld [vmem:[%s379 + $0x7c] sm:$0xf]
                  %444 = vst [vmem:[%s380 + $0x7c] sm:$0xf] %v443
                  %v445 = vld [vmem:[%s379 + $0x80] sm:$0xf]
                  %446 = vst [vmem:[%s380 + $0x80] sm:$0xf] %v445
                  %v447 = vld [vmem:[%s379 + $0x84] sm:$0xf]
                  %448 = vst [vmem:[%s380 + $0x84] sm:$0xf] %v447
                  %v449 = vld [vmem:[%s379 + $0x88] sm:$0xf]
                  %450 = vst [vmem:[%s380 + $0x88] sm:$0xf] %v449
                  %v451 = vld [vmem:[%s379 + $0x8c] sm:$0xf]
                  %452 = vst [vmem:[%s380 + $0x8c] sm:$0xf] %v451
                  %v453 = vld [vmem:[%s379 + $0x90] sm:$0xf]
                  %454 = vst [vmem:[%s380 + $0x90] sm:$0xf] %v453
                  %v455 = vld [vmem:[%s379 + $0x94] sm:$0xf]
                  %456 = vst [vmem:[%s380 + $0x94] sm:$0xf] %v455
                  %v457 = vld [vmem:[%s379 + $0x98] sm:$0xf]
                  %458 = vst [vmem:[%s380 + $0x98] sm:$0xf] %v457
                  %v459 = vld [vmem:[%s379 + $0x9c] sm:$0xf]
                  %460 = vst [vmem:[%s380 + $0x9c] sm:$0xf] %v459
                  %v461 = vld [vmem:[%s379 + $0xa0] sm:$0xf]
                  %462 = vst [vmem:[%s380 + $0xa0] sm:$0xf] %v461
                  %v463 = vld [vmem:[%s379 + $0xa4] sm:$0xf]
                  %464 = vst [vmem:[%s380 + $0xa4] sm:$0xf] %v463
                  %v465 = vld [vmem:[%s379 + $0xa8] sm:$0xf]
                  %466 = vst [vmem:[%s380 + $0xa8] sm:$0xf] %v465
                  %v467 = vld [vmem:[%s379 + $0xac] sm:$0xf]
                  %468 = vst [vmem:[%s380 + $0xac] sm:$0xf] %v467
                  %v469 = vld [vmem:[%s379 + $0xb0] sm:$0xf]
                  %470 = vst [vmem:[%s380 + $0xb0] sm:$0xf] %v469
                  %v471 = vld [vmem:[%s379 + $0xb4] sm:$0xf]
                  %472 = vst [vmem:[%s380 + $0xb4] sm:$0xf] %v471
                  %v473 = vld [vmem:[%s379 + $0xb8] sm:$0xf]
                  %474 = vst [vmem:[%s380 + $0xb8] sm:$0xf] %v473
                  %v475 = vld [vmem:[%s379 + $0xbc] sm:$0xf]
                  %476 = vst [vmem:[%s380 + $0xbc] sm:$0xf] %v475
                  %v477 = vld [vmem:[%s379 + $0xc0] sm:$0xf]
                  %478 = vst [vmem:[%s380 + $0xc0] sm:$0xf] %v477
                  %v479 = vld [vmem:[%s379 + $0xc4] sm:$0xf]
                  %480 = vst [vmem:[%s380 + $0xc4] sm:$0xf] %v479
                  %v481 = vld [vmem:[%s379 + $0xc8] sm:$0xf]
                  %482 = vst [vmem:[%s380 + $0xc8] sm:$0xf] %v481
                  %v483 = vld [vmem:[%s379 + $0xcc] sm:$0xf]
                  %484 = vst [vmem:[%s380 + $0xcc] sm:$0xf] %v483
                  %v485 = vld [vmem:[%s379 + $0xd0] sm:$0xf]
                  %486 = vst [vmem:[%s380 + $0xd0] sm:$0xf] %v485
                  %v487 = vld [vmem:[%s379 + $0xd4] sm:$0xf]
                  %488 = vst [vmem:[%s380 + $0xd4] sm:$0xf] %v487
                  %v489 = vld [vmem:[%s379 + $0xd8] sm:$0xf]
                  %490 = vst [vmem:[%s380 + $0xd8] sm:$0xf] %v489
                  %v491 = vld [vmem:[%s379 + $0xdc] sm:$0xf]
                  %492 = vst [vmem:[%s380 + $0xdc] sm:$0xf] %v491
                  %v493 = vld [vmem:[%s379 + $0xe0] sm:$0xf]
                  %494 = vst [vmem:[%s380 + $0xe0] sm:$0xf] %v493
                  %v495 = vld [vmem:[%s379 + $0xe4] sm:$0xf]
                  %496 = vst [vmem:[%s380 + $0xe4] sm:$0xf] %v495
                  %v497 = vld [vmem:[%s379 + $0xe8] sm:$0xf]
                  %498 = vst [vmem:[%s380 + $0xe8] sm:$0xf] %v497
                  %v499 = vld [vmem:[%s379 + $0xec] sm:$0xf]
                  %500 = vst [vmem:[%s380 + $0xec] sm:$0xf] %v499
                  %v501 = vld [vmem:[%s379 + $0xf0] sm:$0xf]
                  %502 = vst [vmem:[%s380 + $0xf0] sm:$0xf] %v501
                  %v503 = vld [vmem:[%s379 + $0xf4] sm:$0xf]
                  %504 = vst [vmem:[%s380 + $0xf4] sm:$0xf] %v503
                  %v505 = vld [vmem:[%s379 + $0xf8] sm:$0xf]
                  %506 = vst [vmem:[%s380 + $0xf8] sm:$0xf] %v505
                  %v507 = vld [vmem:[%s379 + $0xfc] sm:$0xf]
                  %508 = vst [vmem:[%s380 + $0xfc] sm:$0xf] %v507
                  %v509 = vld [vmem:[%s379 + $0x200] sm:$0xf]
                  %510 = vst [vmem:[%s380 + $0x100] sm:$0xf] %v509
                  %v511 = vld [vmem:[%s379 + $0x204] sm:$0xf]
                  %512 = vst [vmem:[%s380 + $0x104] sm:$0xf] %v511
                  %v513 = vld [vmem:[%s379 + $0x208] sm:$0xf]
                  %514 = vst [vmem:[%s380 + $0x108] sm:$0xf] %v513
                  %v515 = vld [vmem:[%s379 + $0x20c] sm:$0xf]
                  %516 = vst [vmem:[%s380 + $0x10c] sm:$0xf] %v515
                  %v517 = vld [vmem:[%s379 + $0x210] sm:$0xf]
                  %518 = vst [vmem:[%s380 + $0x110] sm:$0xf] %v517
                  %v519 = vld [vmem:[%s379 + $0x214] sm:$0xf]
                  %520 = vst [vmem:[%s380 + $0x114] sm:$0xf] %v519
                  %v521 = vld [vmem:[%s379 + $0x218] sm:$0xf]
                  %522 = vst [vmem:[%s380 + $0x118] sm:$0xf] %v521
                  %v523 = vld [vmem:[%s379 + $0x21c] sm:$0xf]
                  %524 = vst [vmem:[%s380 + $0x11c] sm:$0xf] %v523
                  %v525 = vld [vmem:[%s379 + $0x220] sm:$0xf]
                  %526 = vst [vmem:[%s380 + $0x120] sm:$0xf] %v525
                  %v527 = vld [vmem:[%s379 + $0x224] sm:$0xf]
                  %528 = vst [vmem:[%s380 + $0x124] sm:$0xf] %v527
                  %v529 = vld [vmem:[%s379 + $0x228] sm:$0xf]
                  %530 = vst [vmem:[%s380 + $0x128] sm:$0xf] %v529
                  %v531 = vld [vmem:[%s379 + $0x22c] sm:$0xf]
                  %532 = vst [vmem:[%s380 + $0x12c] sm:$0xf] %v531
                  %v533 = vld [vmem:[%s379 + $0x230] sm:$0xf]
                  %534 = vst [vmem:[%s380 + $0x130] sm:$0xf] %v533
                  %v535 = vld [vmem:[%s379 + $0x234] sm:$0xf]
                  %536 = vst [vmem:[%s380 + $0x134] sm:$0xf] %v535
                  %v537 = vld [vmem:[%s379 + $0x238] sm:$0xf]
                  %538 = vst [vmem:[%s380 + $0x138] sm:$0xf] %v537
                  %v539 = vld [vmem:[%s379 + $0x23c] sm:$0xf]
                  %540 = vst [vmem:[%s380 + $0x13c] sm:$0xf] %v539
                  %v541 = vld [vmem:[%s379 + $0x240] sm:$0xf]
                  %542 = vst [vmem:[%s380 + $0x140] sm:$0xf] %v541
                  %v543 = vld [vmem:[%s379 + $0x244] sm:$0xf]
                  %544 = vst [vmem:[%s380 + $0x144] sm:$0xf] %v543
                  %v545 = vld [vmem:[%s379 + $0x248] sm:$0xf]
                  %546 = vst [vmem:[%s380 + $0x148] sm:$0xf] %v545
                  %v547 = vld [vmem:[%s379 + $0x24c] sm:$0xf]
                  %548 = vst [vmem:[%s380 + $0x14c] sm:$0xf] %v547
                  %v549 = vld [vmem:[%s379 + $0x250] sm:$0xf]
                  %550 = vst [vmem:[%s380 + $0x150] sm:$0xf] %v549
                  %v551 = vld [vmem:[%s379 + $0x254] sm:$0xf]
                  %552 = vst [vmem:[%s380 + $0x154] sm:$0xf] %v551
                  %v553 = vld [vmem:[%s379 + $0x258] sm:$0xf]
                  %554 = vst [vmem:[%s380 + $0x158] sm:$0xf] %v553
                  %v555 = vld [vmem:[%s379 + $0x25c] sm:$0xf]
                  %556 = vst [vmem:[%s380 + $0x15c] sm:$0xf] %v555
                  %v557 = vld [vmem:[%s379 + $0x260] sm:$0xf]
                  %558 = vst [vmem:[%s380 + $0x160] sm:$0xf] %v557
                  %v559 = vld [vmem:[%s379 + $0x264] sm:$0xf]
                  %560 = vst [vmem:[%s380 + $0x164] sm:$0xf] %v559
                  %v561 = vld [vmem:[%s379 + $0x268] sm:$0xf]
                  %562 = vst [vmem:[%s380 + $0x168] sm:$0xf] %v561
                  %v563 = vld [vmem:[%s379 + $0x26c] sm:$0xf]
                  %564 = vst [vmem:[%s380 + $0x16c] sm:$0xf] %v563
                  %v565 = vld [vmem:[%s379 + $0x270] sm:$0xf]
                  %566 = vst [vmem:[%s380 + $0x170] sm:$0xf] %v565
                  %v567 = vld [vmem:[%s379 + $0x274] sm:$0xf]
                  %568 = vst [vmem:[%s380 + $0x174] sm:$0xf] %v567
                  %v569 = vld [vmem:[%s379 + $0x278] sm:$0xf]
                  %570 = vst [vmem:[%s380 + $0x178] sm:$0xf] %v569
                  %v571 = vld [vmem:[%s379 + $0x27c] sm:$0xf]
                  %572 = vst [vmem:[%s380 + $0x17c] sm:$0xf] %v571
                  %v573 = vld [vmem:[%s379 + $0x280] sm:$0xf]
                  %574 = vst [vmem:[%s380 + $0x180] sm:$0xf] %v573
                  %v575 = vld [vmem:[%s379 + $0x284] sm:$0xf]
                  %576 = vst [vmem:[%s380 + $0x184] sm:$0xf] %v575
                  %v577 = vld [vmem:[%s379 + $0x288] sm:$0xf]
                  %578 = vst [vmem:[%s380 + $0x188] sm:$0xf] %v577
                  %v579 = vld [vmem:[%s379 + $0x28c] sm:$0xf]
                  %580 = vst [vmem:[%s380 + $0x18c] sm:$0xf] %v579
                  %v581 = vld [vmem:[%s379 + $0x290] sm:$0xf]
                  %582 = vst [vmem:[%s380 + $0x190] sm:$0xf] %v581
                  %v583 = vld [vmem:[%s379 + $0x294] sm:$0xf]
                  %584 = vst [vmem:[%s380 + $0x194] sm:$0xf] %v583
                  %v585 = vld [vmem:[%s379 + $0x298] sm:$0xf]
                  %586 = vst [vmem:[%s380 + $0x198] sm:$0xf] %v585
                  %v587 = vld [vmem:[%s379 + $0x29c] sm:$0xf]
                  %588 = vst [vmem:[%s380 + $0x19c] sm:$0xf] %v587
                  %v589 = vld [vmem:[%s379 + $0x2a0] sm:$0xf]
                  %590 = vst [vmem:[%s380 + $0x1a0] sm:$0xf] %v589
                  %v591 = vld [vmem:[%s379 + $0x2a4] sm:$0xf]
                  %592 = vst [vmem:[%s380 + $0x1a4] sm:$0xf] %v591
                  %v593 = vld [vmem:[%s379 + $0x2a8] sm:$0xf]
                  %594 = vst [vmem:[%s380 + $0x1a8] sm:$0xf] %v593
                  %v595 = vld [vmem:[%s379 + $0x2ac] sm:$0xf]
                  %596 = vst [vmem:[%s380 + $0x1ac] sm:$0xf] %v595
                  %v597 = vld [vmem:[%s379 + $0x2b0] sm:$0xf]
                  %598 = vst [vmem:[%s380 + $0x1b0] sm:$0xf] %v597
                  %v599 = vld [vmem:[%s379 + $0x2b4] sm:$0xf]
                  %600 = vst [vmem:[%s380 + $0x1b4] sm:$0xf] %v599
                  %v601 = vld [vmem:[%s379 + $0x2b8] sm:$0xf]
                  %602 = vst [vmem:[%s380 + $0x1b8] sm:$0xf] %v601
                  %v603 = vld [vmem:[%s379 + $0x2bc] sm:$0xf]
                  %604 = vst [vmem:[%s380 + $0x1bc] sm:$0xf] %v603
                  %v605 = vld [vmem:[%s379 + $0x2c0] sm:$0xf]
                  %606 = vst [vmem:[%s380 + $0x1c0] sm:$0xf] %v605
                  %v607 = vld [vmem:[%s379 + $0x2c4] sm:$0xf]
                  %608 = vst [vmem:[%s380 + $0x1c4] sm:$0xf] %v607
                  %v609 = vld [vmem:[%s379 + $0x2c8] sm:$0xf]
                  %610 = vst [vmem:[%s380 + $0x1c8] sm:$0xf] %v609
                  %v611 = vld [vmem:[%s379 + $0x2cc] sm:$0xf]
                  %612 = vst [vmem:[%s380 + $0x1cc] sm:$0xf] %v611
                  %v613 = vld [vmem:[%s379 + $0x2d0] sm:$0xf]
                  %614 = vst [vmem:[%s380 + $0x1d0] sm:$0xf] %v613
                  %v615 = vld [vmem:[%s379 + $0x2d4] sm:$0xf]
                  %616 = vst [vmem:[%s380 + $0x1d4] sm:$0xf] %v615
                  %v617 = vld [vmem:[%s379 + $0x2d8] sm:$0xf]
                  %618 = vst [vmem:[%s380 + $0x1d8] sm:$0xf] %v617
                  %v619 = vld [vmem:[%s379 + $0x2dc] sm:$0xf]
                  %620 = vst [vmem:[%s380 + $0x1dc] sm:$0xf] %v619
                  %v621 = vld [vmem:[%s379 + $0x2e0] sm:$0xf]
                  %622 = vst [vmem:[%s380 + $0x1e0] sm:$0xf] %v621
                  %v623 = vld [vmem:[%s379 + $0x2e4] sm:$0xf]
                  %624 = vst [vmem:[%s380 + $0x1e4] sm:$0xf] %v623
                  %v625 = vld [vmem:[%s379 + $0x2e8] sm:$0xf]
                  %626 = vst [vmem:[%s380 + $0x1e8] sm:$0xf] %v625
                  %v627 = vld [vmem:[%s379 + $0x2ec] sm:$0xf]
                  %628 = vst [vmem:[%s380 + $0x1ec] sm:$0xf] %v627
                  %v629 = vld [vmem:[%s379 + $0x2f0] sm:$0xf]
                  %630 = vst [vmem:[%s380 + $0x1f0] sm:$0xf] %v629
                  %v631 = vld [vmem:[%s379 + $0x2f4] sm:$0xf]
                  %632 = vst [vmem:[%s380 + $0x1f4] sm:$0xf] %v631
                  %v633 = vld [vmem:[%s379 + $0x2f8] sm:$0xf]
                  %634 = vst [vmem:[%s380 + $0x1f8] sm:$0xf] %v633
                  %v635 = vld [vmem:[%s379 + $0x2fc] sm:$0xf]
                  %636 = vst [vmem:[%s380 + $0x1fc] sm:$0xf] %v635
                $region55: #{_framed_vad.1} parent=42 // loop_footer
                  %s378 = sadd.s32 1, %s374
                $region56: #{_framed_vad.1} parent=42 // loop_footer_branch
                  %373 = sbr.rel target = $region52
                $region57: #{_framed_vad.1} parent=42 // loop_exit
                  _
              $region43: #{_framed_vad.1} parent=27 // pred_fallthru
                _
            $region28: #{_framed_vad.1} parent=23 // pred_fallthru
              _
            // Predicated region
            $region29: #{_framed_vad.1} parent=23 // pred_check
              _
            $region30: #{_framed_vad.1} parent=23 // pred_check_branch
              %96 = sbr.rel (0) target = $region32
            $region31: #{_framed_vad.1} parent=23 // pred_region
              loop: start=0, step=1, limit=1
              $region33: #{_framed_vad.1} parent=31 // loop_pre_header
                _
              $region34: #{_framed_vad.1} parent=31 // loop_header
                %s99 = sphi 0, %s103
                %p100 = scmp.ge.s32.totalorder %s99, 1
                %s104 = sphi %s90, %s90
                %s105 = sphi %s87, %s87
              $region35: #{_framed_vad.1} parent=31 // loop_header_branch
                %102 = sbr.rel (%p100) target = $region39
              $region36: #{_framed_vad.1} parent=31 // loop_body
                %v106 = vld [vmem:[%s104] sm:$0xf]
                %107 = vst [vmem:[%s105] sm:$0xf] %v106
                %v108 = vld [vmem:[%s104 + $0x4] sm:$0xf]
                %109 = vst [vmem:[%s105 + $0x4] sm:$0xf] %v108
                %v110 = vld [vmem:[%s104 + $0x8] sm:$0xf]
                %111 = vst [vmem:[%s105 + $0x8] sm:$0xf] %v110
                %v112 = vld [vmem:[%s104 + $0xc] sm:$0xf]
                %113 = vst [vmem:[%s105 + $0xc] sm:$0xf] %v112
                %v114 = vld [vmem:[%s104 + $0x10] sm:$0xf]
                %115 = vst [vmem:[%s105 + $0x10] sm:$0xf] %v114
                %v116 = vld [vmem:[%s104 + $0x14] sm:$0xf]
                %117 = vst [vmem:[%s105 + $0x14] sm:$0xf] %v116
                %v118 = vld [vmem:[%s104 + $0x18] sm:$0xf]
                %119 = vst [vmem:[%s105 + $0x18] sm:$0xf] %v118
                %v120 = vld [vmem:[%s104 + $0x1c] sm:$0xf]
                %121 = vst [vmem:[%s105 + $0x1c] sm:$0xf] %v120
                %v122 = vld [vmem:[%s104 + $0x20] sm:$0xf]
                %123 = vst [vmem:[%s105 + $0x20] sm:$0xf] %v122
                %v124 = vld [vmem:[%s104 + $0x24] sm:$0xf]
                %125 = vst [vmem:[%s105 + $0x24] sm:$0xf] %v124
                %v126 = vld [vmem:[%s104 + $0x28] sm:$0xf]
                %127 = vst [vmem:[%s105 + $0x28] sm:$0xf] %v126
                %v128 = vld [vmem:[%s104 + $0x2c] sm:$0xf]
                %129 = vst [vmem:[%s105 + $0x2c] sm:$0xf] %v128
                %v130 = vld [vmem:[%s104 + $0x30] sm:$0xf]
                %131 = vst [vmem:[%s105 + $0x30] sm:$0xf] %v130
                %v132 = vld [vmem:[%s104 + $0x34] sm:$0xf]
                %133 = vst [vmem:[%s105 + $0x34] sm:$0xf] %v132
                %v134 = vld [vmem:[%s104 + $0x38] sm:$0xf]
                %135 = vst [vmem:[%s105 + $0x38] sm:$0xf] %v134
                %v136 = vld [vmem:[%s104 + $0x3c] sm:$0xf]
                %137 = vst [vmem:[%s105 + $0x3c] sm:$0xf] %v136
                %v138 = vld [vmem:[%s104 + $0x40] sm:$0xf]
                %139 = vst [vmem:[%s105 + $0x40] sm:$0xf] %v138
                %v140 = vld [vmem:[%s104 + $0x44] sm:$0xf]
                %141 = vst [vmem:[%s105 + $0x44] sm:$0xf] %v140
                %v142 = vld [vmem:[%s104 + $0x48] sm:$0xf]
                %143 = vst [vmem:[%s105 + $0x48] sm:$0xf] %v142
                %v144 = vld [vmem:[%s104 + $0x4c] sm:$0xf]
                %145 = vst [vmem:[%s105 + $0x4c] sm:$0xf] %v144
                %v146 = vld [vmem:[%s104 + $0x50] sm:$0xf]
                %147 = vst [vmem:[%s105 + $0x50] sm:$0xf] %v146
                %v148 = vld [vmem:[%s104 + $0x54] sm:$0xf]
                %149 = vst [vmem:[%s105 + $0x54] sm:$0xf] %v148
                %v150 = vld [vmem:[%s104 + $0x58] sm:$0xf]
                %151 = vst [vmem:[%s105 + $0x58] sm:$0xf] %v150
                %v152 = vld [vmem:[%s104 + $0x5c] sm:$0xf]
                %153 = vst [vmem:[%s105 + $0x5c] sm:$0xf] %v152
                %v154 = vld [vmem:[%s104 + $0x60] sm:$0xf]
                %155 = vst [vmem:[%s105 + $0x60] sm:$0xf] %v154
                %v156 = vld [vmem:[%s104 + $0x64] sm:$0xf]
                %157 = vst [vmem:[%s105 + $0x64] sm:$0xf] %v156
                %v158 = vld [vmem:[%s104 + $0x68] sm:$0xf]
                %159 = vst [vmem:[%s105 + $0x68] sm:$0xf] %v158
                %v160 = vld [vmem:[%s104 + $0x6c] sm:$0xf]
                %161 = vst [vmem:[%s105 + $0x6c] sm:$0xf] %v160
                %v162 = vld [vmem:[%s104 + $0x70] sm:$0xf]
                %163 = vst [vmem:[%s105 + $0x70] sm:$0xf] %v162
                %v164 = vld [vmem:[%s104 + $0x74] sm:$0xf]
                %165 = vst [vmem:[%s105 + $0x74] sm:$0xf] %v164
                %v166 = vld [vmem:[%s104 + $0x78] sm:$0xf]
                %167 = vst [vmem:[%s105 + $0x78] sm:$0xf] %v166
                %v168 = vld [vmem:[%s104 + $0x7c] sm:$0xf]
                %169 = vst [vmem:[%s105 + $0x7c] sm:$0xf] %v168
                %v170 = vld [vmem:[%s104 + $0x80] sm:$0xf]
                %171 = vst [vmem:[%s105 + $0x80] sm:$0xf] %v170
                %v172 = vld [vmem:[%s104 + $0x84] sm:$0xf]
                %173 = vst [vmem:[%s105 + $0x84] sm:$0xf] %v172
                %v174 = vld [vmem:[%s104 + $0x88] sm:$0xf]
                %175 = vst [vmem:[%s105 + $0x88] sm:$0xf] %v174
                %v176 = vld [vmem:[%s104 + $0x8c] sm:$0xf]
                %177 = vst [vmem:[%s105 + $0x8c] sm:$0xf] %v176
                %v178 = vld [vmem:[%s104 + $0x90] sm:$0xf]
                %179 = vst [vmem:[%s105 + $0x90] sm:$0xf] %v178
                %v180 = vld [vmem:[%s104 + $0x94] sm:$0xf]
                %181 = vst [vmem:[%s105 + $0x94] sm:$0xf] %v180
                %v182 = vld [vmem:[%s104 + $0x98] sm:$0xf]
                %183 = vst [vmem:[%s105 + $0x98] sm:$0xf] %v182
                %v184 = vld [vmem:[%s104 + $0x9c] sm:$0xf]
                %185 = vst [vmem:[%s105 + $0x9c] sm:$0xf] %v184
                %v186 = vld [vmem:[%s104 + $0xa0] sm:$0xf]
                %187 = vst [vmem:[%s105 + $0xa0] sm:$0xf] %v186
                %v188 = vld [vmem:[%s104 + $0xa4] sm:$0xf]
                %189 = vst [vmem:[%s105 + $0xa4] sm:$0xf] %v188
                %v190 = vld [vmem:[%s104 + $0xa8] sm:$0xf]
                %191 = vst [vmem:[%s105 + $0xa8] sm:$0xf] %v190
                %v192 = vld [vmem:[%s104 + $0xac] sm:$0xf]
                %193 = vst [vmem:[%s105 + $0xac] sm:$0xf] %v192
                %v194 = vld [vmem:[%s104 + $0xb0] sm:$0xf]
                %195 = vst [vmem:[%s105 + $0xb0] sm:$0xf] %v194
                %v196 = vld [vmem:[%s104 + $0xb4] sm:$0xf]
                %197 = vst [vmem:[%s105 + $0xb4] sm:$0xf] %v196
                %v198 = vld [vmem:[%s104 + $0xb8] sm:$0xf]
                %199 = vst [vmem:[%s105 + $0xb8] sm:$0xf] %v198
                %v200 = vld [vmem:[%s104 + $0xbc] sm:$0xf]
                %201 = vst [vmem:[%s105 + $0xbc] sm:$0xf] %v200
                %v202 = vld [vmem:[%s104 + $0xc0] sm:$0xf]
                %203 = vst [vmem:[%s105 + $0xc0] sm:$0xf] %v202
                %v204 = vld [vmem:[%s104 + $0xc4] sm:$0xf]
                %205 = vst [vmem:[%s105 + $0xc4] sm:$0xf] %v204
                %v206 = vld [vmem:[%s104 + $0xc8] sm:$0xf]
                %207 = vst [vmem:[%s105 + $0xc8] sm:$0xf] %v206
                %v208 = vld [vmem:[%s104 + $0xcc] sm:$0xf]
                %209 = vst [vmem:[%s105 + $0xcc] sm:$0xf] %v208
                %v210 = vld [vmem:[%s104 + $0xd0] sm:$0xf]
                %211 = vst [vmem:[%s105 + $0xd0] sm:$0xf] %v210
                %v212 = vld [vmem:[%s104 + $0xd4] sm:$0xf]
                %213 = vst [vmem:[%s105 + $0xd4] sm:$0xf] %v212
                %v214 = vld [vmem:[%s104 + $0xd8] sm:$0xf]
                %215 = vst [vmem:[%s105 + $0xd8] sm:$0xf] %v214
                %v216 = vld [vmem:[%s104 + $0xdc] sm:$0xf]
                %217 = vst [vmem:[%s105 + $0xdc] sm:$0xf] %v216
                %v218 = vld [vmem:[%s104 + $0xe0] sm:$0xf]
                %219 = vst [vmem:[%s105 + $0xe0] sm:$0xf] %v218
                %v220 = vld [vmem:[%s104 + $0xe4] sm:$0xf]
                %221 = vst [vmem:[%s105 + $0xe4] sm:$0xf] %v220
                %v222 = vld [vmem:[%s104 + $0xe8] sm:$0xf]
                %223 = vst [vmem:[%s105 + $0xe8] sm:$0xf] %v222
                %v224 = vld [vmem:[%s104 + $0xec] sm:$0xf]
                %225 = vst [vmem:[%s105 + $0xec] sm:$0xf] %v224
                %v226 = vld [vmem:[%s104 + $0xf0] sm:$0xf]
                %227 = vst [vmem:[%s105 + $0xf0] sm:$0xf] %v226
                %v228 = vld [vmem:[%s104 + $0xf4] sm:$0xf]
                %229 = vst [vmem:[%s105 + $0xf4] sm:$0xf] %v228
                %v230 = vld [vmem:[%s104 + $0xf8] sm:$0xf]
                %231 = vst [vmem:[%s105 + $0xf8] sm:$0xf] %v230
                %v232 = vld [vmem:[%s104 + $0xfc] sm:$0xf]
                %233 = vst [vmem:[%s105 + $0xfc] sm:$0xf] %v232
                %v234 = vld [vmem:[%s104 + $0x200] sm:$0xf]
                %235 = vst [vmem:[%s105 + $0x100] sm:$0xf] %v234
                %v236 = vld [vmem:[%s104 + $0x204] sm:$0xf]
                %237 = vst [vmem:[%s105 + $0x104] sm:$0xf] %v236
                %v238 = vld [vmem:[%s104 + $0x208] sm:$0xf]
                %239 = vst [vmem:[%s105 + $0x108] sm:$0xf] %v238
                %v240 = vld [vmem:[%s104 + $0x20c] sm:$0xf]
                %241 = vst [vmem:[%s105 + $0x10c] sm:$0xf] %v240
                %v242 = vld [vmem:[%s104 + $0x210] sm:$0xf]
                %243 = vst [vmem:[%s105 + $0x110] sm:$0xf] %v242
                %v244 = vld [vmem:[%s104 + $0x214] sm:$0xf]
                %245 = vst [vmem:[%s105 + $0x114] sm:$0xf] %v244
                %v246 = vld [vmem:[%s104 + $0x218] sm:$0xf]
                %247 = vst [vmem:[%s105 + $0x118] sm:$0xf] %v246
                %v248 = vld [vmem:[%s104 + $0x21c] sm:$0xf]
                %249 = vst [vmem:[%s105 + $0x11c] sm:$0xf] %v248
                %v250 = vld [vmem:[%s104 + $0x220] sm:$0xf]
                %251 = vst [vmem:[%s105 + $0x120] sm:$0xf] %v250
                %v252 = vld [vmem:[%s104 + $0x224] sm:$0xf]
                %253 = vst [vmem:[%s105 + $0x124] sm:$0xf] %v252
                %v254 = vld [vmem:[%s104 + $0x228] sm:$0xf]
                %255 = vst [vmem:[%s105 + $0x128] sm:$0xf] %v254
                %v256 = vld [vmem:[%s104 + $0x22c] sm:$0xf]
                %257 = vst [vmem:[%s105 + $0x12c] sm:$0xf] %v256
                %v258 = vld [vmem:[%s104 + $0x230] sm:$0xf]
                %259 = vst [vmem:[%s105 + $0x130] sm:$0xf] %v258
                %v260 = vld [vmem:[%s104 + $0x234] sm:$0xf]
                %261 = vst [vmem:[%s105 + $0x134] sm:$0xf] %v260
                %v262 = vld [vmem:[%s104 + $0x238] sm:$0xf]
                %263 = vst [vmem:[%s105 + $0x138] sm:$0xf] %v262
                %v264 = vld [vmem:[%s104 + $0x23c] sm:$0xf]
                %265 = vst [vmem:[%s105 + $0x13c] sm:$0xf] %v264
                %v266 = vld [vmem:[%s104 + $0x240] sm:$0xf]
                %267 = vst [vmem:[%s105 + $0x140] sm:$0xf] %v266
                %v268 = vld [vmem:[%s104 + $0x244] sm:$0xf]
                %269 = vst [vmem:[%s105 + $0x144] sm:$0xf] %v268
                %v270 = vld [vmem:[%s104 + $0x248] sm:$0xf]
                %271 = vst [vmem:[%s105 + $0x148] sm:$0xf] %v270
                %v272 = vld [vmem:[%s104 + $0x24c] sm:$0xf]
                %273 = vst [vmem:[%s105 + $0x14c] sm:$0xf] %v272
                %v274 = vld [vmem:[%s104 + $0x250] sm:$0xf]
                %275 = vst [vmem:[%s105 + $0x150] sm:$0xf] %v274
                %v276 = vld [vmem:[%s104 + $0x254] sm:$0xf]
                %277 = vst [vmem:[%s105 + $0x154] sm:$0xf] %v276
                %v278 = vld [vmem:[%s104 + $0x258] sm:$0xf]
                %279 = vst [vmem:[%s105 + $0x158] sm:$0xf] %v278
                %v280 = vld [vmem:[%s104 + $0x25c] sm:$0xf]
                %281 = vst [vmem:[%s105 + $0x15c] sm:$0xf] %v280
                %v282 = vld [vmem:[%s104 + $0x260] sm:$0xf]
                %283 = vst [vmem:[%s105 + $0x160] sm:$0xf] %v282
                %v284 = vld [vmem:[%s104 + $0x264] sm:$0xf]
                %285 = vst [vmem:[%s105 + $0x164] sm:$0xf] %v284
                %v286 = vld [vmem:[%s104 + $0x268] sm:$0xf]
                %287 = vst [vmem:[%s105 + $0x168] sm:$0xf] %v286
                %v288 = vld [vmem:[%s104 + $0x26c] sm:$0xf]
                %289 = vst [vmem:[%s105 + $0x16c] sm:$0xf] %v288
                %v290 = vld [vmem:[%s104 + $0x270] sm:$0xf]
                %291 = vst [vmem:[%s105 + $0x170] sm:$0xf] %v290
                %v292 = vld [vmem:[%s104 + $0x274] sm:$0xf]
                %293 = vst [vmem:[%s105 + $0x174] sm:$0xf] %v292
                %v294 = vld [vmem:[%s104 + $0x278] sm:$0xf]
                %295 = vst [vmem:[%s105 + $0x178] sm:$0xf] %v294
                %v296 = vld [vmem:[%s104 + $0x27c] sm:$0xf]
                %297 = vst [vmem:[%s105 + $0x17c] sm:$0xf] %v296
                %v298 = vld [vmem:[%s104 + $0x280] sm:$0xf]
                %299 = vst [vmem:[%s105 + $0x180] sm:$0xf] %v298
                %v300 = vld [vmem:[%s104 + $0x284] sm:$0xf]
                %301 = vst [vmem:[%s105 + $0x184] sm:$0xf] %v300
                %v302 = vld [vmem:[%s104 + $0x288] sm:$0xf]
                %303 = vst [vmem:[%s105 + $0x188] sm:$0xf] %v302
                %v304 = vld [vmem:[%s104 + $0x28c] sm:$0xf]
                %305 = vst [vmem:[%s105 + $0x18c] sm:$0xf] %v304
                %v306 = vld [vmem:[%s104 + $0x290] sm:$0xf]
                %307 = vst [vmem:[%s105 + $0x190] sm:$0xf] %v306
                %v308 = vld [vmem:[%s104 + $0x294] sm:$0xf]
                %309 = vst [vmem:[%s105 + $0x194] sm:$0xf] %v308
                %v310 = vld [vmem:[%s104 + $0x298] sm:$0xf]
                %311 = vst [vmem:[%s105 + $0x198] sm:$0xf] %v310
                %v312 = vld [vmem:[%s104 + $0x29c] sm:$0xf]
                %313 = vst [vmem:[%s105 + $0x19c] sm:$0xf] %v312
                %v314 = vld [vmem:[%s104 + $0x2a0] sm:$0xf]
                %315 = vst [vmem:[%s105 + $0x1a0] sm:$0xf] %v314
                %v316 = vld [vmem:[%s104 + $0x2a4] sm:$0xf]
                %317 = vst [vmem:[%s105 + $0x1a4] sm:$0xf] %v316
                %v318 = vld [vmem:[%s104 + $0x2a8] sm:$0xf]
                %319 = vst [vmem:[%s105 + $0x1a8] sm:$0xf] %v318
                %v320 = vld [vmem:[%s104 + $0x2ac] sm:$0xf]
                %321 = vst [vmem:[%s105 + $0x1ac] sm:$0xf] %v320
                %v322 = vld [vmem:[%s104 + $0x2b0] sm:$0xf]
                %323 = vst [vmem:[%s105 + $0x1b0] sm:$0xf] %v322
                %v324 = vld [vmem:[%s104 + $0x2b4] sm:$0xf]
                %325 = vst [vmem:[%s105 + $0x1b4] sm:$0xf] %v324
                %v326 = vld [vmem:[%s104 + $0x2b8] sm:$0xf]
                %327 = vst [vmem:[%s105 + $0x1b8] sm:$0xf] %v326
                %v328 = vld [vmem:[%s104 + $0x2bc] sm:$0xf]
                %329 = vst [vmem:[%s105 + $0x1bc] sm:$0xf] %v328
                %v330 = vld [vmem:[%s104 + $0x2c0] sm:$0xf]
                %331 = vst [vmem:[%s105 + $0x1c0] sm:$0xf] %v330
                %v332 = vld [vmem:[%s104 + $0x2c4] sm:$0xf]
                %333 = vst [vmem:[%s105 + $0x1c4] sm:$0xf] %v332
                %v334 = vld [vmem:[%s104 + $0x2c8] sm:$0xf]
                %335 = vst [vmem:[%s105 + $0x1c8] sm:$0xf] %v334
                %v336 = vld [vmem:[%s104 + $0x2cc] sm:$0xf]
                %337 = vst [vmem:[%s105 + $0x1cc] sm:$0xf] %v336
                %v338 = vld [vmem:[%s104 + $0x2d0] sm:$0xf]
                %339 = vst [vmem:[%s105 + $0x1d0] sm:$0xf] %v338
                %v340 = vld [vmem:[%s104 + $0x2d4] sm:$0xf]
                %341 = vst [vmem:[%s105 + $0x1d4] sm:$0xf] %v340
                %v342 = vld [vmem:[%s104 + $0x2d8] sm:$0xf]
                %343 = vst [vmem:[%s105 + $0x1d8] sm:$0xf] %v342
                %v344 = vld [vmem:[%s104 + $0x2dc] sm:$0xf]
                %345 = vst [vmem:[%s105 + $0x1dc] sm:$0xf] %v344
                %v346 = vld [vmem:[%s104 + $0x2e0] sm:$0xf]
                %347 = vst [vmem:[%s105 + $0x1e0] sm:$0xf] %v346
                %v348 = vld [vmem:[%s104 + $0x2e4] sm:$0xf]
                %349 = vst [vmem:[%s105 + $0x1e4] sm:$0xf] %v348
                %v350 = vld [vmem:[%s104 + $0x2e8] sm:$0xf]
                %351 = vst [vmem:[%s105 + $0x1e8] sm:$0xf] %v350
                %v352 = vld [vmem:[%s104 + $0x2ec] sm:$0xf]
                %353 = vst [vmem:[%s105 + $0x1ec] sm:$0xf] %v352
                %v354 = vld [vmem:[%s104 + $0x2f0] sm:$0xf]
                %355 = vst [vmem:[%s105 + $0x1f0] sm:$0xf] %v354
                %v356 = vld [vmem:[%s104 + $0x2f4] sm:$0xf]
                %357 = vst [vmem:[%s105 + $0x1f4] sm:$0xf] %v356
                %v358 = vld [vmem:[%s104 + $0x2f8] sm:$0xf]
                %359 = vst [vmem:[%s105 + $0x1f8] sm:$0xf] %v358
                %v360 = vld [vmem:[%s104 + $0x2fc] sm:$0xf]
                %361 = vst [vmem:[%s105 + $0x1fc] sm:$0xf] %v360
              $region37: #{_framed_vad.1} parent=31 // loop_footer
                %s103 = sadd.s32 1, %s99
              $region38: #{_framed_vad.1} parent=31 // loop_footer_branch
                %98 = sbr.rel target = $region34
              $region39: #{_framed_vad.1} parent=31 // loop_exit
                _
            $region32: #{_framed_vad.1} parent=23 // pred_fallthru
              _
          $region24: #{_framed_vad.1} parent=19 // pred_fallthru
            _
          %637 = vnop
        $region20: #{_framed_vad.1} parent=15 // pred_fallthru
          _
      $region16: #{_framed_vad.1} parent=5 // pred_fallthru
        _
      %p638 = scmp.le.s32.totalorder 1, %s10
      %p639 = scmp.lt.s32.totalorder %s10, 3
      %p640 = pnand %p638, %p639
      %p641 = pneg %p640
      // Predicated region
      $region58: #{_framed_vad.1} parent=5 // pred_check
        _
      $region59: #{_framed_vad.1} parent=5 // pred_check_branch
        %643 = sbr.rel (%p640) target = $region61
      $region60: #{_framed_vad.1} parent=5 // pred_region
        %s644 = ssub.s32 %s10, 1
        %s645 = sand.u32 %s23, 1
        %s646 = sand.u32 %s23, 1
        %s647 = smul.addr %s646, 512
        %s648 = scalar_lea.vmem [#allocation2], %s647
        // Predicated region
        $region62: #{_framed_vad.1} parent=60 // pred_check
          %p649 = pneg %p36
        $region63: #{_framed_vad.1} parent=60 // pred_check_branch
          %651 = sbr.rel (%p649) target = $region65
        $region64: #{_framed_vad.1} parent=60 // pred_region
          _
        $region65: #{_framed_vad.1} parent=60 // pred_fallthru
          _
        %s652 = sand.u32 %s23, 1
        %s653 = sand.u32 %s23, 1
        %s654 = smul.addr %s653, 512
        %s655 = scalar_lea.vmem [#allocation2], %s654
        %p656 = pneg %p36
        %p657 = pneg %p33
        %p658 = pneg %p62
        %p659 = pneg %p59
        %s660 = sand.u32 %s49, 1
        %s661 = scalar_lea.sflag [#allocation4], %s660
        %s662 = sand.u32 %s49, 1
        %s663 = smul.addr %s662, 4
        %s664 = scalar_lea.vmem [#allocation3], %s663
        %s665 = smul.u32 64, %s15
        %s666 = smul.u32 4, %s15
        %v669 = vld [vmem:[%s648] sm:$0xf]
        %v670 = vld [vmem:[%s648 + $0x4] sm:$0xf]
        %v671 = vld [vmem:[%s648 + $0x8] sm:$0xf]
        %v672 = vld [vmem:[%s648 + $0xc] sm:$0xf]
        %v673 = vld [vmem:[%s648 + $0x10] sm:$0xf]
        %v674 = vld [vmem:[%s648 + $0x14] sm:$0xf]
        %v675 = vld [vmem:[%s648 + $0x18] sm:$0xf]
        %v676 = vld [vmem:[%s648 + $0x1c] sm:$0xf]
        %v677 = vld [vmem:[%s648 + $0x20] sm:$0xf]
        %v678 = vld [vmem:[%s648 + $0x24] sm:$0xf]
        %v679 = vld [vmem:[%s648 + $0x28] sm:$0xf]
        %v680 = vld [vmem:[%s648 + $0x2c] sm:$0xf]
        %v681 = vld [vmem:[%s648 + $0x30] sm:$0xf]
        %v682 = vld [vmem:[%s648 + $0x34] sm:$0xf]
        %v683 = vld [vmem:[%s648 + $0x38] sm:$0xf]
        %v684 = vld [vmem:[%s648 + $0x3c] sm:$0xf]
        %v685 = vld [vmem:[%s648 + $0x40] sm:$0xf]
        %v686 = vld [vmem:[%s648 + $0x44] sm:$0xf]
        %v687 = vld [vmem:[%s648 + $0x48] sm:$0xf]
        %v688 = vld [vmem:[%s648 + $0x4c] sm:$0xf]
        %v689 = vld [vmem:[%s648 + $0x50] sm:$0xf]
        %v690 = vld [vmem:[%s648 + $0x54] sm:$0xf]
        %v691 = vld [vmem:[%s648 + $0x58] sm:$0xf]
        %v692 = vld [vmem:[%s648 + $0x5c] sm:$0xf]
        %v693 = vld [vmem:[%s648 + $0x60] sm:$0xf]
        %v694 = vld [vmem:[%s648 + $0x64] sm:$0xf]
        %v695 = vld [vmem:[%s648 + $0x68] sm:$0xf]
        %v696 = vld [vmem:[%s648 + $0x6c] sm:$0xf]
        %v697 = vld [vmem:[%s648 + $0x70] sm:$0xf]
        %v698 = vld [vmem:[%s648 + $0x74] sm:$0xf]
        %v699 = vld [vmem:[%s648 + $0x78] sm:$0xf]
        %v700 = vld [vmem:[%s648 + $0x7c] sm:$0xf]
        %v701 = vld [vmem:[%s648 + $0x80] sm:$0xf]
        %v702 = vld [vmem:[%s648 + $0x84] sm:$0xf]
        %v703 = vld [vmem:[%s648 + $0x88] sm:$0xf]
        %v704 = vld [vmem:[%s648 + $0x8c] sm:$0xf]
        %v705 = vld [vmem:[%s648 + $0x90] sm:$0xf]
        %v706 = vld [vmem:[%s648 + $0x94] sm:$0xf]
        %v707 = vld [vmem:[%s648 + $0x98] sm:$0xf]
        %v708 = vld [vmem:[%s648 + $0x9c] sm:$0xf]
        %v709 = vld [vmem:[%s648 + $0xa0] sm:$0xf]
        %v710 = vld [vmem:[%s648 + $0xa4] sm:$0xf]
        %v711 = vld [vmem:[%s648 + $0xa8] sm:$0xf]
        %v712 = vld [vmem:[%s648 + $0xac] sm:$0xf]
        %v713 = vld [vmem:[%s648 + $0xb0] sm:$0xf]
        %v714 = vld [vmem:[%s648 + $0xb4] sm:$0xf]
        %v715 = vld [vmem:[%s648 + $0xb8] sm:$0xf]
        %v716 = vld [vmem:[%s648 + $0xbc] sm:$0xf]
        %v717 = vld [vmem:[%s648 + $0xc0] sm:$0xf]
        %v718 = vld [vmem:[%s648 + $0xc4] sm:$0xf]
        %v719 = vld [vmem:[%s648 + $0xc8] sm:$0xf]
        %v720 = vld [vmem:[%s648 + $0xcc] sm:$0xf]
        %v721 = vld [vmem:[%s648 + $0xd0] sm:$0xf]
        %v722 = vld [vmem:[%s648 + $0xd4] sm:$0xf]
        %v723 = vld [vmem:[%s648 + $0xd8] sm:$0xf]
        %v724 = vld [vmem:[%s648 + $0xdc] sm:$0xf]
        %v725 = vld [vmem:[%s648 + $0xe0] sm:$0xf]
        %v726 = vld [vmem:[%s648 + $0xe4] sm:$0xf]
        %v727 = vld [vmem:[%s648 + $0xe8] sm:$0xf]
        %v728 = vld [vmem:[%s648 + $0xec] sm:$0xf]
        %v729 = vld [vmem:[%s648 + $0xf0] sm:$0xf]
        %v730 = vld [vmem:[%s648 + $0xf4] sm:$0xf]
        %v731 = vld [vmem:[%s648 + $0xf8] sm:$0xf]
        %v732 = vld [vmem:[%s648 + $0xfc] sm:$0xf]
        %v733 = vunpack.c.l.b16 %v669
        %v734 = vunpack.c.l.b16 %v670
        %v735 = vunpack.c.l.b16 %v671
        %v736 = vunpack.c.l.b16 %v672
        %v737 = vunpack.c.l.b16 %v673
        %v738 = vunpack.c.l.b16 %v674
        %v739 = vunpack.c.l.b16 %v675
        %v740 = vunpack.c.l.b16 %v676
        %v741 = vunpack.c.l.b16 %v677
        %v742 = vunpack.c.l.b16 %v678
        %v743 = vunpack.c.l.b16 %v679
        %v744 = vunpack.c.l.b16 %v680
        %v745 = vunpack.c.l.b16 %v681
        %v746 = vunpack.c.l.b16 %v682
        %v747 = vunpack.c.l.b16 %v683
        %v748 = vunpack.c.l.b16 %v684
        %v749 = vunpack.c.l.b16 %v685
        %v750 = vunpack.c.l.b16 %v686
        %v751 = vunpack.c.l.b16 %v687
        %v752 = vunpack.c.l.b16 %v688
        %v753 = vunpack.c.l.b16 %v689
        %v754 = vunpack.c.l.b16 %v690
        %v755 = vunpack.c.l.b16 %v691
        %v756 = vunpack.c.l.b16 %v692
        %v757 = vunpack.c.l.b16 %v693
        %v758 = vunpack.c.l.b16 %v694
        %v759 = vunpack.c.l.b16 %v695
        %v760 = vunpack.c.l.b16 %v696
        %v761 = vunpack.c.l.b16 %v697
        %v762 = vunpack.c.l.b16 %v698
        %v763 = vunpack.c.l.b16 %v699
        %v764 = vunpack.c.l.b16 %v700
        %v765 = vunpack.c.l.b16 %v701
        %v766 = vunpack.c.l.b16 %v702
        %v767 = vunpack.c.l.b16 %v703
        %v768 = vunpack.c.l.b16 %v704
        %v769 = vunpack.c.l.b16 %v705
        %v770 = vunpack.c.l.b16 %v706
        %v771 = vunpack.c.l.b16 %v707
        %v772 = vunpack.c.l.b16 %v708
        %v773 = vunpack.c.l.b16 %v709
        %v774 = vunpack.c.l.b16 %v710
        %v775 = vunpack.c.l.b16 %v711
        %v776 = vunpack.c.l.b16 %v712
        %v777 = vunpack.c.l.b16 %v713
        %v778 = vunpack.c.l.b16 %v714
        %v779 = vunpack.c.l.b16 %v715
        %v780 = vunpack.c.l.b16 %v716
        %v781 = vunpack.c.l.b16 %v717
        %v782 = vunpack.c.l.b16 %v718
        %v783 = vunpack.c.l.b16 %v719
        %v784 = vunpack.c.l.b16 %v720
        %v785 = vunpack.c.l.b16 %v721
        %v786 = vunpack.c.l.b16 %v722
        %v787 = vunpack.c.l.b16 %v723
        %v788 = vunpack.c.l.b16 %v724
        %v789 = vunpack.c.l.b16 %v725
        %v790 = vunpack.c.l.b16 %v726
        %v791 = vunpack.c.l.b16 %v727
        %v792 = vunpack.c.l.b16 %v728
        %v793 = vunpack.c.l.b16 %v729
        %v794 = vunpack.c.l.b16 %v730
        %v795 = vunpack.c.l.b16 %v731
        %v796 = vunpack.c.l.b16 %v732
        %v797 = vcvt.s32.f32 %v733
        %v798 = vcvt.s32.f32 %v734
        %v799 = vcvt.s32.f32 %v735
        %v800 = vcvt.s32.f32 %v736
        %v801 = vcvt.s32.f32 %v737
        %v802 = vcvt.s32.f32 %v738
        %v803 = vcvt.s32.f32 %v739
        %v804 = vcvt.s32.f32 %v740
        %v805 = vcvt.s32.f32 %v741
        %v806 = vcvt.s32.f32 %v742
        %v807 = vcvt.s32.f32 %v743
        %v808 = vcvt.s32.f32 %v744
        %v809 = vcvt.s32.f32 %v745
        %v810 = vcvt.s32.f32 %v746
        %v811 = vcvt.s32.f32 %v747
        %v812 = vcvt.s32.f32 %v748
        %v813 = vcvt.s32.f32 %v749
        %v814 = vcvt.s32.f32 %v750
        %v815 = vcvt.s32.f32 %v751
        %v816 = vcvt.s32.f32 %v752
        %v817 = vcvt.s32.f32 %v753
        %v818 = vcvt.s32.f32 %v754
        %v819 = vcvt.s32.f32 %v755
        %v820 = vcvt.s32.f32 %v756
        %v821 = vcvt.s32.f32 %v757
        %v822 = vcvt.s32.f32 %v758
        %v823 = vcvt.s32.f32 %v759
        %v824 = vcvt.s32.f32 %v760
        %v825 = vcvt.s32.f32 %v761
        %v826 = vcvt.s32.f32 %v762
        %v827 = vcvt.s32.f32 %v763
        %v828 = vcvt.s32.f32 %v764
        %v829 = vcvt.s32.f32 %v765
        %v830 = vcvt.s32.f32 %v766
        %v831 = vcvt.s32.f32 %v767
        %v832 = vcvt.s32.f32 %v768
        %v833 = vcvt.s32.f32 %v769
        %v834 = vcvt.s32.f32 %v770
        %v835 = vcvt.s32.f32 %v771
        %v836 = vcvt.s32.f32 %v772
        %v837 = vcvt.s32.f32 %v773
        %v838 = vcvt.s32.f32 %v774
        %v839 = vcvt.s32.f32 %v775
        %v840 = vcvt.s32.f32 %v776
        %v841 = vcvt.s32.f32 %v777
        %v842 = vcvt.s32.f32 %v778
        %v843 = vcvt.s32.f32 %v779
        %v844 = vcvt.s32.f32 %v780
        %v845 = vcvt.s32.f32 %v781
        %v846 = vcvt.s32.f32 %v782
        %v847 = vcvt.s32.f32 %v783
        %v848 = vcvt.s32.f32 %v784
        %v849 = vcvt.s32.f32 %v785
        %v850 = vcvt.s32.f32 %v786
        %v851 = vcvt.s32.f32 %v787
        %v852 = vcvt.s32.f32 %v788
        %v853 = vcvt.s32.f32 %v789
        %v854 = vcvt.s32.f32 %v790
        %v855 = vcvt.s32.f32 %v791
        %v856 = vcvt.s32.f32 %v792
        %v857 = vcvt.s32.f32 %v793
        %v858 = vcvt.s32.f32 %v794
        %v859 = vcvt.s32.f32 %v795
        %v860 = vcvt.s32.f32 %v796
        %v861 = vmul.f32 %v797, %v797
        %v862 = vmul.f32 %v798, %v798
        %v863 = vmul.f32 %v799, %v799
        %v864 = vmul.f32 %v800, %v800
        %v865 = vmul.f32 %v801, %v801
        %v866 = vmul.f32 %v802, %v802
        %v867 = vmul.f32 %v803, %v803
        %v868 = vmul.f32 %v804, %v804
        %v869 = vmul.f32 %v805, %v805
        %v870 = vmul.f32 %v806, %v806
        %v871 = vmul.f32 %v807, %v807
        %v872 = vmul.f32 %v808, %v808
        %v873 = vmul.f32 %v809, %v809
        %v874 = vmul.f32 %v810, %v810
        %v875 = vmul.f32 %v811, %v811
        %v876 = vmul.f32 %v812, %v812
        %v877 = vmul.f32 %v813, %v813
        %v878 = vmul.f32 %v814, %v814
        %v879 = vmul.f32 %v815, %v815
        %v880 = vmul.f32 %v816, %v816
        %v881 = vmul.f32 %v817, %v817
        %v882 = vmul.f32 %v818, %v818
        %v883 = vmul.f32 %v819, %v819
        %v884 = vmul.f32 %v820, %v820
        %v885 = vmul.f32 %v821, %v821
        %v886 = vmul.f32 %v822, %v822
        %v887 = vmul.f32 %v823, %v823
        %v888 = vmul.f32 %v824, %v824
        %v889 = vmul.f32 %v825, %v825
        %v890 = vmul.f32 %v826, %v826
        %v891 = vmul.f32 %v827, %v827
        %v892 = vmul.f32 %v828, %v828
        %v893 = vmul.f32 %v829, %v829
        %v894 = vmul.f32 %v830, %v830
        %v895 = vmul.f32 %v831, %v831
        %v896 = vmul.f32 %v832, %v832
        %v897 = vmul.f32 %v833, %v833
        %v898 = vmul.f32 %v834, %v834
        %v899 = vmul.f32 %v835, %v835
        %v900 = vmul.f32 %v836, %v836
        %v901 = vmul.f32 %v837, %v837
        %v902 = vmul.f32 %v838, %v838
        %v903 = vmul.f32 %v839, %v839
        %v904 = vmul.f32 %v840, %v840
        %v905 = vmul.f32 %v841, %v841
        %v906 = vmul.f32 %v842, %v842
        %v907 = vmul.f32 %v843, %v843
        %v908 = vmul.f32 %v844, %v844
        %v909 = vmul.f32 %v845, %v845
        %v910 = vmul.f32 %v846, %v846
        %v911 = vmul.f32 %v847, %v847
        %v912 = vmul.f32 %v848, %v848
        %v913 = vmul.f32 %v849, %v849
        %v914 = vmul.f32 %v850, %v850
        %v915 = vmul.f32 %v851, %v851
        %v916 = vmul.f32 %v852, %v852
        %v917 = vmul.f32 %v853, %v853
        %v918 = vmul.f32 %v854, %v854
        %v919 = vmul.f32 %v855, %v855
        %v920 = vmul.f32 %v856, %v856
        %v921 = vmul.f32 %v857, %v857
        %v922 = vmul.f32 %v858, %v858
        %v923 = vmul.f32 %v859, %v859
        %v924 = vmul.f32 %v860, %v860
        %vm925 = vcmask 654336
        %v927 = vsel %vm925, 1.0, 0
        %v930 = vsel %vm925, %v861, 0
        %v933 = vsel %vm925, %v862, 0
        %v936 = vsel %vm925, %v863, 0
        %v939 = vsel %vm925, %v864, 0
        %v942 = vsel %vm925, %v865, 0
        %v945 = vsel %vm925, %v866, 0
        %v948 = vsel %vm925, %v867, 0
        %v951 = vsel %vm925, %v868, 0
        %v954 = vsel %vm925, %v869, 0
        %v957 = vsel %vm925, %v870, 0
        %v960 = vsel %vm925, %v871, 0
        %v963 = vsel %vm925, %v872, 0
        %v966 = vsel %vm925, %v873, 0
        %v969 = vsel %vm925, %v874, 0
        %v972 = vsel %vm925, %v875, 0
        %v975 = vsel %vm925, %v876, 0
        %v978 = vsel %vm925, %v877, 0
        %v981 = vsel %vm925, %v878, 0
        %v984 = vsel %vm925, %v879, 0
        %v987 = vsel %vm925, %v880, 0
        %v990 = vsel %vm925, %v881, 0
        %v993 = vsel %vm925, %v882, 0
        %v996 = vsel %vm925, %v883, 0
        %v999 = vsel %vm925, %v884, 0
        %v1002 = vsel %vm925, %v885, 0
        %v1005 = vsel %vm925, %v886, 0
        %v1008 = vsel %vm925, %v887, 0
        %v1011 = vsel %vm925, %v888, 0
        %v1014 = vsel %vm925, %v889, 0
        %v1017 = vsel %vm925, %v890, 0
        %v1020 = vsel %vm925, %v891, 0
        %v1023 = vsel %vm925, %v892, 0
        %v1026 = vsel %vm925, %v893, 0
        %v1029 = vsel %vm925, %v894, 0
        %v1032 = vsel %vm925, %v895, 0
        %v1035 = vsel %vm925, %v896, 0
        %v1038 = vsel %vm925, %v897, 0
        %v1041 = vsel %vm925, %v898, 0
        %v1044 = vsel %vm925, %v899, 0
        %v1047 = vsel %vm925, %v900, 0
        %v1050 = vsel %vm925, %v901, 0
        %v1053 = vsel %vm925, %v902, 0
        %v1056 = vsel %vm925, %v903, 0
        %v1059 = vsel %vm925, %v904, 0
        %v1062 = vsel %vm925, %v905, 0
        %v1065 = vsel %vm925, %v906, 0
        %v1068 = vsel %vm925, %v907, 0
        %v1071 = vsel %vm925, %v908, 0
        %v1074 = vsel %vm925, %v909, 0
        %v1077 = vsel %vm925, %v910, 0
        %v1080 = vsel %vm925, %v911, 0
        %v1083 = vsel %vm925, %v912, 0
        %v1086 = vsel %vm925, %v913, 0
        %v1089 = vsel %vm925, %v914, 0
        %v1092 = vsel %vm925, %v915, 0
        %v1095 = vsel %vm925, %v916, 0
        %v1098 = vsel %vm925, %v917, 0
        %v1101 = vsel %vm925, %v918, 0
        %v1104 = vsel %vm925, %v919, 0
        %v1107 = vsel %vm925, %v920, 0
        %v1110 = vsel %vm925, %v921, 0
        %v1113 = vsel %vm925, %v922, 0
        %v1116 = vsel %vm925, %v923, 0
        %v1119 = vsel %vm925, %v924, 0
        %1121 = vmatprep.subr.mxu0 0.0
        %v1122 = vand.u32 %v930, 4294901760
        %1123 = vmatpush1.xpose.msra.mxu0 %v1122
        %1124 = vmatprep.subr.mxu0 0.0
        %v1125 = vand.u32 %v933, 4294901760
        %1126 = vmatpush1.xpose.msra.mxu0 %v1125
        %1127 = vmatprep.subr.mxu0 0.0
        %v1128 = vand.u32 %v936, 4294901760
        %1129 = vmatpush1.xpose.msra.mxu0 %v1128
        %1130 = vmatprep.subr.mxu0 0.0
        %v1131 = vand.u32 %v939, 4294901760
        %1132 = vmatpush1.xpose.msra.mxu0 %v1131
        %1133 = vmatprep.subr.mxu0 0.0
        %v1134 = vand.u32 %v942, 4294901760
        %1135 = vmatpush1.xpose.msra.mxu0 %v1134
        %1136 = vmatprep.subr.mxu0 0.0
        %v1137 = vand.u32 %v945, 4294901760
        %1138 = vmatpush1.xpose.msra.mxu0 %v1137
        %1139 = vmatprep.subr.mxu0 0.0
        %v1140 = vand.u32 %v948, 4294901760
        %1141 = vmatpush1.xpose.msra.mxu0 %v1140
        %1142 = vmatprep.subr.mxu0 0.0
        %v1143 = vand.u32 %v951, 4294901760
        %1144 = vmatpush1.xpose.msra.mxu0 %v1143
        %1145 = vmatprep.subr.mxu0 0.0
        %v1146 = vand.u32 %v954, 4294901760
        %1147 = vmatpush1.xpose.msra.mxu0 %v1146
        %1148 = vmatprep.subr.mxu0 0.0
        %v1149 = vand.u32 %v957, 4294901760
        %1150 = vmatpush1.xpose.msra.mxu0 %v1149
        %1151 = vmatprep.subr.mxu0 0.0
        %v1152 = vand.u32 %v960, 4294901760
        %1153 = vmatpush1.xpose.msra.mxu0 %v1152
        %1154 = vmatprep.subr.mxu0 0.0
        %v1155 = vand.u32 %v963, 4294901760
        %1156 = vmatpush1.xpose.msra.mxu0 %v1155
        %1157 = vmatprep.subr.mxu0 0.0
        %v1158 = vand.u32 %v966, 4294901760
        %1159 = vmatpush1.xpose.msra.mxu0 %v1158
        %1160 = vmatprep.subr.mxu0 0.0
        %v1161 = vand.u32 %v969, 4294901760
        %1162 = vmatpush1.xpose.msra.mxu0 %v1161
        %1163 = vmatprep.subr.mxu0 0.0
        %v1164 = vand.u32 %v972, 4294901760
        %1165 = vmatpush1.xpose.msra.mxu0 %v1164
        %1166 = vmatprep.subr.mxu0 0.0
        %v1167 = vand.u32 %v975, 4294901760
        %1168 = vmatpush1.xpose.msra.mxu0 %v1167
        %1169 = vmatprep.subr.mxu0 0.0
        %v1170 = vand.u32 %v978, 4294901760
        %1171 = vmatpush1.xpose.msra.mxu0 %v1170
        %1172 = vmatprep.subr.mxu0 0.0
        %v1173 = vand.u32 %v981, 4294901760
        %1174 = vmatpush1.xpose.msra.mxu0 %v1173
        %1175 = vmatprep.subr.mxu0 0.0
        %v1176 = vand.u32 %v984, 4294901760
        %1177 = vmatpush1.xpose.msra.mxu0 %v1176
        %1178 = vmatprep.subr.mxu0 0.0
        %v1179 = vand.u32 %v987, 4294901760
        %1180 = vmatpush1.xpose.msra.mxu0 %v1179
        %1181 = vmatprep.subr.mxu0 0.0
        %v1182 = vand.u32 %v990, 4294901760
        %1183 = vmatpush1.xpose.msra.mxu0 %v1182
        %1184 = vmatprep.subr.mxu0 0.0
        %v1185 = vand.u32 %v993, 4294901760
        %1186 = vmatpush1.xpose.msra.mxu0 %v1185
        %1187 = vmatprep.subr.mxu0 0.0
        %v1188 = vand.u32 %v996, 4294901760
        %1189 = vmatpush1.xpose.msra.mxu0 %v1188
        %1190 = vmatprep.subr.mxu0 0.0
        %v1191 = vand.u32 %v999, 4294901760
        %1192 = vmatpush1.xpose.msra.mxu0 %v1191
        %1193 = vmatprep.subr.mxu0 0.0
        %v1194 = vand.u32 %v1002, 4294901760
        %1195 = vmatpush1.xpose.msra.mxu0 %v1194
        %1196 = vmatprep.subr.mxu0 0.0
        %v1197 = vand.u32 %v1005, 4294901760
        %1198 = vmatpush1.xpose.msra.mxu0 %v1197
        %1199 = vmatprep.subr.mxu0 0.0
        %v1200 = vand.u32 %v1008, 4294901760
        %1201 = vmatpush1.xpose.msra.mxu0 %v1200
        %1202 = vmatprep.subr.mxu0 0.0
        %v1203 = vand.u32 %v1011, 4294901760
        %1204 = vmatpush1.xpose.msra.mxu0 %v1203
        %1205 = vmatprep.subr.mxu0 0.0
        %v1206 = vand.u32 %v1014, 4294901760
        %1207 = vmatpush1.xpose.msra.mxu0 %v1206
        %1208 = vmatprep.subr.mxu0 0.0
        %v1209 = vand.u32 %v1017, 4294901760
        %1210 = vmatpush1.xpose.msra.mxu0 %v1209
        %1211 = vmatprep.subr.mxu0 0.0
        %v1212 = vand.u32 %v1020, 4294901760
        %1213 = vmatpush1.xpose.msra.mxu0 %v1212
        %1214 = vmatprep.subr.mxu0 0.0
        %v1215 = vand.u32 %v1023, 4294901760
        %1216 = vmatpush1.xpose.msra.mxu0 %v1215
        %1217 = vmatprep.mubr.f32.mxu0 0.0
        %v1218 = vand.u32 %v927, 4294901760
        %v1219 = vsub.f32 %v927, %v1218
        %v1220 = vand.u32 %v1219, 4294901760
        %v1221 = vsub.f32 %v1219, %v1220
        %v1222 = vand.u32 %v1221, 4294901760
        %1223 = vmatmul.mubr.f32.gmra.mrb[0].mxu0 %v1222
        %v1224 = vpop.f32.mrb[0].mxu0
        %v1225 = vadd.f32 0.0, %v1224
        %v1226 = vpop.f32.mrb[0].mxu0
        %v1227 = vadd.f32 0.0, %v1226
        %1228 = vdwg.mxu0
        %1229 = vmatprep.subr.mxu0 0.0
        %v1230 = vand.u32 %v930, 4294901760
        %v1231 = vsub.f32 %v930, %v1230
        %v1232 = vand.u32 %v1231, 4294901760
        %v1233 = vsub.f32 %v1231, %v1232
        %v1234 = vand.u32 %v1233, 4294901760
        %1235 = vmatpush1.xpose.msra.mxu0 %v1234
        %1236 = vmatprep.subr.mxu0 0.0
        %v1237 = vand.u32 %v933, 4294901760
        %v1238 = vsub.f32 %v933, %v1237
        %v1239 = vand.u32 %v1238, 4294901760
        %v1240 = vsub.f32 %v1238, %v1239
        %v1241 = vand.u32 %v1240, 4294901760
        %1242 = vmatpush1.xpose.msra.mxu0 %v1241
        %1243 = vmatprep.subr.mxu0 0.0
        %v1244 = vand.u32 %v936, 4294901760
        %v1245 = vsub.f32 %v936, %v1244
        %v1246 = vand.u32 %v1245, 4294901760
        %v1247 = vsub.f32 %v1245, %v1246
        %v1248 = vand.u32 %v1247, 4294901760
        %1249 = vmatpush1.xpose.msra.mxu0 %v1248
        %1250 = vmatprep.subr.mxu0 0.0
        %v1251 = vand.u32 %v939, 4294901760
        %v1252 = vsub.f32 %v939, %v1251
        %v1253 = vand.u32 %v1252, 4294901760
        %v1254 = vsub.f32 %v1252, %v1253
        %v1255 = vand.u32 %v1254, 4294901760
        %1256 = vmatpush1.xpose.msra.mxu0 %v1255
        %1257 = vmatprep.subr.mxu0 0.0
        %v1258 = vand.u32 %v942, 4294901760
        %v1259 = vsub.f32 %v942, %v1258
        %v1260 = vand.u32 %v1259, 4294901760
        %v1261 = vsub.f32 %v1259, %v1260
        %v1262 = vand.u32 %v1261, 4294901760
        %1263 = vmatpush1.xpose.msra.mxu0 %v1262
        %1264 = vmatprep.subr.mxu0 0.0
        %v1265 = vand.u32 %v945, 4294901760
        %v1266 = vsub.f32 %v945, %v1265
        %v1267 = vand.u32 %v1266, 4294901760
        %v1268 = vsub.f32 %v1266, %v1267
        %v1269 = vand.u32 %v1268, 4294901760
        %1270 = vmatpush1.xpose.msra.mxu0 %v1269
        %1271 = vmatprep.subr.mxu0 0.0
        %v1272 = vand.u32 %v948, 4294901760
        %v1273 = vsub.f32 %v948, %v1272
        %v1274 = vand.u32 %v1273, 4294901760
        %v1275 = vsub.f32 %v1273, %v1274
        %v1276 = vand.u32 %v1275, 4294901760
        %1277 = vmatpush1.xpose.msra.mxu0 %v1276
        %1278 = vmatprep.subr.mxu0 0.0
        %v1279 = vand.u32 %v951, 4294901760
        %v1280 = vsub.f32 %v951, %v1279
        %v1281 = vand.u32 %v1280, 4294901760
        %v1282 = vsub.f32 %v1280, %v1281
        %v1283 = vand.u32 %v1282, 4294901760
        %1284 = vmatpush1.xpose.msra.mxu0 %v1283
        %1285 = vmatprep.subr.mxu0 0.0
        %v1286 = vand.u32 %v954, 4294901760
        %v1287 = vsub.f32 %v954, %v1286
        %v1288 = vand.u32 %v1287, 4294901760
        %v1289 = vsub.f32 %v1287, %v1288
        %v1290 = vand.u32 %v1289, 4294901760
        %1291 = vmatpush1.xpose.msra.mxu0 %v1290
        %1292 = vmatprep.subr.mxu0 0.0
        %v1293 = vand.u32 %v957, 4294901760
        %v1294 = vsub.f32 %v957, %v1293
        %v1295 = vand.u32 %v1294, 4294901760
        %v1296 = vsub.f32 %v1294, %v1295
        %v1297 = vand.u32 %v1296, 4294901760
        %1298 = vmatpush1.xpose.msra.mxu0 %v1297
        %1299 = vmatprep.subr.mxu0 0.0
        %v1300 = vand.u32 %v960, 4294901760
        %v1301 = vsub.f32 %v960, %v1300
        %v1302 = vand.u32 %v1301, 4294901760
        %v1303 = vsub.f32 %v1301, %v1302
        %v1304 = vand.u32 %v1303, 4294901760
        %1305 = vmatpush1.xpose.msra.mxu0 %v1304
        %1306 = vmatprep.subr.mxu0 0.0
        %v1307 = vand.u32 %v963, 4294901760
        %v1308 = vsub.f32 %v963, %v1307
        %v1309 = vand.u32 %v1308, 4294901760
        %v1310 = vsub.f32 %v1308, %v1309
        %v1311 = vand.u32 %v1310, 4294901760
        %1312 = vmatpush1.xpose.msra.mxu0 %v1311
        %1313 = vmatprep.subr.mxu0 0.0
        %v1314 = vand.u32 %v966, 4294901760
        %v1315 = vsub.f32 %v966, %v1314
        %v1316 = vand.u32 %v1315, 4294901760
        %v1317 = vsub.f32 %v1315, %v1316
        %v1318 = vand.u32 %v1317, 4294901760
        %1319 = vmatpush1.xpose.msra.mxu0 %v1318
        %1320 = vmatprep.subr.mxu0 0.0
        %v1321 = vand.u32 %v969, 4294901760
        %v1322 = vsub.f32 %v969, %v1321
        %v1323 = vand.u32 %v1322, 4294901760
        %v1324 = vsub.f32 %v1322, %v1323
        %v1325 = vand.u32 %v1324, 4294901760
        %1326 = vmatpush1.xpose.msra.mxu0 %v1325
        %1327 = vmatprep.subr.mxu0 0.0
        %v1328 = vand.u32 %v972, 4294901760
        %v1329 = vsub.f32 %v972, %v1328
        %v1330 = vand.u32 %v1329, 4294901760
        %v1331 = vsub.f32 %v1329, %v1330
        %v1332 = vand.u32 %v1331, 4294901760
        %1333 = vmatpush1.xpose.msra.mxu0 %v1332
        %1334 = vmatprep.subr.mxu0 0.0
        %v1335 = vand.u32 %v975, 4294901760
        %v1336 = vsub.f32 %v975, %v1335
        %v1337 = vand.u32 %v1336, 4294901760
        %v1338 = vsub.f32 %v1336, %v1337
        %v1339 = vand.u32 %v1338, 4294901760
        %1340 = vmatpush1.xpose.msra.mxu0 %v1339
        %1341 = vmatprep.subr.mxu0 0.0
        %v1342 = vand.u32 %v978, 4294901760
        %v1343 = vsub.f32 %v978, %v1342
        %v1344 = vand.u32 %v1343, 4294901760
        %v1345 = vsub.f32 %v1343, %v1344
        %v1346 = vand.u32 %v1345, 4294901760
        %1347 = vmatpush1.xpose.msra.mxu0 %v1346
        %1348 = vmatprep.subr.mxu0 0.0
        %v1349 = vand.u32 %v981, 4294901760
        %v1350 = vsub.f32 %v981, %v1349
        %v1351 = vand.u32 %v1350, 4294901760
        %v1352 = vsub.f32 %v1350, %v1351
        %v1353 = vand.u32 %v1352, 4294901760
        %1354 = vmatpush1.xpose.msra.mxu0 %v1353
        %1355 = vmatprep.subr.mxu0 0.0
        %v1356 = vand.u32 %v984, 4294901760
        %v1357 = vsub.f32 %v984, %v1356
        %v1358 = vand.u32 %v1357, 4294901760
        %v1359 = vsub.f32 %v1357, %v1358
        %v1360 = vand.u32 %v1359, 4294901760
        %1361 = vmatpush1.xpose.msra.mxu0 %v1360
        %1362 = vmatprep.subr.mxu0 0.0
        %v1363 = vand.u32 %v987, 4294901760
        %v1364 = vsub.f32 %v987, %v1363
        %v1365 = vand.u32 %v1364, 4294901760
        %v1366 = vsub.f32 %v1364, %v1365
        %v1367 = vand.u32 %v1366, 4294901760
        %1368 = vmatpush1.xpose.msra.mxu0 %v1367
        %1369 = vmatprep.subr.mxu0 0.0
        %v1370 = vand.u32 %v990, 4294901760
        %v1371 = vsub.f32 %v990, %v1370
        %v1372 = vand.u32 %v1371, 4294901760
        %v1373 = vsub.f32 %v1371, %v1372
        %v1374 = vand.u32 %v1373, 4294901760
        %1375 = vmatpush1.xpose.msra.mxu0 %v1374
        %1376 = vmatprep.subr.mxu0 0.0
        %v1377 = vand.u32 %v993, 4294901760
        %v1378 = vsub.f32 %v993, %v1377
        %v1379 = vand.u32 %v1378, 4294901760
        %v1380 = vsub.f32 %v1378, %v1379
        %v1381 = vand.u32 %v1380, 4294901760
        %1382 = vmatpush1.xpose.msra.mxu0 %v1381
        %1383 = vmatprep.subr.mxu0 0.0
        %v1384 = vand.u32 %v996, 4294901760
        %v1385 = vsub.f32 %v996, %v1384
        %v1386 = vand.u32 %v1385, 4294901760
        %v1387 = vsub.f32 %v1385, %v1386
        %v1388 = vand.u32 %v1387, 4294901760
        %1389 = vmatpush1.xpose.msra.mxu0 %v1388
        %1390 = vmatprep.subr.mxu0 0.0
        %v1391 = vand.u32 %v999, 4294901760
        %v1392 = vsub.f32 %v999, %v1391
        %v1393 = vand.u32 %v1392, 4294901760
        %v1394 = vsub.f32 %v1392, %v1393
        %v1395 = vand.u32 %v1394, 4294901760
        %1396 = vmatpush1.xpose.msra.mxu0 %v1395
        %1397 = vmatprep.subr.mxu0 0.0
        %v1398 = vand.u32 %v1002, 4294901760
        %v1399 = vsub.f32 %v1002, %v1398
        %v1400 = vand.u32 %v1399, 4294901760
        %v1401 = vsub.f32 %v1399, %v1400
        %v1402 = vand.u32 %v1401, 4294901760
        %1403 = vmatpush1.xpose.msra.mxu0 %v1402
        %1404 = vmatprep.subr.mxu0 0.0
        %v1405 = vand.u32 %v1005, 4294901760
        %v1406 = vsub.f32 %v1005, %v1405
        %v1407 = vand.u32 %v1406, 4294901760
        %v1408 = vsub.f32 %v1406, %v1407
        %v1409 = vand.u32 %v1408, 4294901760
        %1410 = vmatpush1.xpose.msra.mxu0 %v1409
        %1411 = vmatprep.subr.mxu0 0.0
        %v1412 = vand.u32 %v1008, 4294901760
        %v1413 = vsub.f32 %v1008, %v1412
        %v1414 = vand.u32 %v1413, 4294901760
        %v1415 = vsub.f32 %v1413, %v1414
        %v1416 = vand.u32 %v1415, 4294901760
        %1417 = vmatpush1.xpose.msra.mxu0 %v1416
        %1418 = vmatprep.subr.mxu0 0.0
        %v1419 = vand.u32 %v1011, 4294901760
        %v1420 = vsub.f32 %v1011, %v1419
        %v1421 = vand.u32 %v1420, 4294901760
        %v1422 = vsub.f32 %v1420, %v1421
        %v1423 = vand.u32 %v1422, 4294901760
        %1424 = vmatpush1.xpose.msra.mxu0 %v1423
        %1425 = vmatprep.subr.mxu0 0.0
        %v1426 = vand.u32 %v1014, 4294901760
        %v1427 = vsub.f32 %v1014, %v1426
        %v1428 = vand.u32 %v1427, 4294901760
        %v1429 = vsub.f32 %v1427, %v1428
        %v1430 = vand.u32 %v1429, 4294901760
        %1431 = vmatpush1.xpose.msra.mxu0 %v1430
        %1432 = vmatprep.subr.mxu0 0.0
        %v1433 = vand.u32 %v1017, 4294901760
        %v1434 = vsub.f32 %v1017, %v1433
        %v1435 = vand.u32 %v1434, 4294901760
        %v1436 = vsub.f32 %v1434, %v1435
        %v1437 = vand.u32 %v1436, 4294901760
        %1438 = vmatpush1.xpose.msra.mxu0 %v1437
        %1439 = vmatprep.subr.mxu0 0.0
        %v1440 = vand.u32 %v1020, 4294901760
        %v1441 = vsub.f32 %v1020, %v1440
        %v1442 = vand.u32 %v1441, 4294901760
        %v1443 = vsub.f32 %v1441, %v1442
        %v1444 = vand.u32 %v1443, 4294901760
        %1445 = vmatpush1.xpose.msra.mxu0 %v1444
        %1446 = vmatprep.subr.mxu0 0.0
        %v1447 = vand.u32 %v1023, 4294901760
        %v1448 = vsub.f32 %v1023, %v1447
        %v1449 = vand.u32 %v1448, 4294901760
        %v1450 = vsub.f32 %v1448, %v1449
        %v1451 = vand.u32 %v1450, 4294901760
        %1452 = vmatpush1.xpose.msra.mxu0 %v1451
        %1453 = vmatprep.mubr.f32.mxu0 0.0
        %v1454 = vand.u32 %v927, 4294901760
        %1455 = vmatmul.mubr.f32.gmra.mrb[0].mxu0 %v1454
        %v1456 = vpop.f32.mrb[0].mxu0
        %v1457 = vadd.f32 %v1225, %v1456
        %v1458 = vpop.f32.mrb[0].mxu0
        %v1459 = vadd.f32 %v1227, %v1458
        %1460 = vdwg.mxu0
        %1461 = vmatprep.subr.mxu0 0.0
        %v1462 = vand.u32 %v930, 4294901760
        %v1463 = vsub.f32 %v930, %v1462
        %1464 = vmatpush1.xpose.msra.mxu0 %v1463
        %1465 = vmatprep.subr.mxu0 0.0
        %v1466 = vand.u32 %v933, 4294901760
        %v1467 = vsub.f32 %v933, %v1466
        %1468 = vmatpush1.xpose.msra.mxu0 %v1467
        %1469 = vmatprep.subr.mxu0 0.0
        %v1470 = vand.u32 %v936, 4294901760
        %v1471 = vsub.f32 %v936, %v1470
        %1472 = vmatpush1.xpose.msra.mxu0 %v1471
        %1473 = vmatprep.subr.mxu0 0.0
        %v1474 = vand.u32 %v939, 4294901760
        %v1475 = vsub.f32 %v939, %v1474
        %1476 = vmatpush1.xpose.msra.mxu0 %v1475
        %1477 = vmatprep.subr.mxu0 0.0
        %v1478 = vand.u32 %v942, 4294901760
        %v1479 = vsub.f32 %v942, %v1478
        %1480 = vmatpush1.xpose.msra.mxu0 %v1479
        %1481 = vmatprep.subr.mxu0 0.0
        %v1482 = vand.u32 %v945, 4294901760
        %v1483 = vsub.f32 %v945, %v1482
        %1484 = vmatpush1.xpose.msra.mxu0 %v1483
        %1485 = vmatprep.subr.mxu0 0.0
        %v1486 = vand.u32 %v948, 4294901760
        %v1487 = vsub.f32 %v948, %v1486
        %1488 = vmatpush1.xpose.msra.mxu0 %v1487
        %1489 = vmatprep.subr.mxu0 0.0
        %v1490 = vand.u32 %v951, 4294901760
        %v1491 = vsub.f32 %v951, %v1490
        %1492 = vmatpush1.xpose.msra.mxu0 %v1491
        %1493 = vmatprep.subr.mxu0 0.0
        %v1494 = vand.u32 %v954, 4294901760
        %v1495 = vsub.f32 %v954, %v1494
        %1496 = vmatpush1.xpose.msra.mxu0 %v1495
        %1497 = vmatprep.subr.mxu0 0.0
        %v1498 = vand.u32 %v957, 4294901760
        %v1499 = vsub.f32 %v957, %v1498
        %1500 = vmatpush1.xpose.msra.mxu0 %v1499
        %1501 = vmatprep.subr.mxu0 0.0
        %v1502 = vand.u32 %v960, 4294901760
        %v1503 = vsub.f32 %v960, %v1502
        %1504 = vmatpush1.xpose.msra.mxu0 %v1503
        %1505 = vmatprep.subr.mxu0 0.0
        %v1506 = vand.u32 %v963, 4294901760
        %v1507 = vsub.f32 %v963, %v1506
        %1508 = vmatpush1.xpose.msra.mxu0 %v1507
        %1509 = vmatprep.subr.mxu0 0.0
        %v1510 = vand.u32 %v966, 4294901760
        %v1511 = vsub.f32 %v966, %v1510
        %1512 = vmatpush1.xpose.msra.mxu0 %v1511
        %1513 = vmatprep.subr.mxu0 0.0
        %v1514 = vand.u32 %v969, 4294901760
        %v1515 = vsub.f32 %v969, %v1514
        %1516 = vmatpush1.xpose.msra.mxu0 %v1515
        %1517 = vmatprep.subr.mxu0 0.0
        %v1518 = vand.u32 %v972, 4294901760
        %v1519 = vsub.f32 %v972, %v1518
        %1520 = vmatpush1.xpose.msra.mxu0 %v1519
        %1521 = vmatprep.subr.mxu0 0.0
        %v1522 = vand.u32 %v975, 4294901760
        %v1523 = vsub.f32 %v975, %v1522
        %1524 = vmatpush1.xpose.msra.mxu0 %v1523
        %1525 = vmatprep.subr.mxu0 0.0
        %v1526 = vand.u32 %v978, 4294901760
        %v1527 = vsub.f32 %v978, %v1526
        %1528 = vmatpush1.xpose.msra.mxu0 %v1527
        %1529 = vmatprep.subr.mxu0 0.0
        %v1530 = vand.u32 %v981, 4294901760
        %v1531 = vsub.f32 %v981, %v1530
        %1532 = vmatpush1.xpose.msra.mxu0 %v1531
        %1533 = vmatprep.subr.mxu0 0.0
        %v1534 = vand.u32 %v984, 4294901760
        %v1535 = vsub.f32 %v984, %v1534
        %1536 = vmatpush1.xpose.msra.mxu0 %v1535
        %1537 = vmatprep.subr.mxu0 0.0
        %v1538 = vand.u32 %v987, 4294901760
        %v1539 = vsub.f32 %v987, %v1538
        %1540 = vmatpush1.xpose.msra.mxu0 %v1539
        %1541 = vmatprep.subr.mxu0 0.0
        %v1542 = vand.u32 %v990, 4294901760
        %v1543 = vsub.f32 %v990, %v1542
        %1544 = vmatpush1.xpose.msra.mxu0 %v1543
        %1545 = vmatprep.subr.mxu0 0.0
        %v1546 = vand.u32 %v993, 4294901760
        %v1547 = vsub.f32 %v993, %v1546
        %1548 = vmatpush1.xpose.msra.mxu0 %v1547
        %1549 = vmatprep.subr.mxu0 0.0
        %v1550 = vand.u32 %v996, 4294901760
        %v1551 = vsub.f32 %v996, %v1550
        %1552 = vmatpush1.xpose.msra.mxu0 %v1551
        %1553 = vmatprep.subr.mxu0 0.0
        %v1554 = vand.u32 %v999, 4294901760
        %v1555 = vsub.f32 %v999, %v1554
        %1556 = vmatpush1.xpose.msra.mxu0 %v1555
        %1557 = vmatprep.subr.mxu0 0.0
        %v1558 = vand.u32 %v1002, 4294901760
        %v1559 = vsub.f32 %v1002, %v1558
        %1560 = vmatpush1.xpose.msra.mxu0 %v1559
        %1561 = vmatprep.subr.mxu0 0.0
        %v1562 = vand.u32 %v1005, 4294901760
        %v1563 = vsub.f32 %v1005, %v1562
        %1564 = vmatpush1.xpose.msra.mxu0 %v1563
        %1565 = vmatprep.subr.mxu0 0.0
        %v1566 = vand.u32 %v1008, 4294901760
        %v1567 = vsub.f32 %v1008, %v1566
        %1568 = vmatpush1.xpose.msra.mxu0 %v1567
        %1569 = vmatprep.subr.mxu0 0.0
        %v1570 = vand.u32 %v1011, 4294901760
        %v1571 = vsub.f32 %v1011, %v1570
        %1572 = vmatpush1.xpose.msra.mxu0 %v1571
        %1573 = vmatprep.subr.mxu0 0.0
        %v1574 = vand.u32 %v1014, 4294901760
        %v1575 = vsub.f32 %v1014, %v1574
        %1576 = vmatpush1.xpose.msra.mxu0 %v1575
        %1577 = vmatprep.subr.mxu0 0.0
        %v1578 = vand.u32 %v1017, 4294901760
        %v1579 = vsub.f32 %v1017, %v1578
        %1580 = vmatpush1.xpose.msra.mxu0 %v1579
        %1581 = vmatprep.subr.mxu0 0.0
        %v1582 = vand.u32 %v1020, 4294901760
        %v1583 = vsub.f32 %v1020, %v1582
        %1584 = vmatpush1.xpose.msra.mxu0 %v1583
        %1585 = vmatprep.subr.mxu0 0.0
        %v1586 = vand.u32 %v1023, 4294901760
        %v1587 = vsub.f32 %v1023, %v1586
        %1588 = vmatpush1.xpose.msra.mxu0 %v1587
        %1589 = vmatprep.mubr.f32.mxu0 0.0
        %v1590 = vand.u32 %v927, 4294901760
        %v1591 = vsub.f32 %v927, %v1590
        %1592 = vmatmul.mubr.f32.gmra.mrb[0].mxu0 %v1591
        %v1593 = vpop.f32.mrb[0].mxu0
        %v1594 = vadd.f32 %v1457, %v1593
        %v1595 = vpop.f32.mrb[0].mxu0
        %v1596 = vadd.f32 %v1459, %v1595
        %1597 = vdwg.mxu0
        %1598 = vmatprep.subr.mxu0 0.0
        %v1599 = vand.u32 %v930, 4294901760
        %1600 = vmatpush1.xpose.msra.mxu0 %v1599
        %1601 = vmatprep.subr.mxu0 0.0
        %v1602 = vand.u32 %v933, 4294901760
        %1603 = vmatpush1.xpose.msra.mxu0 %v1602
        %1604 = vmatprep.subr.mxu0 0.0
        %v1605 = vand.u32 %v936, 4294901760
        %1606 = vmatpush1.xpose.msra.mxu0 %v1605
        %1607 = vmatprep.subr.mxu0 0.0
        %v1608 = vand.u32 %v939, 4294901760
        %1609 = vmatpush1.xpose.msra.mxu0 %v1608
        %1610 = vmatprep.subr.mxu0 0.0
        %v1611 = vand.u32 %v942, 4294901760
        %1612 = vmatpush1.xpose.msra.mxu0 %v1611
        %1613 = vmatprep.subr.mxu0 0.0
        %v1614 = vand.u32 %v945, 4294901760
        %1615 = vmatpush1.xpose.msra.mxu0 %v1614
        %1616 = vmatprep.subr.mxu0 0.0
        %v1617 = vand.u32 %v948, 4294901760
        %1618 = vmatpush1.xpose.msra.mxu0 %v1617
        %1619 = vmatprep.subr.mxu0 0.0
        %v1620 = vand.u32 %v951, 4294901760
        %1621 = vmatpush1.xpose.msra.mxu0 %v1620
        %1622 = vmatprep.subr.mxu0 0.0
        %v1623 = vand.u32 %v954, 4294901760
        %1624 = vmatpush1.xpose.msra.mxu0 %v1623
        %1625 = vmatprep.subr.mxu0 0.0
        %v1626 = vand.u32 %v957, 4294901760
        %1627 = vmatpush1.xpose.msra.mxu0 %v1626
        %1628 = vmatprep.subr.mxu0 0.0
        %v1629 = vand.u32 %v960, 4294901760
        %1630 = vmatpush1.xpose.msra.mxu0 %v1629
        %1631 = vmatprep.subr.mxu0 0.0
        %v1632 = vand.u32 %v963, 4294901760
        %1633 = vmatpush1.xpose.msra.mxu0 %v1632
        %1634 = vmatprep.subr.mxu0 0.0
        %v1635 = vand.u32 %v966, 4294901760
        %1636 = vmatpush1.xpose.msra.mxu0 %v1635
        %1637 = vmatprep.subr.mxu0 0.0
        %v1638 = vand.u32 %v969, 4294901760
        %1639 = vmatpush1.xpose.msra.mxu0 %v1638
        %1640 = vmatprep.subr.mxu0 0.0
        %v1641 = vand.u32 %v972, 4294901760
        %1642 = vmatpush1.xpose.msra.mxu0 %v1641
        %1643 = vmatprep.subr.mxu0 0.0
        %v1644 = vand.u32 %v975, 4294901760
        %1645 = vmatpush1.xpose.msra.mxu0 %v1644
        %1646 = vmatprep.subr.mxu0 0.0
        %v1647 = vand.u32 %v978, 4294901760
        %1648 = vmatpush1.xpose.msra.mxu0 %v1647
        %1649 = vmatprep.subr.mxu0 0.0
        %v1650 = vand.u32 %v981, 4294901760
        %1651 = vmatpush1.xpose.msra.mxu0 %v1650
        %1652 = vmatprep.subr.mxu0 0.0
        %v1653 = vand.u32 %v984, 4294901760
        %1654 = vmatpush1.xpose.msra.mxu0 %v1653
        %1655 = vmatprep.subr.mxu0 0.0
        %v1656 = vand.u32 %v987, 4294901760
        %1657 = vmatpush1.xpose.msra.mxu0 %v1656
        %1658 = vmatprep.subr.mxu0 0.0
        %v1659 = vand.u32 %v990, 4294901760
        %1660 = vmatpush1.xpose.msra.mxu0 %v1659
        %1661 = vmatprep.subr.mxu0 0.0
        %v1662 = vand.u32 %v993, 4294901760
        %1663 = vmatpush1.xpose.msra.mxu0 %v1662
        %1664 = vmatprep.subr.mxu0 0.0
        %v1665 = vand.u32 %v996, 4294901760
        %1666 = vmatpush1.xpose.msra.mxu0 %v1665
        %1667 = vmatprep.subr.mxu0 0.0
        %v1668 = vand.u32 %v999, 4294901760
        %1669 = vmatpush1.xpose.msra.mxu0 %v1668
        %1670 = vmatprep.subr.mxu0 0.0
        %v1671 = vand.u32 %v1002, 4294901760
        %1672 = vmatpush1.xpose.msra.mxu0 %v1671
        %1673 = vmatprep.subr.mxu0 0.0
        %v1674 = vand.u32 %v1005, 4294901760
        %1675 = vmatpush1.xpose.msra.mxu0 %v1674
        %1676 = vmatprep.subr.mxu0 0.0
        %v1677 = vand.u32 %v1008, 4294901760
        %1678 = vmatpush1.xpose.msra.mxu0 %v1677
        %1679 = vmatprep.subr.mxu0 0.0
        %v1680 = vand.u32 %v1011, 4294901760
        %1681 = vmatpush1.xpose.msra.mxu0 %v1680
        %1682 = vmatprep.subr.mxu0 0.0
        %v1683 = vand.u32 %v1014, 4294901760
        %1684 = vmatpush1.xpose.msra.mxu0 %v1683
        %1685 = vmatprep.subr.mxu0 0.0
        %v1686 = vand.u32 %v1017, 4294901760
        %1687 = vmatpush1.xpose.msra.mxu0 %v1686
        %1688 = vmatprep.subr.mxu0 0.0
        %v1689 = vand.u32 %v1020, 4294901760
        %1690 = vmatpush1.xpose.msra.mxu0 %v1689
        %1691 = vmatprep.subr.mxu0 0.0
        %v1692 = vand.u32 %v1023, 4294901760
        %1693 = vmatpush1.xpose.msra.mxu0 %v1692
        %1694 = vmatprep.mubr.f32.mxu0 0.0
        %v1695 = vand.u32 %v927, 4294901760
        %v1696 = vsub.f32 %v927, %v1695
        %v1697 = vand.u32 %v1696, 4294901760
        %1698 = vmatmul.mubr.f32.gmra.mrb[0].mxu0 %v1697
        %v1699 = vpop.f32.mrb[0].mxu0
        %v1700 = vadd.f32 %v1594, %v1699
        %v1701 = vpop.f32.mrb[0].mxu0
        %v1702 = vadd.f32 %v1596, %v1701
        %1703 = vdwg.mxu0
        %1704 = vmatprep.subr.mxu0 0.0
        %v1705 = vand.u32 %v930, 4294901760
        %v1706 = vsub.f32 %v930, %v1705
        %v1707 = vand.u32 %v1706, 4294901760
        %1708 = vmatpush1.xpose.msra.mxu0 %v1707
        %1709 = vmatprep.subr.mxu0 0.0
        %v1710 = vand.u32 %v933, 4294901760
        %v1711 = vsub.f32 %v933, %v1710
        %v1712 = vand.u32 %v1711, 4294901760
        %1713 = vmatpush1.xpose.msra.mxu0 %v1712
        %1714 = vmatprep.subr.mxu0 0.0
        %v1715 = vand.u32 %v936, 4294901760
        %v1716 = vsub.f32 %v936, %v1715
        %v1717 = vand.u32 %v1716, 4294901760
        %1718 = vmatpush1.xpose.msra.mxu0 %v1717
        %1719 = vmatprep.subr.mxu0 0.0
        %v1720 = vand.u32 %v939, 4294901760
        %v1721 = vsub.f32 %v939, %v1720
        %v1722 = vand.u32 %v1721, 4294901760
        %1723 = vmatpush1.xpose.msra.mxu0 %v1722
        %1724 = vmatprep.subr.mxu0 0.0
        %v1725 = vand.u32 %v942, 4294901760
        %v1726 = vsub.f32 %v942, %v1725
        %v1727 = vand.u32 %v1726, 4294901760
        %1728 = vmatpush1.xpose.msra.mxu0 %v1727
        %1729 = vmatprep.subr.mxu0 0.0
        %v1730 = vand.u32 %v945, 4294901760
        %v1731 = vsub.f32 %v945, %v1730
        %v1732 = vand.u32 %v1731, 4294901760
        %1733 = vmatpush1.xpose.msra.mxu0 %v1732
        %1734 = vmatprep.subr.mxu0 0.0
        %v1735 = vand.u32 %v948, 4294901760
        %v1736 = vsub.f32 %v948, %v1735
        %v1737 = vand.u32 %v1736, 4294901760
        %1738 = vmatpush1.xpose.msra.mxu0 %v1737
        %1739 = vmatprep.subr.mxu0 0.0
        %v1740 = vand.u32 %v951, 4294901760
        %v1741 = vsub.f32 %v951, %v1740
        %v1742 = vand.u32 %v1741, 4294901760
        %1743 = vmatpush1.xpose.msra.mxu0 %v1742
        %1744 = vmatprep.subr.mxu0 0.0
        %v1745 = vand.u32 %v954, 4294901760
        %v1746 = vsub.f32 %v954, %v1745
        %v1747 = vand.u32 %v1746, 4294901760
        %1748 = vmatpush1.xpose.msra.mxu0 %v1747
        %1749 = vmatprep.subr.mxu0 0.0
        %v1750 = vand.u32 %v957, 4294901760
        %v1751 = vsub.f32 %v957, %v1750
        %v1752 = vand.u32 %v1751, 4294901760
        %1753 = vmatpush1.xpose.msra.mxu0 %v1752
        %1754 = vmatprep.subr.mxu0 0.0
        %v1755 = vand.u32 %v960, 4294901760
        %v1756 = vsub.f32 %v960, %v1755
        %v1757 = vand.u32 %v1756, 4294901760
        %1758 = vmatpush1.xpose.msra.mxu0 %v1757
        %1759 = vmatprep.subr.mxu0 0.0
        %v1760 = vand.u32 %v963, 4294901760
        %v1761 = vsub.f32 %v963, %v1760
        %v1762 = vand.u32 %v1761, 4294901760
        %1763 = vmatpush1.xpose.msra.mxu0 %v1762
        %1764 = vmatprep.subr.mxu0 0.0
        %v1765 = vand.u32 %v966, 4294901760
        %v1766 = vsub.f32 %v966, %v1765
        %v1767 = vand.u32 %v1766, 4294901760
        %1768 = vmatpush1.xpose.msra.mxu0 %v1767
        %1769 = vmatprep.subr.mxu0 0.0
        %v1770 = vand.u32 %v969, 4294901760
        %v1771 = vsub.f32 %v969, %v1770
        %v1772 = vand.u32 %v1771, 4294901760
        %1773 = vmatpush1.xpose.msra.mxu0 %v1772
        %1774 = vmatprep.subr.mxu0 0.0
        %v1775 = vand.u32 %v972, 4294901760
        %v1776 = vsub.f32 %v972, %v1775
        %v1777 = vand.u32 %v1776, 4294901760
        %1778 = vmatpush1.xpose.msra.mxu0 %v1777
        %1779 = vmatprep.subr.mxu0 0.0
        %v1780 = vand.u32 %v975, 4294901760
        %v1781 = vsub.f32 %v975, %v1780
        %v1782 = vand.u32 %v1781, 4294901760
        %1783 = vmatpush1.xpose.msra.mxu0 %v1782
        %1784 = vmatprep.subr.mxu0 0.0
        %v1785 = vand.u32 %v978, 4294901760
        %v1786 = vsub.f32 %v978, %v1785
        %v1787 = vand.u32 %v1786, 4294901760
        %1788 = vmatpush1.xpose.msra.mxu0 %v1787
        %1789 = vmatprep.subr.mxu0 0.0
        %v1790 = vand.u32 %v981, 4294901760
        %v1791 = vsub.f32 %v981, %v1790
        %v1792 = vand.u32 %v1791, 4294901760
        %1793 = vmatpush1.xpose.msra.mxu0 %v1792
        %1794 = vmatprep.subr.mxu0 0.0
        %v1795 = vand.u32 %v984, 4294901760
        %v1796 = vsub.f32 %v984, %v1795
        %v1797 = vand.u32 %v1796, 4294901760
        %1798 = vmatpush1.xpose.msra.mxu0 %v1797
        %1799 = vmatprep.subr.mxu0 0.0
        %v1800 = vand.u32 %v987, 4294901760
        %v1801 = vsub.f32 %v987, %v1800
        %v1802 = vand.u32 %v1801, 4294901760
        %1803 = vmatpush1.xpose.msra.mxu0 %v1802
        %1804 = vmatprep.subr.mxu0 0.0
        %v1805 = vand.u32 %v990, 4294901760
        %v1806 = vsub.f32 %v990, %v1805
        %v1807 = vand.u32 %v1806, 4294901760
        %1808 = vmatpush1.xpose.msra.mxu0 %v1807
        %1809 = vmatprep.subr.mxu0 0.0
        %v1810 = vand.u32 %v993, 4294901760
        %v1811 = vsub.f32 %v993, %v1810
        %v1812 = vand.u32 %v1811, 4294901760
        %1813 = vmatpush1.xpose.msra.mxu0 %v1812
        %1814 = vmatprep.subr.mxu0 0.0
        %v1815 = vand.u32 %v996, 4294901760
        %v1816 = vsub.f32 %v996, %v1815
        %v1817 = vand.u32 %v1816, 4294901760
        %1818 = vmatpush1.xpose.msra.mxu0 %v1817
        %1819 = vmatprep.subr.mxu0 0.0
        %v1820 = vand.u32 %v999, 4294901760
        %v1821 = vsub.f32 %v999, %v1820
        %v1822 = vand.u32 %v1821, 4294901760
        %1823 = vmatpush1.xpose.msra.mxu0 %v1822
        %1824 = vmatprep.subr.mxu0 0.0
        %v1825 = vand.u32 %v1002, 4294901760
        %v1826 = vsub.f32 %v1002, %v1825
        %v1827 = vand.u32 %v1826, 4294901760
        %1828 = vmatpush1.xpose.msra.mxu0 %v1827
        %1829 = vmatprep.subr.mxu0 0.0
        %v1830 = vand.u32 %v1005, 4294901760
        %v1831 = vsub.f32 %v1005, %v1830
        %v1832 = vand.u32 %v1831, 4294901760
        %1833 = vmatpush1.xpose.msra.mxu0 %v1832
        %1834 = vmatprep.subr.mxu0 0.0
        %v1835 = vand.u32 %v1008, 4294901760
        %v1836 = vsub.f32 %v1008, %v1835
        %v1837 = vand.u32 %v1836, 4294901760
        %1838 = vmatpush1.xpose.msra.mxu0 %v1837
        %1839 = vmatprep.subr.mxu0 0.0
        %v1840 = vand.u32 %v1011, 4294901760
        %v1841 = vsub.f32 %v1011, %v1840
        %v1842 = vand.u32 %v1841, 4294901760
        %1843 = vmatpush1.xpose.msra.mxu0 %v1842
        %1844 = vmatprep.subr.mxu0 0.0
        %v1845 = vand.u32 %v1014, 4294901760
        %v1846 = vsub.f32 %v1014, %v1845
        %v1847 = vand.u32 %v1846, 4294901760
        %1848 = vmatpush1.xpose.msra.mxu0 %v1847
        %1849 = vmatprep.subr.mxu0 0.0
        %v1850 = vand.u32 %v1017, 4294901760
        %v1851 = vsub.f32 %v1017, %v1850
        %v1852 = vand.u32 %v1851, 4294901760
        %1853 = vmatpush1.xpose.msra.mxu0 %v1852
        %1854 = vmatprep.subr.mxu0 0.0
        %v1855 = vand.u32 %v1020, 4294901760
        %v1856 = vsub.f32 %v1020, %v1855
        %v1857 = vand.u32 %v1856, 4294901760
        %1858 = vmatpush1.xpose.msra.mxu0 %v1857
        %1859 = vmatprep.subr.mxu0 0.0
        %v1860 = vand.u32 %v1023, 4294901760
        %v1861 = vsub.f32 %v1023, %v1860
        %v1862 = vand.u32 %v1861, 4294901760
        %1863 = vmatpush1.xpose.msra.mxu0 %v1862
        %1864 = vmatprep.mubr.f32.mxu0 0.0
        %v1865 = vand.u32 %v927, 4294901760
        %1866 = vmatmul.mubr.f32.gmra.mrb[0].mxu0 %v1865
        %v1867 = vpop.f32.mrb[0].mxu0
        %v1868 = vadd.f32 %v1700, %v1867
        %v1869 = vpop.f32.mrb[0].mxu0
        %v1870 = vadd.f32 %v1702, %v1869
        %1871 = vdwg.mxu0
        %1872 = vmatprep.subr.mxu0 0.0
        %v1873 = vand.u32 %v930, 4294901760
        %1874 = vmatpush1.xpose.msra.mxu0 %v1873
        %1875 = vmatprep.subr.mxu0 0.0
        %v1876 = vand.u32 %v933, 4294901760
        %1877 = vmatpush1.xpose.msra.mxu0 %v1876
        %1878 = vmatprep.subr.mxu0 0.0
        %v1879 = vand.u32 %v936, 4294901760
        %1880 = vmatpush1.xpose.msra.mxu0 %v1879
        %1881 = vmatprep.subr.mxu0 0.0
        %v1882 = vand.u32 %v939, 4294901760
        %1883 = vmatpush1.xpose.msra.mxu0 %v1882
        %1884 = vmatprep.subr.mxu0 0.0
        %v1885 = vand.u32 %v942, 4294901760
        %1886 = vmatpush1.xpose.msra.mxu0 %v1885
        %1887 = vmatprep.subr.mxu0 0.0
        %v1888 = vand.u32 %v945, 4294901760
        %1889 = vmatpush1.xpose.msra.mxu0 %v1888
        %1890 = vmatprep.subr.mxu0 0.0
        %v1891 = vand.u32 %v948, 4294901760
        %1892 = vmatpush1.xpose.msra.mxu0 %v1891
        %1893 = vmatprep.subr.mxu0 0.0
        %v1894 = vand.u32 %v951, 4294901760
        %1895 = vmatpush1.xpose.msra.mxu0 %v1894
        %1896 = vmatprep.subr.mxu0 0.0
        %v1897 = vand.u32 %v954, 4294901760
        %1898 = vmatpush1.xpose.msra.mxu0 %v1897
        %1899 = vmatprep.subr.mxu0 0.0
        %v1900 = vand.u32 %v957, 4294901760
        %1901 = vmatpush1.xpose.msra.mxu0 %v1900
        %1902 = vmatprep.subr.mxu0 0.0
        %v1903 = vand.u32 %v960, 4294901760
        %1904 = vmatpush1.xpose.msra.mxu0 %v1903
        %1905 = vmatprep.subr.mxu0 0.0
        %v1906 = vand.u32 %v963, 4294901760
        %1907 = vmatpush1.xpose.msra.mxu0 %v1906
        %1908 = vmatprep.subr.mxu0 0.0
        %v1909 = vand.u32 %v966, 4294901760
        %1910 = vmatpush1.xpose.msra.mxu0 %v1909
        %1911 = vmatprep.subr.mxu0 0.0
        %v1912 = vand.u32 %v969, 4294901760
        %1913 = vmatpush1.xpose.msra.mxu0 %v1912
        %1914 = vmatprep.subr.mxu0 0.0
        %v1915 = vand.u32 %v972, 4294901760
        %1916 = vmatpush1.xpose.msra.mxu0 %v1915
        %1917 = vmatprep.subr.mxu0 0.0
        %v1918 = vand.u32 %v975, 4294901760
        %1919 = vmatpush1.xpose.msra.mxu0 %v1918
        %1920 = vmatprep.subr.mxu0 0.0
        %v1921 = vand.u32 %v978, 4294901760
        %1922 = vmatpush1.xpose.msra.mxu0 %v1921
        %1923 = vmatprep.subr.mxu0 0.0
        %v1924 = vand.u32 %v981, 4294901760
        %1925 = vmatpush1.xpose.msra.mxu0 %v1924
        %1926 = vmatprep.subr.mxu0 0.0
        %v1927 = vand.u32 %v984, 4294901760
        %1928 = vmatpush1.xpose.msra.mxu0 %v1927
        %1929 = vmatprep.subr.mxu0 0.0
        %v1930 = vand.u32 %v987, 4294901760
        %1931 = vmatpush1.xpose.msra.mxu0 %v1930
        %1932 = vmatprep.subr.mxu0 0.0
        %v1933 = vand.u32 %v990, 4294901760
        %1934 = vmatpush1.xpose.msra.mxu0 %v1933
        %1935 = vmatprep.subr.mxu0 0.0
        %v1936 = vand.u32 %v993, 4294901760
        %1937 = vmatpush1.xpose.msra.mxu0 %v1936
        %1938 = vmatprep.subr.mxu0 0.0
        %v1939 = vand.u32 %v996, 4294901760
        %1940 = vmatpush1.xpose.msra.mxu0 %v1939
        %1941 = vmatprep.subr.mxu0 0.0
        %v1942 = vand.u32 %v999, 4294901760
        %1943 = vmatpush1.xpose.msra.mxu0 %v1942
        %1944 = vmatprep.subr.mxu0 0.0
        %v1945 = vand.u32 %v1002, 4294901760
        %1946 = vmatpush1.xpose.msra.mxu0 %v1945
        %1947 = vmatprep.subr.mxu0 0.0
        %v1948 = vand.u32 %v1005, 4294901760
        %1949 = vmatpush1.xpose.msra.mxu0 %v1948
        %1950 = vmatprep.subr.mxu0 0.0
        %v1951 = vand.u32 %v1008, 4294901760
        %1952 = vmatpush1.xpose.msra.mxu0 %v1951
        %1953 = vmatprep.subr.mxu0 0.0
        %v1954 = vand.u32 %v1011, 4294901760
        %1955 = vmatpush1.xpose.msra.mxu0 %v1954
        %1956 = vmatprep.subr.mxu0 0.0
        %v1957 = vand.u32 %v1014, 4294901760
        %1958 = vmatpush1.xpose.msra.mxu0 %v1957
        %1959 = vmatprep.subr.mxu0 0.0
        %v1960 = vand.u32 %v1017, 4294901760
        %1961 = vmatpush1.xpose.msra.mxu0 %v1960
        %1962 = vmatprep.subr.mxu0 0.0
        %v1963 = vand.u32 %v1020, 4294901760
        %1964 = vmatpush1.xpose.msra.mxu0 %v1963
        %1965 = vmatprep.subr.mxu0 0.0
        %v1966 = vand.u32 %v1023, 4294901760
        %1967 = vmatpush1.xpose.msra.mxu0 %v1966
        %1968 = vmatprep.mubr.f32.mxu0 0.0
        %v1969 = vand.u32 %v927, 4294901760
        %1970 = vmatmul.mubr.f32.gmra.mrb[0].mxu0 %v1969
        %v1971 = vpop.f32.mrb[0].mxu0
        %v1972 = vadd.f32 %v1868, %v1971
        %v1973 = vpop.f32.mrb[0].mxu0
        %v1974 = vadd.f32 %v1870, %v1973
        %1975 = vdwg.mxu0
        %1976 = vmatprep.subr.mxu0 0.0
        %v1977 = vand.u32 %v1026, 4294901760
        %1978 = vmatpush1.xpose.msra.mxu0 %v1977
        %1979 = vmatprep.subr.mxu0 0.0
        %v1980 = vand.u32 %v1029, 4294901760
        %1981 = vmatpush1.xpose.msra.mxu0 %v1980
        %1982 = vmatprep.subr.mxu0 0.0
        %v1983 = vand.u32 %v1032, 4294901760
        %1984 = vmatpush1.xpose.msra.mxu0 %v1983
        %1985 = vmatprep.subr.mxu0 0.0
        %v1986 = vand.u32 %v1035, 4294901760
        %1987 = vmatpush1.xpose.msra.mxu0 %v1986
        %1988 = vmatprep.subr.mxu0 0.0
        %v1989 = vand.u32 %v1038, 4294901760
        %1990 = vmatpush1.xpose.msra.mxu0 %v1989
        %1991 = vmatprep.subr.mxu0 0.0
        %v1992 = vand.u32 %v1041, 4294901760
        %1993 = vmatpush1.xpose.msra.mxu0 %v1992
        %1994 = vmatprep.subr.mxu0 0.0
        %v1995 = vand.u32 %v1044, 4294901760
        %1996 = vmatpush1.xpose.msra.mxu0 %v1995
        %1997 = vmatprep.subr.mxu0 0.0
        %v1998 = vand.u32 %v1047, 4294901760
        %1999 = vmatpush1.xpose.msra.mxu0 %v1998
        %2000 = vmatprep.subr.mxu0 0.0
        %v2001 = vand.u32 %v1050, 4294901760
        %2002 = vmatpush1.xpose.msra.mxu0 %v2001
        %2003 = vmatprep.subr.mxu0 0.0
        %v2004 = vand.u32 %v1053, 4294901760
        %2005 = vmatpush1.xpose.msra.mxu0 %v2004
        %2006 = vmatprep.subr.mxu0 0.0
        %v2007 = vand.u32 %v1056, 4294901760
        %2008 = vmatpush1.xpose.msra.mxu0 %v2007
        %2009 = vmatprep.subr.mxu0 0.0
        %v2010 = vand.u32 %v1059, 4294901760
        %2011 = vmatpush1.xpose.msra.mxu0 %v2010
        %2012 = vmatprep.subr.mxu0 0.0
        %v2013 = vand.u32 %v1062, 4294901760
        %2014 = vmatpush1.xpose.msra.mxu0 %v2013
        %2015 = vmatprep.subr.mxu0 0.0
        %v2016 = vand.u32 %v1065, 4294901760
        %2017 = vmatpush1.xpose.msra.mxu0 %v2016
        %2018 = vmatprep.subr.mxu0 0.0
        %v2019 = vand.u32 %v1068, 4294901760
        %2020 = vmatpush1.xpose.msra.mxu0 %v2019
        %2021 = vmatprep.subr.mxu0 0.0
        %v2022 = vand.u32 %v1071, 4294901760
        %2023 = vmatpush1.xpose.msra.mxu0 %v2022
        %2024 = vmatprep.subr.mxu0 0.0
        %v2025 = vand.u32 %v1074, 4294901760
        %2026 = vmatpush1.xpose.msra.mxu0 %v2025
        %2027 = vmatprep.subr.mxu0 0.0
        %v2028 = vand.u32 %v1077, 4294901760
        %2029 = vmatpush1.xpose.msra.mxu0 %v2028
        %2030 = vmatprep.subr.mxu0 0.0
        %v2031 = vand.u32 %v1080, 4294901760
        %2032 = vmatpush1.xpose.msra.mxu0 %v2031
        %2033 = vmatprep.subr.mxu0 0.0
        %v2034 = vand.u32 %v1083, 4294901760
        %2035 = vmatpush1.xpose.msra.mxu0 %v2034
        %2036 = vmatprep.subr.mxu0 0.0
        %v2037 = vand.u32 %v1086, 4294901760
        %2038 = vmatpush1.xpose.msra.mxu0 %v2037
        %2039 = vmatprep.subr.mxu0 0.0
        %v2040 = vand.u32 %v1089, 4294901760
        %2041 = vmatpush1.xpose.msra.mxu0 %v2040
        %2042 = vmatprep.subr.mxu0 0.0
        %v2043 = vand.u32 %v1092, 4294901760
        %2044 = vmatpush1.xpose.msra.mxu0 %v2043
        %2045 = vmatprep.subr.mxu0 0.0
        %v2046 = vand.u32 %v1095, 4294901760
        %2047 = vmatpush1.xpose.msra.mxu0 %v2046
        %2048 = vmatprep.subr.mxu0 0.0
        %v2049 = vand.u32 %v1098, 4294901760
        %2050 = vmatpush1.xpose.msra.mxu0 %v2049
        %2051 = vmatprep.subr.mxu0 0.0
        %v2052 = vand.u32 %v1101, 4294901760
        %2053 = vmatpush1.xpose.msra.mxu0 %v2052
        %2054 = vmatprep.subr.mxu0 0.0
        %v2055 = vand.u32 %v1104, 4294901760
        %2056 = vmatpush1.xpose.msra.mxu0 %v2055
        %2057 = vmatprep.subr.mxu0 0.0
        %v2058 = vand.u32 %v1107, 4294901760
        %2059 = vmatpush1.xpose.msra.mxu0 %v2058
        %2060 = vmatprep.subr.mxu0 0.0
        %v2061 = vand.u32 %v1110, 4294901760
        %2062 = vmatpush1.xpose.msra.mxu0 %v2061
        %2063 = vmatprep.subr.mxu0 0.0
        %v2064 = vand.u32 %v1113, 4294901760
        %2065 = vmatpush1.xpose.msra.mxu0 %v2064
        %2066 = vmatprep.subr.mxu0 0.0
        %v2067 = vand.u32 %v1116, 4294901760
        %2068 = vmatpush1.xpose.msra.mxu0 %v2067
        %2069 = vmatprep.subr.mxu0 0.0
        %v2070 = vand.u32 %v1119, 4294901760
        %2071 = vmatpush1.xpose.msra.mxu0 %v2070
        %2072 = vmatprep.mubr.f32.mxu0 0.0
        %v2073 = vand.u32 %v927, 4294901760
        %v2074 = vsub.f32 %v927, %v2073
        %v2075 = vand.u32 %v2074, 4294901760
        %v2076 = vsub.f32 %v2074, %v2075
        %v2077 = vand.u32 %v2076, 4294901760
        %2078 = vmatmul.mubr.f32.gmra.mrb[0].mxu0 %v2077
        %v2079 = vpop.f32.mrb[0].mxu0
        %v2080 = vadd.f32 0.0, %v2079
        %v2081 = vpop.f32.mrb[0].mxu0
        %v2082 = vadd.f32 0.0, %v2081
        %2083 = vdwg.mxu0
        %2084 = vmatprep.subr.mxu0 0.0
        %v2085 = vand.u32 %v1026, 4294901760
        %v2086 = vsub.f32 %v1026, %v2085
        %v2087 = vand.u32 %v2086, 4294901760
        %v2088 = vsub.f32 %v2086, %v2087
        %v2089 = vand.u32 %v2088, 4294901760
        %2090 = vmatpush1.xpose.msra.mxu0 %v2089
        %2091 = vmatprep.subr.mxu0 0.0
        %v2092 = vand.u32 %v1029, 4294901760
        %v2093 = vsub.f32 %v1029, %v2092
        %v2094 = vand.u32 %v2093, 4294901760
        %v2095 = vsub.f32 %v2093, %v2094
        %v2096 = vand.u32 %v2095, 4294901760
        %2097 = vmatpush1.xpose.msra.mxu0 %v2096
        %2098 = vmatprep.subr.mxu0 0.0
        %v2099 = vand.u32 %v1032, 4294901760
        %v2100 = vsub.f32 %v1032, %v2099
        %v2101 = vand.u32 %v2100, 4294901760
        %v2102 = vsub.f32 %v2100, %v2101
        %v2103 = vand.u32 %v2102, 4294901760
        %2104 = vmatpush1.xpose.msra.mxu0 %v2103
        %2105 = vmatprep.subr.mxu0 0.0
        %v2106 = vand.u32 %v1035, 4294901760
        %v2107 = vsub.f32 %v1035, %v2106
        %v2108 = vand.u32 %v2107, 4294901760
        %v2109 = vsub.f32 %v2107, %v2108
        %v2110 = vand.u32 %v2109, 4294901760
        %2111 = vmatpush1.xpose.msra.mxu0 %v2110
        %2112 = vmatprep.subr.mxu0 0.0
        %v2113 = vand.u32 %v1038, 4294901760
        %v2114 = vsub.f32 %v1038, %v2113
        %v2115 = vand.u32 %v2114, 4294901760
        %v2116 = vsub.f32 %v2114, %v2115
        %v2117 = vand.u32 %v2116, 4294901760
        %2118 = vmatpush1.xpose.msra.mxu0 %v2117
        %2119 = vmatprep.subr.mxu0 0.0
        %v2120 = vand.u32 %v1041, 4294901760
        %v2121 = vsub.f32 %v1041, %v2120
        %v2122 = vand.u32 %v2121, 4294901760
        %v2123 = vsub.f32 %v2121, %v2122
        %v2124 = vand.u32 %v2123, 4294901760
        %2125 = vmatpush1.xpose.msra.mxu0 %v2124
        %2126 = vmatprep.subr.mxu0 0.0
        %v2127 = vand.u32 %v1044, 4294901760
        %v2128 = vsub.f32 %v1044, %v2127
        %v2129 = vand.u32 %v2128, 4294901760
        %v2130 = vsub.f32 %v2128, %v2129
        %v2131 = vand.u32 %v2130, 4294901760
        %2132 = vmatpush1.xpose.msra.mxu0 %v2131
        %2133 = vmatprep.subr.mxu0 0.0
        %v2134 = vand.u32 %v1047, 4294901760
        %v2135 = vsub.f32 %v1047, %v2134
        %v2136 = vand.u32 %v2135, 4294901760
        %v2137 = vsub.f32 %v2135, %v2136
        %v2138 = vand.u32 %v2137, 4294901760
        %2139 = vmatpush1.xpose.msra.mxu0 %v2138
        %2140 = vmatprep.subr.mxu0 0.0
        %v2141 = vand.u32 %v1050, 4294901760
        %v2142 = vsub.f32 %v1050, %v2141
        %v2143 = vand.u32 %v2142, 4294901760
        %v2144 = vsub.f32 %v2142, %v2143
        %v2145 = vand.u32 %v2144, 4294901760
        %2146 = vmatpush1.xpose.msra.mxu0 %v2145
        %2147 = vmatprep.subr.mxu0 0.0
        %v2148 = vand.u32 %v1053, 4294901760
        %v2149 = vsub.f32 %v1053, %v2148
        %v2150 = vand.u32 %v2149, 4294901760
        %v2151 = vsub.f32 %v2149, %v2150
        %v2152 = vand.u32 %v2151, 4294901760
        %2153 = vmatpush1.xpose.msra.mxu0 %v2152
        %2154 = vmatprep.subr.mxu0 0.0
        %v2155 = vand.u32 %v1056, 4294901760
        %v2156 = vsub.f32 %v1056, %v2155
        %v2157 = vand.u32 %v2156, 4294901760
        %v2158 = vsub.f32 %v2156, %v2157
        %v2159 = vand.u32 %v2158, 4294901760
        %2160 = vmatpush1.xpose.msra.mxu0 %v2159
        %2161 = vmatprep.subr.mxu0 0.0
        %v2162 = vand.u32 %v1059, 4294901760
        %v2163 = vsub.f32 %v1059, %v2162
        %v2164 = vand.u32 %v2163, 4294901760
        %v2165 = vsub.f32 %v2163, %v2164
        %v2166 = vand.u32 %v2165, 4294901760
        %2167 = vmatpush1.xpose.msra.mxu0 %v2166
        %2168 = vmatprep.subr.mxu0 0.0
        %v2169 = vand.u32 %v1062, 4294901760
        %v2170 = vsub.f32 %v1062, %v2169
        %v2171 = vand.u32 %v2170, 4294901760
        %v2172 = vsub.f32 %v2170, %v2171
        %v2173 = vand.u32 %v2172, 4294901760
        %2174 = vmatpush1.xpose.msra.mxu0 %v2173
        %2175 = vmatprep.subr.mxu0 0.0
        %v2176 = vand.u32 %v1065, 4294901760
        %v2177 = vsub.f32 %v1065, %v2176
        %v2178 = vand.u32 %v2177, 4294901760
        %v2179 = vsub.f32 %v2177, %v2178
        %v2180 = vand.u32 %v2179, 4294901760
        %2181 = vmatpush1.xpose.msra.mxu0 %v2180
        %2182 = vmatprep.subr.mxu0 0.0
        %v2183 = vand.u32 %v1068, 4294901760
        %v2184 = vsub.f32 %v1068, %v2183
        %v2185 = vand.u32 %v2184, 4294901760
        %v2186 = vsub.f32 %v2184, %v2185
        %v2187 = vand.u32 %v2186, 4294901760
        %2188 = vmatpush1.xpose.msra.mxu0 %v2187
        %2189 = vmatprep.subr.mxu0 0.0
        %v2190 = vand.u32 %v1071, 4294901760
        %v2191 = vsub.f32 %v1071, %v2190
        %v2192 = vand.u32 %v2191, 4294901760
        %v2193 = vsub.f32 %v2191, %v2192
        %v2194 = vand.u32 %v2193, 4294901760
        %2195 = vmatpush1.xpose.msra.mxu0 %v2194
        %2196 = vmatprep.subr.mxu0 0.0
        %v2197 = vand.u32 %v1074, 4294901760
        %v2198 = vsub.f32 %v1074, %v2197
        %v2199 = vand.u32 %v2198, 4294901760
        %v2200 = vsub.f32 %v2198, %v2199
        %v2201 = vand.u32 %v2200, 4294901760
        %2202 = vmatpush1.xpose.msra.mxu0 %v2201
        %2203 = vmatprep.subr.mxu0 0.0
        %v2204 = vand.u32 %v1077, 4294901760
        %v2205 = vsub.f32 %v1077, %v2204
        %v2206 = vand.u32 %v2205, 4294901760
        %v2207 = vsub.f32 %v2205, %v2206
        %v2208 = vand.u32 %v2207, 4294901760
        %2209 = vmatpush1.xpose.msra.mxu0 %v2208
        %2210 = vmatprep.subr.mxu0 0.0
        %v2211 = vand.u32 %v1080, 4294901760
        %v2212 = vsub.f32 %v1080, %v2211
        %v2213 = vand.u32 %v2212, 4294901760
        %v2214 = vsub.f32 %v2212, %v2213
        %v2215 = vand.u32 %v2214, 4294901760
        %2216 = vmatpush1.xpose.msra.mxu0 %v2215
        %2217 = vmatprep.subr.mxu0 0.0
        %v2218 = vand.u32 %v1083, 4294901760
        %v2219 = vsub.f32 %v1083, %v2218
        %v2220 = vand.u32 %v2219, 4294901760
        %v2221 = vsub.f32 %v2219, %v2220
        %v2222 = vand.u32 %v2221, 4294901760
        %2223 = vmatpush1.xpose.msra.mxu0 %v2222
        %2224 = vmatprep.subr.mxu0 0.0
        %v2225 = vand.u32 %v1086, 4294901760
        %v2226 = vsub.f32 %v1086, %v2225
        %v2227 = vand.u32 %v2226, 4294901760
        %v2228 = vsub.f32 %v2226, %v2227
        %v2229 = vand.u32 %v2228, 4294901760
        %2230 = vmatpush1.xpose.msra.mxu0 %v2229
        %2231 = vmatprep.subr.mxu0 0.0
        %v2232 = vand.u32 %v1089, 4294901760
        %v2233 = vsub.f32 %v1089, %v2232
        %v2234 = vand.u32 %v2233, 4294901760
        %v2235 = vsub.f32 %v2233, %v2234
        %v2236 = vand.u32 %v2235, 4294901760
        %2237 = vmatpush1.xpose.msra.mxu0 %v2236
        %2238 = vmatprep.subr.mxu0 0.0
        %v2239 = vand.u32 %v1092, 4294901760
        %v2240 = vsub.f32 %v1092, %v2239
        %v2241 = vand.u32 %v2240, 4294901760
        %v2242 = vsub.f32 %v2240, %v2241
        %v2243 = vand.u32 %v2242, 4294901760
        %2244 = vmatpush1.xpose.msra.mxu0 %v2243
        %2245 = vmatprep.subr.mxu0 0.0
        %v2246 = vand.u32 %v1095, 4294901760
        %v2247 = vsub.f32 %v1095, %v2246
        %v2248 = vand.u32 %v2247, 4294901760
        %v2249 = vsub.f32 %v2247, %v2248
        %v2250 = vand.u32 %v2249, 4294901760
        %2251 = vmatpush1.xpose.msra.mxu0 %v2250
        %2252 = vmatprep.subr.mxu0 0.0
        %v2253 = vand.u32 %v1098, 4294901760
        %v2254 = vsub.f32 %v1098, %v2253
        %v2255 = vand.u32 %v2254, 4294901760
        %v2256 = vsub.f32 %v2254, %v2255
        %v2257 = vand.u32 %v2256, 4294901760
        %2258 = vmatpush1.xpose.msra.mxu0 %v2257
        %2259 = vmatprep.subr.mxu0 0.0
        %v2260 = vand.u32 %v1101, 4294901760
        %v2261 = vsub.f32 %v1101, %v2260
        %v2262 = vand.u32 %v2261, 4294901760
        %v2263 = vsub.f32 %v2261, %v2262
        %v2264 = vand.u32 %v2263, 4294901760
        %2265 = vmatpush1.xpose.msra.mxu0 %v2264
        %2266 = vmatprep.subr.mxu0 0.0
        %v2267 = vand.u32 %v1104, 4294901760
        %v2268 = vsub.f32 %v1104, %v2267
        %v2269 = vand.u32 %v2268, 4294901760
        %v2270 = vsub.f32 %v2268, %v2269
        %v2271 = vand.u32 %v2270, 4294901760
        %2272 = vmatpush1.xpose.msra.mxu0 %v2271
        %2273 = vmatprep.subr.mxu0 0.0
        %v2274 = vand.u32 %v1107, 4294901760
        %v2275 = vsub.f32 %v1107, %v2274
        %v2276 = vand.u32 %v2275, 4294901760
        %v2277 = vsub.f32 %v2275, %v2276
        %v2278 = vand.u32 %v2277, 4294901760
        %2279 = vmatpush1.xpose.msra.mxu0 %v2278
        %2280 = vmatprep.subr.mxu0 0.0
        %v2281 = vand.u32 %v1110, 4294901760
        %v2282 = vsub.f32 %v1110, %v2281
        %v2283 = vand.u32 %v2282, 4294901760
        %v2284 = vsub.f32 %v2282, %v2283
        %v2285 = vand.u32 %v2284, 4294901760
        %2286 = vmatpush1.xpose.msra.mxu0 %v2285
        %2287 = vmatprep.subr.mxu0 0.0
        %v2288 = vand.u32 %v1113, 4294901760
        %v2289 = vsub.f32 %v1113, %v2288
        %v2290 = vand.u32 %v2289, 4294901760
        %v2291 = vsub.f32 %v2289, %v2290
        %v2292 = vand.u32 %v2291, 4294901760
        %2293 = vmatpush1.xpose.msra.mxu0 %v2292
        %2294 = vmatprep.subr.mxu0 0.0
        %v2295 = vand.u32 %v1116, 4294901760
        %v2296 = vsub.f32 %v1116, %v2295
        %v2297 = vand.u32 %v2296, 4294901760
        %v2298 = vsub.f32 %v2296, %v2297
        %v2299 = vand.u32 %v2298, 4294901760
        %2300 = vmatpush1.xpose.msra.mxu0 %v2299
        %2301 = vmatprep.subr.mxu0 0.0
        %v2302 = vand.u32 %v1119, 4294901760
        %v2303 = vsub.f32 %v1119, %v2302
        %v2304 = vand.u32 %v2303, 4294901760
        %v2305 = vsub.f32 %v2303, %v2304
        %v2306 = vand.u32 %v2305, 4294901760
        %2307 = vmatpush1.xpose.msra.mxu0 %v2306
        %2308 = vmatprep.mubr.f32.mxu0 0.0
        %v2309 = vand.u32 %v927, 4294901760
        %2310 = vmatmul.mubr.f32.gmra.mrb[0].mxu0 %v2309
        %v2311 = vpop.f32.mrb[0].mxu0
        %v2312 = vadd.f32 %v2080, %v2311
        %v2313 = vpop.f32.mrb[0].mxu0
        %v2314 = vadd.f32 %v2082, %v2313
        %2315 = vdwg.mxu0
        %2316 = vmatprep.subr.mxu0 0.0
        %v2317 = vand.u32 %v1026, 4294901760
        %v2318 = vsub.f32 %v1026, %v2317
        %2319 = vmatpush1.xpose.msra.mxu0 %v2318
        %2320 = vmatprep.subr.mxu0 0.0
        %v2321 = vand.u32 %v1029, 4294901760
        %v2322 = vsub.f32 %v1029, %v2321
        %2323 = vmatpush1.xpose.msra.mxu0 %v2322
        %2324 = vmatprep.subr.mxu0 0.0
        %v2325 = vand.u32 %v1032, 4294901760
        %v2326 = vsub.f32 %v1032, %v2325
        %2327 = vmatpush1.xpose.msra.mxu0 %v2326
        %2328 = vmatprep.subr.mxu0 0.0
        %v2329 = vand.u32 %v1035, 4294901760
        %v2330 = vsub.f32 %v1035, %v2329
        %2331 = vmatpush1.xpose.msra.mxu0 %v2330
        %2332 = vmatprep.subr.mxu0 0.0
        %v2333 = vand.u32 %v1038, 4294901760
        %v2334 = vsub.f32 %v1038, %v2333
        %2335 = vmatpush1.xpose.msra.mxu0 %v2334
        %2336 = vmatprep.subr.mxu0 0.0
        %v2337 = vand.u32 %v1041, 4294901760
        %v2338 = vsub.f32 %v1041, %v2337
        %2339 = vmatpush1.xpose.msra.mxu0 %v2338
        %2340 = vmatprep.subr.mxu0 0.0
        %v2341 = vand.u32 %v1044, 4294901760
        %v2342 = vsub.f32 %v1044, %v2341
        %2343 = vmatpush1.xpose.msra.mxu0 %v2342
        %2344 = vmatprep.subr.mxu0 0.0
        %v2345 = vand.u32 %v1047, 4294901760
        %v2346 = vsub.f32 %v1047, %v2345
        %2347 = vmatpush1.xpose.msra.mxu0 %v2346
        %2348 = vmatprep.subr.mxu0 0.0
        %v2349 = vand.u32 %v1050, 4294901760
        %v2350 = vsub.f32 %v1050, %v2349
        %2351 = vmatpush1.xpose.msra.mxu0 %v2350
        %2352 = vmatprep.subr.mxu0 0.0
        %v2353 = vand.u32 %v1053, 4294901760
        %v2354 = vsub.f32 %v1053, %v2353
        %2355 = vmatpush1.xpose.msra.mxu0 %v2354
        %2356 = vmatprep.subr.mxu0 0.0
        %v2357 = vand.u32 %v1056, 4294901760
        %v2358 = vsub.f32 %v1056, %v2357
        %2359 = vmatpush1.xpose.msra.mxu0 %v2358
        %2360 = vmatprep.subr.mxu0 0.0
        %v2361 = vand.u32 %v1059, 4294901760
        %v2362 = vsub.f32 %v1059, %v2361
        %2363 = vmatpush1.xpose.msra.mxu0 %v2362
        %2364 = vmatprep.subr.mxu0 0.0
        %v2365 = vand.u32 %v1062, 4294901760
        %v2366 = vsub.f32 %v1062, %v2365
        %2367 = vmatpush1.xpose.msra.mxu0 %v2366
        %2368 = vmatprep.subr.mxu0 0.0
        %v2369 = vand.u32 %v1065, 4294901760
        %v2370 = vsub.f32 %v1065, %v2369
        %2371 = vmatpush1.xpose.msra.mxu0 %v2370
        %2372 = vmatprep.subr.mxu0 0.0
        %v2373 = vand.u32 %v1068, 4294901760
        %v2374 = vsub.f32 %v1068, %v2373
        %2375 = vmatpush1.xpose.msra.mxu0 %v2374
        %2376 = vmatprep.subr.mxu0 0.0
        %v2377 = vand.u32 %v1071, 4294901760
        %v2378 = vsub.f32 %v1071, %v2377
        %2379 = vmatpush1.xpose.msra.mxu0 %v2378
        %2380 = vmatprep.subr.mxu0 0.0
        %v2381 = vand.u32 %v1074, 4294901760
        %v2382 = vsub.f32 %v1074, %v2381
        %2383 = vmatpush1.xpose.msra.mxu0 %v2382
        %2384 = vmatprep.subr.mxu0 0.0
        %v2385 = vand.u32 %v1077, 4294901760
        %v2386 = vsub.f32 %v1077, %v2385
        %2387 = vmatpush1.xpose.msra.mxu0 %v2386
        %2388 = vmatprep.subr.mxu0 0.0
        %v2389 = vand.u32 %v1080, 4294901760
        %v2390 = vsub.f32 %v1080, %v2389
        %2391 = vmatpush1.xpose.msra.mxu0 %v2390
        %2392 = vmatprep.subr.mxu0 0.0
        %v2393 = vand.u32 %v1083, 4294901760
        %v2394 = vsub.f32 %v1083, %v2393
        %2395 = vmatpush1.xpose.msra.mxu0 %v2394
        %2396 = vmatprep.subr.mxu0 0.0
        %v2397 = vand.u32 %v1086, 4294901760
        %v2398 = vsub.f32 %v1086, %v2397
        %2399 = vmatpush1.xpose.msra.mxu0 %v2398
        %2400 = vmatprep.subr.mxu0 0.0
        %v2401 = vand.u32 %v1089, 4294901760
        %v2402 = vsub.f32 %v1089, %v2401
        %2403 = vmatpush1.xpose.msra.mxu0 %v2402
        %2404 = vmatprep.subr.mxu0 0.0
        %v2405 = vand.u32 %v1092, 4294901760
        %v2406 = vsub.f32 %v1092, %v2405
        %2407 = vmatpush1.xpose.msra.mxu0 %v2406
        %2408 = vmatprep.subr.mxu0 0.0
        %v2409 = vand.u32 %v1095, 4294901760
        %v2410 = vsub.f32 %v1095, %v2409
        %2411 = vmatpush1.xpose.msra.mxu0 %v2410
        %2412 = vmatprep.subr.mxu0 0.0
        %v2413 = vand.u32 %v1098, 4294901760
        %v2414 = vsub.f32 %v1098, %v2413
        %2415 = vmatpush1.xpose.msra.mxu0 %v2414
        %2416 = vmatprep.subr.mxu0 0.0
        %v2417 = vand.u32 %v1101, 4294901760
        %v2418 = vsub.f32 %v1101, %v2417
        %2419 = vmatpush1.xpose.msra.mxu0 %v2418
        %2420 = vmatprep.subr.mxu0 0.0
        %v2421 = vand.u32 %v1104, 4294901760
        %v2422 = vsub.f32 %v1104, %v2421
        %2423 = vmatpush1.xpose.msra.mxu0 %v2422
        %2424 = vmatprep.subr.mxu0 0.0
        %v2425 = vand.u32 %v1107, 4294901760
        %v2426 = vsub.f32 %v1107, %v2425
        %2427 = vmatpush1.xpose.msra.mxu0 %v2426
        %2428 = vmatprep.subr.mxu0 0.0
        %v2429 = vand.u32 %v1110, 4294901760
        %v2430 = vsub.f32 %v1110, %v2429
        %2431 = vmatpush1.xpose.msra.mxu0 %v2430
        %2432 = vmatprep.subr.mxu0 0.0
        %v2433 = vand.u32 %v1113, 4294901760
        %v2434 = vsub.f32 %v1113, %v2433
        %2435 = vmatpush1.xpose.msra.mxu0 %v2434
        %2436 = vmatprep.subr.mxu0 0.0
        %v2437 = vand.u32 %v1116, 4294901760
        %v2438 = vsub.f32 %v1116, %v2437
        %2439 = vmatpush1.xpose.msra.mxu0 %v2438
        %2440 = vmatprep.subr.mxu0 0.0
        %v2441 = vand.u32 %v1119, 4294901760
        %v2442 = vsub.f32 %v1119, %v2441
        %2443 = vmatpush1.xpose.msra.mxu0 %v2442
        %2444 = vmatprep.mubr.f32.mxu0 0.0
        %v2445 = vand.u32 %v927, 4294901760
        %v2446 = vsub.f32 %v927, %v2445
        %2447 = vmatmul.mubr.f32.gmra.mrb[0].mxu0 %v2446
        %v2448 = vpop.f32.mrb[0].mxu0
        %v2449 = vadd.f32 %v2312, %v2448
        %v2450 = vpop.f32.mrb[0].mxu0
        %v2451 = vadd.f32 %v2314, %v2450
        %2452 = vdwg.mxu0
        %2453 = vmatprep.subr.mxu0 0.0
        %v2454 = vand.u32 %v1026, 4294901760
        %2455 = vmatpush1.xpose.msra.mxu0 %v2454
        %2456 = vmatprep.subr.mxu0 0.0
        %v2457 = vand.u32 %v1029, 4294901760
        %2458 = vmatpush1.xpose.msra.mxu0 %v2457
        %2459 = vmatprep.subr.mxu0 0.0
        %v2460 = vand.u32 %v1032, 4294901760
        %2461 = vmatpush1.xpose.msra.mxu0 %v2460
        %2462 = vmatprep.subr.mxu0 0.0
        %v2463 = vand.u32 %v1035, 4294901760
        %2464 = vmatpush1.xpose.msra.mxu0 %v2463
        %2465 = vmatprep.subr.mxu0 0.0
        %v2466 = vand.u32 %v1038, 4294901760
        %2467 = vmatpush1.xpose.msra.mxu0 %v2466
        %2468 = vmatprep.subr.mxu0 0.0
        %v2469 = vand.u32 %v1041, 4294901760
        %2470 = vmatpush1.xpose.msra.mxu0 %v2469
        %2471 = vmatprep.subr.mxu0 0.0
        %v2472 = vand.u32 %v1044, 4294901760
        %2473 = vmatpush1.xpose.msra.mxu0 %v2472
        %2474 = vmatprep.subr.mxu0 0.0
        %v2475 = vand.u32 %v1047, 4294901760
        %2476 = vmatpush1.xpose.msra.mxu0 %v2475
        %2477 = vmatprep.subr.mxu0 0.0
        %v2478 = vand.u32 %v1050, 4294901760
        %2479 = vmatpush1.xpose.msra.mxu0 %v2478
        %2480 = vmatprep.subr.mxu0 0.0
        %v2481 = vand.u32 %v1053, 4294901760
        %2482 = vmatpush1.xpose.msra.mxu0 %v2481
        %2483 = vmatprep.subr.mxu0 0.0
        %v2484 = vand.u32 %v1056, 4294901760
        %2485 = vmatpush1.xpose.msra.mxu0 %v2484
        %2486 = vmatprep.subr.mxu0 0.0
        %v2487 = vand.u32 %v1059, 4294901760
        %2488 = vmatpush1.xpose.msra.mxu0 %v2487
        %2489 = vmatprep.subr.mxu0 0.0
        %v2490 = vand.u32 %v1062, 4294901760
        %2491 = vmatpush1.xpose.msra.mxu0 %v2490
        %2492 = vmatprep.subr.mxu0 0.0
        %v2493 = vand.u32 %v1065, 4294901760
        %2494 = vmatpush1.xpose.msra.mxu0 %v2493
        %2495 = vmatprep.subr.mxu0 0.0
        %v2496 = vand.u32 %v1068, 4294901760
        %2497 = vmatpush1.xpose.msra.mxu0 %v2496
        %2498 = vmatprep.subr.mxu0 0.0
        %v2499 = vand.u32 %v1071, 4294901760
        %2500 = vmatpush1.xpose.msra.mxu0 %v2499
        %2501 = vmatprep.subr.mxu0 0.0
        %v2502 = vand.u32 %v1074, 4294901760
        %2503 = vmatpush1.xpose.msra.mxu0 %v2502
        %2504 = vmatprep.subr.mxu0 0.0
        %v2505 = vand.u32 %v1077, 4294901760
        %2506 = vmatpush1.xpose.msra.mxu0 %v2505
        %2507 = vmatprep.subr.mxu0 0.0
        %v2508 = vand.u32 %v1080, 4294901760
        %2509 = vmatpush1.xpose.msra.mxu0 %v2508
        %2510 = vmatprep.subr.mxu0 0.0
        %v2511 = vand.u32 %v1083, 4294901760
        %2512 = vmatpush1.xpose.msra.mxu0 %v2511
        %2513 = vmatprep.subr.mxu0 0.0
        %v2514 = vand.u32 %v1086, 4294901760
        %2515 = vmatpush1.xpose.msra.mxu0 %v2514
        %2516 = vmatprep.subr.mxu0 0.0
        %v2517 = vand.u32 %v1089, 4294901760
        %2518 = vmatpush1.xpose.msra.mxu0 %v2517
        %2519 = vmatprep.subr.mxu0 0.0
        %v2520 = vand.u32 %v1092, 4294901760
        %2521 = vmatpush1.xpose.msra.mxu0 %v2520
        %2522 = vmatprep.subr.mxu0 0.0
        %v2523 = vand.u32 %v1095, 4294901760
        %2524 = vmatpush1.xpose.msra.mxu0 %v2523
        %2525 = vmatprep.subr.mxu0 0.0
        %v2526 = vand.u32 %v1098, 4294901760
        %2527 = vmatpush1.xpose.msra.mxu0 %v2526
        %2528 = vmatprep.subr.mxu0 0.0
        %v2529 = vand.u32 %v1101, 4294901760
        %2530 = vmatpush1.xpose.msra.mxu0 %v2529
        %2531 = vmatprep.subr.mxu0 0.0
        %v2532 = vand.u32 %v1104, 4294901760
        %2533 = vmatpush1.xpose.msra.mxu0 %v2532
        %2534 = vmatprep.subr.mxu0 0.0
        %v2535 = vand.u32 %v1107, 4294901760
        %2536 = vmatpush1.xpose.msra.mxu0 %v2535
        %2537 = vmatprep.subr.mxu0 0.0
        %v2538 = vand.u32 %v1110, 4294901760
        %2539 = vmatpush1.xpose.msra.mxu0 %v2538
        %2540 = vmatprep.subr.mxu0 0.0
        %v2541 = vand.u32 %v1113, 4294901760
        %2542 = vmatpush1.xpose.msra.mxu0 %v2541
        %2543 = vmatprep.subr.mxu0 0.0
        %v2544 = vand.u32 %v1116, 4294901760
        %2545 = vmatpush1.xpose.msra.mxu0 %v2544
        %2546 = vmatprep.subr.mxu0 0.0
        %v2547 = vand.u32 %v1119, 4294901760
        %2548 = vmatpush1.xpose.msra.mxu0 %v2547
        %2549 = vmatprep.mubr.f32.mxu0 0.0
        %v2550 = vand.u32 %v927, 4294901760
        %v2551 = vsub.f32 %v927, %v2550
        %v2552 = vand.u32 %v2551, 4294901760
        %2553 = vmatmul.mubr.f32.gmra.mrb[0].mxu0 %v2552
        %v2554 = vpop.f32.mrb[0].mxu0
        %v2555 = vadd.f32 %v2449, %v2554
        %v2556 = vpop.f32.mrb[0].mxu0
        %v2557 = vadd.f32 %v2451, %v2556
        %2558 = vdwg.mxu0
        %2559 = vmatprep.subr.mxu0 0.0
        %v2560 = vand.u32 %v1026, 4294901760
        %v2561 = vsub.f32 %v1026, %v2560
        %v2562 = vand.u32 %v2561, 4294901760
        %2563 = vmatpush1.xpose.msra.mxu0 %v2562
        %2564 = vmatprep.subr.mxu0 0.0
        %v2565 = vand.u32 %v1029, 4294901760
        %v2566 = vsub.f32 %v1029, %v2565
        %v2567 = vand.u32 %v2566, 4294901760
        %2568 = vmatpush1.xpose.msra.mxu0 %v2567
        %2569 = vmatprep.subr.mxu0 0.0
        %v2570 = vand.u32 %v1032, 4294901760
        %v2571 = vsub.f32 %v1032, %v2570
        %v2572 = vand.u32 %v2571, 4294901760
        %2573 = vmatpush1.xpose.msra.mxu0 %v2572
        %2574 = vmatprep.subr.mxu0 0.0
        %v2575 = vand.u32 %v1035, 4294901760
        %v2576 = vsub.f32 %v1035, %v2575
        %v2577 = vand.u32 %v2576, 4294901760
        %2578 = vmatpush1.xpose.msra.mxu0 %v2577
        %2579 = vmatprep.subr.mxu0 0.0
        %v2580 = vand.u32 %v1038, 4294901760
        %v2581 = vsub.f32 %v1038, %v2580
        %v2582 = vand.u32 %v2581, 4294901760
        %2583 = vmatpush1.xpose.msra.mxu0 %v2582
        %2584 = vmatprep.subr.mxu0 0.0
        %v2585 = vand.u32 %v1041, 4294901760
        %v2586 = vsub.f32 %v1041, %v2585
        %v2587 = vand.u32 %v2586, 4294901760
        %2588 = vmatpush1.xpose.msra.mxu0 %v2587
        %2589 = vmatprep.subr.mxu0 0.0
        %v2590 = vand.u32 %v1044, 4294901760
        %v2591 = vsub.f32 %v1044, %v2590
        %v2592 = vand.u32 %v2591, 4294901760
        %2593 = vmatpush1.xpose.msra.mxu0 %v2592
        %2594 = vmatprep.subr.mxu0 0.0
        %v2595 = vand.u32 %v1047, 4294901760
        %v2596 = vsub.f32 %v1047, %v2595
        %v2597 = vand.u32 %v2596, 4294901760
        %2598 = vmatpush1.xpose.msra.mxu0 %v2597
        %2599 = vmatprep.subr.mxu0 0.0
        %v2600 = vand.u32 %v1050, 4294901760
        %v2601 = vsub.f32 %v1050, %v2600
        %v2602 = vand.u32 %v2601, 4294901760
        %2603 = vmatpush1.xpose.msra.mxu0 %v2602
        %2604 = vmatprep.subr.mxu0 0.0
        %v2605 = vand.u32 %v1053, 4294901760
        %v2606 = vsub.f32 %v1053, %v2605
        %v2607 = vand.u32 %v2606, 4294901760
        %2608 = vmatpush1.xpose.msra.mxu0 %v2607
        %2609 = vmatprep.subr.mxu0 0.0
        %v2610 = vand.u32 %v1056, 4294901760
        %v2611 = vsub.f32 %v1056, %v2610
        %v2612 = vand.u32 %v2611, 4294901760
        %2613 = vmatpush1.xpose.msra.mxu0 %v2612
        %2614 = vmatprep.subr.mxu0 0.0
        %v2615 = vand.u32 %v1059, 4294901760
        %v2616 = vsub.f32 %v1059, %v2615
        %v2617 = vand.u32 %v2616, 4294901760
        %2618 = vmatpush1.xpose.msra.mxu0 %v2617
        %2619 = vmatprep.subr.mxu0 0.0
        %v2620 = vand.u32 %v1062, 4294901760
        %v2621 = vsub.f32 %v1062, %v2620
        %v2622 = vand.u32 %v2621, 4294901760
        %2623 = vmatpush1.xpose.msra.mxu0 %v2622
        %2624 = vmatprep.subr.mxu0 0.0
        %v2625 = vand.u32 %v1065, 4294901760
        %v2626 = vsub.f32 %v1065, %v2625
        %v2627 = vand.u32 %v2626, 4294901760
        %2628 = vmatpush1.xpose.msra.mxu0 %v2627
        %2629 = vmatprep.subr.mxu0 0.0
        %v2630 = vand.u32 %v1068, 4294901760
        %v2631 = vsub.f32 %v1068, %v2630
        %v2632 = vand.u32 %v2631, 4294901760
        %2633 = vmatpush1.xpose.msra.mxu0 %v2632
        %2634 = vmatprep.subr.mxu0 0.0
        %v2635 = vand.u32 %v1071, 4294901760
        %v2636 = vsub.f32 %v1071, %v2635
        %v2637 = vand.u32 %v2636, 4294901760
        %2638 = vmatpush1.xpose.msra.mxu0 %v2637
        %2639 = vmatprep.subr.mxu0 0.0
        %v2640 = vand.u32 %v1074, 4294901760
        %v2641 = vsub.f32 %v1074, %v2640
        %v2642 = vand.u32 %v2641, 4294901760
        %2643 = vmatpush1.xpose.msra.mxu0 %v2642
        %2644 = vmatprep.subr.mxu0 0.0
        %v2645 = vand.u32 %v1077, 4294901760
        %v2646 = vsub.f32 %v1077, %v2645
        %v2647 = vand.u32 %v2646, 4294901760
        %2648 = vmatpush1.xpose.msra.mxu0 %v2647
        %2649 = vmatprep.subr.mxu0 0.0
        %v2650 = vand.u32 %v1080, 4294901760
        %v2651 = vsub.f32 %v1080, %v2650
        %v2652 = vand.u32 %v2651, 4294901760
        %2653 = vmatpush1.xpose.msra.mxu0 %v2652
        %2654 = vmatprep.subr.mxu0 0.0
        %v2655 = vand.u32 %v1083, 4294901760
        %v2656 = vsub.f32 %v1083, %v2655
        %v2657 = vand.u32 %v2656, 4294901760
        %2658 = vmatpush1.xpose.msra.mxu0 %v2657
        %2659 = vmatprep.subr.mxu0 0.0
        %v2660 = vand.u32 %v1086, 4294901760
        %v2661 = vsub.f32 %v1086, %v2660
        %v2662 = vand.u32 %v2661, 4294901760
        %2663 = vmatpush1.xpose.msra.mxu0 %v2662
        %2664 = vmatprep.subr.mxu0 0.0
        %v2665 = vand.u32 %v1089, 4294901760
        %v2666 = vsub.f32 %v1089, %v2665
        %v2667 = vand.u32 %v2666, 4294901760
        %2668 = vmatpush1.xpose.msra.mxu0 %v2667
        %2669 = vmatprep.subr.mxu0 0.0
        %v2670 = vand.u32 %v1092, 4294901760
        %v2671 = vsub.f32 %v1092, %v2670
        %v2672 = vand.u32 %v2671, 4294901760
        %2673 = vmatpush1.xpose.msra.mxu0 %v2672
        %2674 = vmatprep.subr.mxu0 0.0
        %v2675 = vand.u32 %v1095, 4294901760
        %v2676 = vsub.f32 %v1095, %v2675
        %v2677 = vand.u32 %v2676, 4294901760
        %2678 = vmatpush1.xpose.msra.mxu0 %v2677
        %2679 = vmatprep.subr.mxu0 0.0
        %v2680 = vand.u32 %v1098, 4294901760
        %v2681 = vsub.f32 %v1098, %v2680
        %v2682 = vand.u32 %v2681, 4294901760
        %2683 = vmatpush1.xpose.msra.mxu0 %v2682
        %2684 = vmatprep.subr.mxu0 0.0
        %v2685 = vand.u32 %v1101, 4294901760
        %v2686 = vsub.f32 %v1101, %v2685
        %v2687 = vand.u32 %v2686, 4294901760
        %2688 = vmatpush1.xpose.msra.mxu0 %v2687
        %2689 = vmatprep.subr.mxu0 0.0
        %v2690 = vand.u32 %v1104, 4294901760
        %v2691 = vsub.f32 %v1104, %v2690
        %v2692 = vand.u32 %v2691, 4294901760
        %2693 = vmatpush1.xpose.msra.mxu0 %v2692
        %2694 = vmatprep.subr.mxu0 0.0
        %v2695 = vand.u32 %v1107, 4294901760
        %v2696 = vsub.f32 %v1107, %v2695
        %v2697 = vand.u32 %v2696, 4294901760
        %2698 = vmatpush1.xpose.msra.mxu0 %v2697
        %2699 = vmatprep.subr.mxu0 0.0
        %v2700 = vand.u32 %v1110, 4294901760
        %v2701 = vsub.f32 %v1110, %v2700
        %v2702 = vand.u32 %v2701, 4294901760
        %2703 = vmatpush1.xpose.msra.mxu0 %v2702
        %2704 = vmatprep.subr.mxu0 0.0
        %v2705 = vand.u32 %v1113, 4294901760
        %v2706 = vsub.f32 %v1113, %v2705
        %v2707 = vand.u32 %v2706, 4294901760
        %2708 = vmatpush1.xpose.msra.mxu0 %v2707
        %2709 = vmatprep.subr.mxu0 0.0
        %v2710 = vand.u32 %v1116, 4294901760
        %v2711 = vsub.f32 %v1116, %v2710
        %v2712 = vand.u32 %v2711, 4294901760
        %2713 = vmatpush1.xpose.msra.mxu0 %v2712
        %2714 = vmatprep.subr.mxu0 0.0
        %v2715 = vand.u32 %v1119, 4294901760
        %v2716 = vsub.f32 %v1119, %v2715
        %v2717 = vand.u32 %v2716, 4294901760
        %2718 = vmatpush1.xpose.msra.mxu0 %v2717
        %2719 = vmatprep.mubr.f32.mxu0 0.0
        %v2720 = vand.u32 %v927, 4294901760
        %2721 = vmatmul.mubr.f32.gmra.mrb[0].mxu0 %v2720
        %v2722 = vpop.f32.mrb[0].mxu0
        %v2723 = vadd.f32 %v2555, %v2722
        %v2724 = vpop.f32.mrb[0].mxu0
        %v2725 = vadd.f32 %v2557, %v2724
        %2726 = vdwg.mxu0
        %2727 = vmatprep.subr.mxu0 0.0
        %v2728 = vand.u32 %v1026, 4294901760
        %2729 = vmatpush1.xpose.msra.mxu0 %v2728
        %2730 = vmatprep.subr.mxu0 0.0
        %v2731 = vand.u32 %v1029, 4294901760
        %2732 = vmatpush1.xpose.msra.mxu0 %v2731
        %2733 = vmatprep.subr.mxu0 0.0
        %v2734 = vand.u32 %v1032, 4294901760
        %2735 = vmatpush1.xpose.msra.mxu0 %v2734
        %2736 = vmatprep.subr.mxu0 0.0
        %v2737 = vand.u32 %v1035, 4294901760
        %2738 = vmatpush1.xpose.msra.mxu0 %v2737
        %2739 = vmatprep.subr.mxu0 0.0
        %v2740 = vand.u32 %v1038, 4294901760
        %2741 = vmatpush1.xpose.msra.mxu0 %v2740
        %2742 = vmatprep.subr.mxu0 0.0
        %v2743 = vand.u32 %v1041, 4294901760
        %2744 = vmatpush1.xpose.msra.mxu0 %v2743
        %2745 = vmatprep.subr.mxu0 0.0
        %v2746 = vand.u32 %v1044, 4294901760
        %2747 = vmatpush1.xpose.msra.mxu0 %v2746
        %2748 = vmatprep.subr.mxu0 0.0
        %v2749 = vand.u32 %v1047, 4294901760
        %2750 = vmatpush1.xpose.msra.mxu0 %v2749
        %2751 = vmatprep.subr.mxu0 0.0
        %v2752 = vand.u32 %v1050, 4294901760
        %2753 = vmatpush1.xpose.msra.mxu0 %v2752
        %2754 = vmatprep.subr.mxu0 0.0
        %v2755 = vand.u32 %v1053, 4294901760
        %2756 = vmatpush1.xpose.msra.mxu0 %v2755
        %2757 = vmatprep.subr.mxu0 0.0
        %v2758 = vand.u32 %v1056, 4294901760
        %2759 = vmatpush1.xpose.msra.mxu0 %v2758
        %2760 = vmatprep.subr.mxu0 0.0
        %v2761 = vand.u32 %v1059, 4294901760
        %2762 = vmatpush1.xpose.msra.mxu0 %v2761
        %2763 = vmatprep.subr.mxu0 0.0
        %v2764 = vand.u32 %v1062, 4294901760
        %2765 = vmatpush1.xpose.msra.mxu0 %v2764
        %2766 = vmatprep.subr.mxu0 0.0
        %v2767 = vand.u32 %v1065, 4294901760
        %2768 = vmatpush1.xpose.msra.mxu0 %v2767
        %2769 = vmatprep.subr.mxu0 0.0
        %v2770 = vand.u32 %v1068, 4294901760
        %2771 = vmatpush1.xpose.msra.mxu0 %v2770
        %2772 = vmatprep.subr.mxu0 0.0
        %v2773 = vand.u32 %v1071, 4294901760
        %2774 = vmatpush1.xpose.msra.mxu0 %v2773
        %2775 = vmatprep.subr.mxu0 0.0
        %v2776 = vand.u32 %v1074, 4294901760
        %2777 = vmatpush1.xpose.msra.mxu0 %v2776
        %2778 = vmatprep.subr.mxu0 0.0
        %v2779 = vand.u32 %v1077, 4294901760
        %2780 = vmatpush1.xpose.msra.mxu0 %v2779
        %2781 = vmatprep.subr.mxu0 0.0
        %v2782 = vand.u32 %v1080, 4294901760
        %2783 = vmatpush1.xpose.msra.mxu0 %v2782
        %2784 = vmatprep.subr.mxu0 0.0
        %v2785 = vand.u32 %v1083, 4294901760
        %2786 = vmatpush1.xpose.msra.mxu0 %v2785
        %2787 = vmatprep.subr.mxu0 0.0
        %v2788 = vand.u32 %v1086, 4294901760
        %2789 = vmatpush1.xpose.msra.mxu0 %v2788
        %2790 = vmatprep.subr.mxu0 0.0
        %v2791 = vand.u32 %v1089, 4294901760
        %2792 = vmatpush1.xpose.msra.mxu0 %v2791
        %2793 = vmatprep.subr.mxu0 0.0
        %v2794 = vand.u32 %v1092, 4294901760
        %2795 = vmatpush1.xpose.msra.mxu0 %v2794
        %2796 = vmatprep.subr.mxu0 0.0
        %v2797 = vand.u32 %v1095, 4294901760
        %2798 = vmatpush1.xpose.msra.mxu0 %v2797
        %2799 = vmatprep.subr.mxu0 0.0
        %v2800 = vand.u32 %v1098, 4294901760
        %2801 = vmatpush1.xpose.msra.mxu0 %v2800
        %2802 = vmatprep.subr.mxu0 0.0
        %v2803 = vand.u32 %v1101, 4294901760
        %2804 = vmatpush1.xpose.msra.mxu0 %v2803
        %2805 = vmatprep.subr.mxu0 0.0
        %v2806 = vand.u32 %v1104, 4294901760
        %2807 = vmatpush1.xpose.msra.mxu0 %v2806
        %2808 = vmatprep.subr.mxu0 0.0
        %v2809 = vand.u32 %v1107, 4294901760
        %2810 = vmatpush1.xpose.msra.mxu0 %v2809
        %2811 = vmatprep.subr.mxu0 0.0
        %v2812 = vand.u32 %v1110, 4294901760
        %2813 = vmatpush1.xpose.msra.mxu0 %v2812
        %2814 = vmatprep.subr.mxu0 0.0
        %v2815 = vand.u32 %v1113, 4294901760
        %2816 = vmatpush1.xpose.msra.mxu0 %v2815
        %2817 = vmatprep.subr.mxu0 0.0
        %v2818 = vand.u32 %v1116, 4294901760
        %2819 = vmatpush1.xpose.msra.mxu0 %v2818
        %2820 = vmatprep.subr.mxu0 0.0
        %v2821 = vand.u32 %v1119, 4294901760
        %2822 = vmatpush1.xpose.msra.mxu0 %v2821
        %2823 = vmatprep.mubr.f32.mxu0 0.0
        %v2824 = vand.u32 %v927, 4294901760
        %2825 = vmatmul.mubr.f32.gmra.mrb[0].mxu0 %v2824
        %v2826 = vpop.f32.mrb[0].mxu0
        %v2827 = vadd.f32 %v2723, %v2826
        %v2828 = vpop.f32.mrb[0].mxu0
        %v2829 = vadd.f32 %v2725, %v2828
        %2830 = vdwg.mxu0
        %s2831 = scalar_lea.vmem %s648, 256 [#allocation2]
        %v2832 = vld [vmem:[%s2831] sm:$0xf]
        %v2833 = vld [vmem:[%s2831 + $0x4] sm:$0xf]
        %v2834 = vld [vmem:[%s2831 + $0x8] sm:$0xf]
        %v2835 = vld [vmem:[%s2831 + $0xc] sm:$0xf]
        %v2836 = vld [vmem:[%s2831 + $0x10] sm:$0xf]
        %v2837 = vld [vmem:[%s2831 + $0x14] sm:$0xf]
        %v2838 = vld [vmem:[%s2831 + $0x18] sm:$0xf]
        %v2839 = vld [vmem:[%s2831 + $0x1c] sm:$0xf]
        %v2840 = vld [vmem:[%s2831 + $0x20] sm:$0xf]
        %v2841 = vld [vmem:[%s2831 + $0x24] sm:$0xf]
        %v2842 = vld [vmem:[%s2831 + $0x28] sm:$0xf]
        %v2843 = vld [vmem:[%s2831 + $0x2c] sm:$0xf]
        %v2844 = vld [vmem:[%s2831 + $0x30] sm:$0xf]
        %v2845 = vld [vmem:[%s2831 + $0x34] sm:$0xf]
        %v2846 = vld [vmem:[%s2831 + $0x38] sm:$0xf]
        %v2847 = vld [vmem:[%s2831 + $0x3c] sm:$0xf]
        %v2848 = vld [vmem:[%s2831 + $0x40] sm:$0xf]
        %v2849 = vld [vmem:[%s2831 + $0x44] sm:$0xf]
        %v2850 = vld [vmem:[%s2831 + $0x48] sm:$0xf]
        %v2851 = vld [vmem:[%s2831 + $0x4c] sm:$0xf]
        %v2852 = vld [vmem:[%s2831 + $0x50] sm:$0xf]
        %v2853 = vld [vmem:[%s2831 + $0x54] sm:$0xf]
        %v2854 = vld [vmem:[%s2831 + $0x58] sm:$0xf]
        %v2855 = vld [vmem:[%s2831 + $0x5c] sm:$0xf]
        %v2856 = vld [vmem:[%s2831 + $0x60] sm:$0xf]
        %v2857 = vld [vmem:[%s2831 + $0x64] sm:$0xf]
        %v2858 = vld [vmem:[%s2831 + $0x68] sm:$0xf]
        %v2859 = vld [vmem:[%s2831 + $0x6c] sm:$0xf]
        %v2860 = vld [vmem:[%s2831 + $0x70] sm:$0xf]
        %v2861 = vld [vmem:[%s2831 + $0x74] sm:$0xf]
        %v2862 = vld [vmem:[%s2831 + $0x78] sm:$0xf]
        %v2863 = vld [vmem:[%s2831 + $0x7c] sm:$0xf]
        %v2864 = vld [vmem:[%s2831 + $0x80] sm:$0xf]
        %v2865 = vld [vmem:[%s2831 + $0x84] sm:$0xf]
        %v2866 = vld [vmem:[%s2831 + $0x88] sm:$0xf]
        %v2867 = vld [vmem:[%s2831 + $0x8c] sm:$0xf]
        %v2868 = vld [vmem:[%s2831 + $0x90] sm:$0xf]
        %v2869 = vld [vmem:[%s2831 + $0x94] sm:$0xf]
        %v2870 = vld [vmem:[%s2831 + $0x98] sm:$0xf]
        %v2871 = vld [vmem:[%s2831 + $0x9c] sm:$0xf]
        %v2872 = vld [vmem:[%s2831 + $0xa0] sm:$0xf]
        %v2873 = vld [vmem:[%s2831 + $0xa4] sm:$0xf]
        %v2874 = vld [vmem:[%s2831 + $0xa8] sm:$0xf]
        %v2875 = vld [vmem:[%s2831 + $0xac] sm:$0xf]
        %v2876 = vld [vmem:[%s2831 + $0xb0] sm:$0xf]
        %v2877 = vld [vmem:[%s2831 + $0xb4] sm:$0xf]
        %v2878 = vld [vmem:[%s2831 + $0xb8] sm:$0xf]
        %v2879 = vld [vmem:[%s2831 + $0xbc] sm:$0xf]
        %v2880 = vld [vmem:[%s2831 + $0xc0] sm:$0xf]
        %v2881 = vld [vmem:[%s2831 + $0xc4] sm:$0xf]
        %v2882 = vld [vmem:[%s2831 + $0xc8] sm:$0xf]
        %v2883 = vld [vmem:[%s2831 + $0xcc] sm:$0xf]
        %v2884 = vld [vmem:[%s2831 + $0xd0] sm:$0xf]
        %v2885 = vld [vmem:[%s2831 + $0xd4] sm:$0xf]
        %v2886 = vld [vmem:[%s2831 + $0xd8] sm:$0xf]
        %v2887 = vld [vmem:[%s2831 + $0xdc] sm:$0xf]
        %v2888 = vld [vmem:[%s2831 + $0xe0] sm:$0xf]
        %v2889 = vld [vmem:[%s2831 + $0xe4] sm:$0xf]
        %v2890 = vld [vmem:[%s2831 + $0xe8] sm:$0xf]
        %v2891 = vld [vmem:[%s2831 + $0xec] sm:$0xf]
        %v2892 = vld [vmem:[%s2831 + $0xf0] sm:$0xf]
        %v2893 = vld [vmem:[%s2831 + $0xf4] sm:$0xf]
        %v2894 = vld [vmem:[%s2831 + $0xf8] sm:$0xf]
        %v2895 = vld [vmem:[%s2831 + $0xfc] sm:$0xf]
        %v2896 = vunpack.c.l.b16 %v2832
        %v2897 = vunpack.c.l.b16 %v2833
        %v2898 = vunpack.c.l.b16 %v2834
        %v2899 = vunpack.c.l.b16 %v2835
        %v2900 = vunpack.c.l.b16 %v2836
        %v2901 = vunpack.c.l.b16 %v2837
        %v2902 = vunpack.c.l.b16 %v2838
        %v2903 = vunpack.c.l.b16 %v2839
        %v2904 = vunpack.c.l.b16 %v2840
        %v2905 = vunpack.c.l.b16 %v2841
        %v2906 = vunpack.c.l.b16 %v2842
        %v2907 = vunpack.c.l.b16 %v2843
        %v2908 = vunpack.c.l.b16 %v2844
        %v2909 = vunpack.c.l.b16 %v2845
        %v2910 = vunpack.c.l.b16 %v2846
        %v2911 = vunpack.c.l.b16 %v2847
        %v2912 = vunpack.c.l.b16 %v2848
        %v2913 = vunpack.c.l.b16 %v2849
        %v2914 = vunpack.c.l.b16 %v2850
        %v2915 = vunpack.c.l.b16 %v2851
        %v2916 = vunpack.c.l.b16 %v2852
        %v2917 = vunpack.c.l.b16 %v2853
        %v2918 = vunpack.c.l.b16 %v2854
        %v2919 = vunpack.c.l.b16 %v2855
        %v2920 = vunpack.c.l.b16 %v2856
        %v2921 = vunpack.c.l.b16 %v2857
        %v2922 = vunpack.c.l.b16 %v2858
        %v2923 = vunpack.c.l.b16 %v2859
        %v2924 = vunpack.c.l.b16 %v2860
        %v2925 = vunpack.c.l.b16 %v2861
        %v2926 = vunpack.c.l.b16 %v2862
        %v2927 = vunpack.c.l.b16 %v2863
        %v2928 = vunpack.c.l.b16 %v2864
        %v2929 = vunpack.c.l.b16 %v2865
        %v2930 = vunpack.c.l.b16 %v2866
        %v2931 = vunpack.c.l.b16 %v2867
        %v2932 = vunpack.c.l.b16 %v2868
        %v2933 = vunpack.c.l.b16 %v2869
        %v2934 = vunpack.c.l.b16 %v2870
        %v2935 = vunpack.c.l.b16 %v2871
        %v2936 = vunpack.c.l.b16 %v2872
        %v2937 = vunpack.c.l.b16 %v2873
        %v2938 = vunpack.c.l.b16 %v2874
        %v2939 = vunpack.c.l.b16 %v2875
        %v2940 = vunpack.c.l.b16 %v2876
        %v2941 = vunpack.c.l.b16 %v2877
        %v2942 = vunpack.c.l.b16 %v2878
        %v2943 = vunpack.c.l.b16 %v2879
        %v2944 = vunpack.c.l.b16 %v2880
        %v2945 = vunpack.c.l.b16 %v2881
        %v2946 = vunpack.c.l.b16 %v2882
        %v2947 = vunpack.c.l.b16 %v2883
        %v2948 = vunpack.c.l.b16 %v2884
        %v2949 = vunpack.c.l.b16 %v2885
        %v2950 = vunpack.c.l.b16 %v2886
        %v2951 = vunpack.c.l.b16 %v2887
        %v2952 = vunpack.c.l.b16 %v2888
        %v2953 = vunpack.c.l.b16 %v2889
        %v2954 = vunpack.c.l.b16 %v2890
        %v2955 = vunpack.c.l.b16 %v2891
        %v2956 = vunpack.c.l.b16 %v2892
        %v2957 = vunpack.c.l.b16 %v2893
        %v2958 = vunpack.c.l.b16 %v2894
        %v2959 = vunpack.c.l.b16 %v2895
        %v2960 = vcvt.s32.f32 %v2896
        %v2961 = vcvt.s32.f32 %v2897
        %v2962 = vcvt.s32.f32 %v2898
        %v2963 = vcvt.s32.f32 %v2899
        %v2964 = vcvt.s32.f32 %v2900
        %v2965 = vcvt.s32.f32 %v2901
        %v2966 = vcvt.s32.f32 %v2902
        %v2967 = vcvt.s32.f32 %v2903
        %v2968 = vcvt.s32.f32 %v2904
        %v2969 = vcvt.s32.f32 %v2905
        %v2970 = vcvt.s32.f32 %v2906
        %v2971 = vcvt.s32.f32 %v2907
        %v2972 = vcvt.s32.f32 %v2908
        %v2973 = vcvt.s32.f32 %v2909
        %v2974 = vcvt.s32.f32 %v2910
        %v2975 = vcvt.s32.f32 %v2911
        %v2976 = vcvt.s32.f32 %v2912
        %v2977 = vcvt.s32.f32 %v2913
        %v2978 = vcvt.s32.f32 %v2914
        %v2979 = vcvt.s32.f32 %v2915
        %v2980 = vcvt.s32.f32 %v2916
        %v2981 = vcvt.s32.f32 %v2917
        %v2982 = vcvt.s32.f32 %v2918
        %v2983 = vcvt.s32.f32 %v2919
        %v2984 = vcvt.s32.f32 %v2920
        %v2985 = vcvt.s32.f32 %v2921
        %v2986 = vcvt.s32.f32 %v2922
        %v2987 = vcvt.s32.f32 %v2923
        %v2988 = vcvt.s32.f32 %v2924
        %v2989 = vcvt.s32.f32 %v2925
        %v2990 = vcvt.s32.f32 %v2926
        %v2991 = vcvt.s32.f32 %v2927
        %v2992 = vcvt.s32.f32 %v2928
        %v2993 = vcvt.s32.f32 %v2929
        %v2994 = vcvt.s32.f32 %v2930
        %v2995 = vcvt.s32.f32 %v2931
        %v2996 = vcvt.s32.f32 %v2932
        %v2997 = vcvt.s32.f32 %v2933
        %v2998 = vcvt.s32.f32 %v2934
        %v2999 = vcvt.s32.f32 %v2935
        %v3000 = vcvt.s32.f32 %v2936
        %v3001 = vcvt.s32.f32 %v2937
        %v3002 = vcvt.s32.f32 %v2938
        %v3003 = vcvt.s32.f32 %v2939
        %v3004 = vcvt.s32.f32 %v2940
        %v3005 = vcvt.s32.f32 %v2941
        %v3006 = vcvt.s32.f32 %v2942
        %v3007 = vcvt.s32.f32 %v2943
        %v3008 = vcvt.s32.f32 %v2944
        %v3009 = vcvt.s32.f32 %v2945
        %v3010 = vcvt.s32.f32 %v2946
        %v3011 = vcvt.s32.f32 %v2947
        %v3012 = vcvt.s32.f32 %v2948
        %v3013 = vcvt.s32.f32 %v2949
        %v3014 = vcvt.s32.f32 %v2950
        %v3015 = vcvt.s32.f32 %v2951
        %v3016 = vcvt.s32.f32 %v2952
        %v3017 = vcvt.s32.f32 %v2953
        %v3018 = vcvt.s32.f32 %v2954
        %v3019 = vcvt.s32.f32 %v2955
        %v3020 = vcvt.s32.f32 %v2956
        %v3021 = vcvt.s32.f32 %v2957
        %v3022 = vcvt.s32.f32 %v2958
        %v3023 = vcvt.s32.f32 %v2959
        %v3024 = vmul.f32 %v2960, %v2960
        %v3025 = vmul.f32 %v2961, %v2961
        %v3026 = vmul.f32 %v2962, %v2962
        %v3027 = vmul.f32 %v2963, %v2963
        %v3028 = vmul.f32 %v2964, %v2964
        %v3029 = vmul.f32 %v2965, %v2965
        %v3030 = vmul.f32 %v2966, %v2966
        %v3031 = vmul.f32 %v2967, %v2967
        %v3032 = vmul.f32 %v2968, %v2968
        %v3033 = vmul.f32 %v2969, %v2969
        %v3034 = vmul.f32 %v2970, %v2970
        %v3035 = vmul.f32 %v2971, %v2971
        %v3036 = vmul.f32 %v2972, %v2972
        %v3037 = vmul.f32 %v2973, %v2973
        %v3038 = vmul.f32 %v2974, %v2974
        %v3039 = vmul.f32 %v2975, %v2975
        %v3040 = vmul.f32 %v2976, %v2976
        %v3041 = vmul.f32 %v2977, %v2977
        %v3042 = vmul.f32 %v2978, %v2978
        %v3043 = vmul.f32 %v2979, %v2979
        %v3044 = vmul.f32 %v2980, %v2980
        %v3045 = vmul.f32 %v2981, %v2981
        %v3046 = vmul.f32 %v2982, %v2982
        %v3047 = vmul.f32 %v2983, %v2983
        %v3048 = vmul.f32 %v2984, %v2984
        %v3049 = vmul.f32 %v2985, %v2985
        %v3050 = vmul.f32 %v2986, %v2986
        %v3051 = vmul.f32 %v2987, %v2987
        %v3052 = vmul.f32 %v2988, %v2988
        %v3053 = vmul.f32 %v2989, %v2989
        %v3054 = vmul.f32 %v2990, %v2990
        %v3055 = vmul.f32 %v2991, %v2991
        %v3056 = vmul.f32 %v2992, %v2992
        %v3057 = vmul.f32 %v2993, %v2993
        %v3058 = vmul.f32 %v2994, %v2994
        %v3059 = vmul.f32 %v2995, %v2995
        %v3060 = vmul.f32 %v2996, %v2996
        %v3061 = vmul.f32 %v2997, %v2997
        %v3062 = vmul.f32 %v2998, %v2998
        %v3063 = vmul.f32 %v2999, %v2999
        %v3064 = vmul.f32 %v3000, %v3000
        %v3065 = vmul.f32 %v3001, %v3001
        %v3066 = vmul.f32 %v3002, %v3002
        %v3067 = vmul.f32 %v3003, %v3003
        %v3068 = vmul.f32 %v3004, %v3004
        %v3069 = vmul.f32 %v3005, %v3005
        %v3070 = vmul.f32 %v3006, %v3006
        %v3071 = vmul.f32 %v3007, %v3007
        %v3072 = vmul.f32 %v3008, %v3008
        %v3073 = vmul.f32 %v3009, %v3009
        %v3074 = vmul.f32 %v3010, %v3010
        %v3075 = vmul.f32 %v3011, %v3011
        %v3076 = vmul.f32 %v3012, %v3012
        %v3077 = vmul.f32 %v3013, %v3013
        %v3078 = vmul.f32 %v3014, %v3014
        %v3079 = vmul.f32 %v3015, %v3015
        %v3080 = vmul.f32 %v3016, %v3016
        %v3081 = vmul.f32 %v3017, %v3017
        %v3082 = vmul.f32 %v3018, %v3018
        %v3083 = vmul.f32 %v3019, %v3019
        %v3084 = vmul.f32 %v3020, %v3020
        %v3085 = vmul.f32 %v3021, %v3021
        %v3086 = vmul.f32 %v3022, %v3022
        %v3087 = vmul.f32 %v3023, %v3023
        %v3089 = vsel %vm925, %v3024, 0
        %v3092 = vsel %vm925, %v3025, 0
        %v3095 = vsel %vm925, %v3026, 0
        %v3098 = vsel %vm925, %v3027, 0
        %v3101 = vsel %vm925, %v3028, 0
        %v3104 = vsel %vm925, %v3029, 0
        %v3107 = vsel %vm925, %v3030, 0
        %v3110 = vsel %vm925, %v3031, 0
        %v3113 = vsel %vm925, %v3032, 0
        %v3116 = vsel %vm925, %v3033, 0
        %v3119 = vsel %vm925, %v3034, 0
        %v3122 = vsel %vm925, %v3035, 0
        %v3125 = vsel %vm925, %v3036, 0
        %v3128 = vsel %vm925, %v3037, 0
        %v3131 = vsel %vm925, %v3038, 0
        %v3134 = vsel %vm925, %v3039, 0
        %v3137 = vsel %vm925, %v3040, 0
        %v3140 = vsel %vm925, %v3041, 0
        %v3143 = vsel %vm925, %v3042, 0
        %v3146 = vsel %vm925, %v3043, 0
        %v3149 = vsel %vm925, %v3044, 0
        %v3152 = vsel %vm925, %v3045, 0
        %v3155 = vsel %vm925, %v3046, 0
        %v3158 = vsel %vm925, %v3047, 0
        %v3161 = vsel %vm925, %v3048, 0
        %v3164 = vsel %vm925, %v3049, 0
        %v3167 = vsel %vm925, %v3050, 0
        %v3170 = vsel %vm925, %v3051, 0
        %v3173 = vsel %vm925, %v3052, 0
        %v3176 = vsel %vm925, %v3053, 0
        %v3179 = vsel %vm925, %v3054, 0
        %v3182 = vsel %vm925, %v3055, 0
        %v3185 = vsel %vm925, %v3056, 0
        %v3188 = vsel %vm925, %v3057, 0
        %v3191 = vsel %vm925, %v3058, 0
        %v3194 = vsel %vm925, %v3059, 0
        %v3197 = vsel %vm925, %v3060, 0
        %v3200 = vsel %vm925, %v3061, 0
        %v3203 = vsel %vm925, %v3062, 0
        %v3206 = vsel %vm925, %v3063, 0
        %v3209 = vsel %vm925, %v3064, 0
        %v3212 = vsel %vm925, %v3065, 0
        %v3215 = vsel %vm925, %v3066, 0
        %v3218 = vsel %vm925, %v3067, 0
        %v3221 = vsel %vm925, %v3068, 0
        %v3224 = vsel %vm925, %v3069, 0
        %v3227 = vsel %vm925, %v3070, 0
        %v3230 = vsel %vm925, %v3071, 0
        %v3233 = vsel %vm925, %v3072, 0
        %v3236 = vsel %vm925, %v3073, 0
        %v3239 = vsel %vm925, %v3074, 0
        %v3242 = vsel %vm925, %v3075, 0
        %v3245 = vsel %vm925, %v3076, 0
        %v3248 = vsel %vm925, %v3077, 0
        %v3251 = vsel %vm925, %v3078, 0
        %v3254 = vsel %vm925, %v3079, 0
        %v3257 = vsel %vm925, %v3080, 0
        %v3260 = vsel %vm925, %v3081, 0
        %v3263 = vsel %vm925, %v3082, 0
        %v3266 = vsel %vm925, %v3083, 0
        %v3269 = vsel %vm925, %v3084, 0
        %v3272 = vsel %vm925, %v3085, 0
        %v3275 = vsel %vm925, %v3086, 0
        %v3278 = vsel %vm925, %v3087, 0
        %3280 = vmatprep.subr.mxu0 0.0
        %v3281 = vand.u32 %v3089, 4294901760
        %3282 = vmatpush1.xpose.msra.mxu0 %v3281
        %3283 = vmatprep.subr.mxu0 0.0
        %v3284 = vand.u32 %v3092, 4294901760
        %3285 = vmatpush1.xpose.msra.mxu0 %v3284
        %3286 = vmatprep.subr.mxu0 0.0
        %v3287 = vand.u32 %v3095, 4294901760
        %3288 = vmatpush1.xpose.msra.mxu0 %v3287
        %3289 = vmatprep.subr.mxu0 0.0
        %v3290 = vand.u32 %v3098, 4294901760
        %3291 = vmatpush1.xpose.msra.mxu0 %v3290
        %3292 = vmatprep.subr.mxu0 0.0
        %v3293 = vand.u32 %v3101, 4294901760
        %3294 = vmatpush1.xpose.msra.mxu0 %v3293
        %3295 = vmatprep.subr.mxu0 0.0
        %v3296 = vand.u32 %v3104, 4294901760
        %3297 = vmatpush1.xpose.msra.mxu0 %v3296
        %3298 = vmatprep.subr.mxu0 0.0
        %v3299 = vand.u32 %v3107, 4294901760
        %3300 = vmatpush1.xpose.msra.mxu0 %v3299
        %3301 = vmatprep.subr.mxu0 0.0
        %v3302 = vand.u32 %v3110, 4294901760
        %3303 = vmatpush1.xpose.msra.mxu0 %v3302
        %3304 = vmatprep.subr.mxu0 0.0
        %v3305 = vand.u32 %v3113, 4294901760
        %3306 = vmatpush1.xpose.msra.mxu0 %v3305
        %3307 = vmatprep.subr.mxu0 0.0
        %v3308 = vand.u32 %v3116, 4294901760
        %3309 = vmatpush1.xpose.msra.mxu0 %v3308
        %3310 = vmatprep.subr.mxu0 0.0
        %v3311 = vand.u32 %v3119, 4294901760
        %3312 = vmatpush1.xpose.msra.mxu0 %v3311
        %3313 = vmatprep.subr.mxu0 0.0
        %v3314 = vand.u32 %v3122, 4294901760
        %3315 = vmatpush1.xpose.msra.mxu0 %v3314
        %3316 = vmatprep.subr.mxu0 0.0
        %v3317 = vand.u32 %v3125, 4294901760
        %3318 = vmatpush1.xpose.msra.mxu0 %v3317
        %3319 = vmatprep.subr.mxu0 0.0
        %v3320 = vand.u32 %v3128, 4294901760
        %3321 = vmatpush1.xpose.msra.mxu0 %v3320
        %3322 = vmatprep.subr.mxu0 0.0
        %v3323 = vand.u32 %v3131, 4294901760
        %3324 = vmatpush1.xpose.msra.mxu0 %v3323
        %3325 = vmatprep.subr.mxu0 0.0
        %v3326 = vand.u32 %v3134, 4294901760
        %3327 = vmatpush1.xpose.msra.mxu0 %v3326
        %3328 = vmatprep.subr.mxu0 0.0
        %v3329 = vand.u32 %v3137, 4294901760
        %3330 = vmatpush1.xpose.msra.mxu0 %v3329
        %3331 = vmatprep.subr.mxu0 0.0
        %v3332 = vand.u32 %v3140, 4294901760
        %3333 = vmatpush1.xpose.msra.mxu0 %v3332
        %3334 = vmatprep.subr.mxu0 0.0
        %v3335 = vand.u32 %v3143, 4294901760
        %3336 = vmatpush1.xpose.msra.mxu0 %v3335
        %3337 = vmatprep.subr.mxu0 0.0
        %v3338 = vand.u32 %v3146, 4294901760
        %3339 = vmatpush1.xpose.msra.mxu0 %v3338
        %3340 = vmatprep.subr.mxu0 0.0
        %v3341 = vand.u32 %v3149, 4294901760
        %3342 = vmatpush1.xpose.msra.mxu0 %v3341
        %3343 = vmatprep.subr.mxu0 0.0
        %v3344 = vand.u32 %v3152, 4294901760
        %3345 = vmatpush1.xpose.msra.mxu0 %v3344
        %3346 = vmatprep.subr.mxu0 0.0
        %v3347 = vand.u32 %v3155, 4294901760
        %3348 = vmatpush1.xpose.msra.mxu0 %v3347
        %3349 = vmatprep.subr.mxu0 0.0
        %v3350 = vand.u32 %v3158, 4294901760
        %3351 = vmatpush1.xpose.msra.mxu0 %v3350
        %3352 = vmatprep.subr.mxu0 0.0
        %v3353 = vand.u32 %v3161, 4294901760
        %3354 = vmatpush1.xpose.msra.mxu0 %v3353
        %3355 = vmatprep.subr.mxu0 0.0
        %v3356 = vand.u32 %v3164, 4294901760
        %3357 = vmatpush1.xpose.msra.mxu0 %v3356
        %3358 = vmatprep.subr.mxu0 0.0
        %v3359 = vand.u32 %v3167, 4294901760
        %3360 = vmatpush1.xpose.msra.mxu0 %v3359
        %3361 = vmatprep.subr.mxu0 0.0
        %v3362 = vand.u32 %v3170, 4294901760
        %3363 = vmatpush1.xpose.msra.mxu0 %v3362
        %3364 = vmatprep.subr.mxu0 0.0
        %v3365 = vand.u32 %v3173, 4294901760
        %3366 = vmatpush1.xpose.msra.mxu0 %v3365
        %3367 = vmatprep.subr.mxu0 0.0
        %v3368 = vand.u32 %v3176, 4294901760
        %3369 = vmatpush1.xpose.msra.mxu0 %v3368
        %3370 = vmatprep.subr.mxu0 0.0
        %v3371 = vand.u32 %v3179, 4294901760
        %3372 = vmatpush1.xpose.msra.mxu0 %v3371
        %3373 = vmatprep.subr.mxu0 0.0
        %v3374 = vand.u32 %v3182, 4294901760
        %3375 = vmatpush1.xpose.msra.mxu0 %v3374
        %3376 = vmatprep.mubr.f32.mxu0 0.0
        %v3377 = vand.u32 %v927, 4294901760
        %v3378 = vsub.f32 %v927, %v3377
        %v3379 = vand.u32 %v3378, 4294901760
        %v3380 = vsub.f32 %v3378, %v3379
        %v3381 = vand.u32 %v3380, 4294901760
        %3382 = vmatmul.mubr.f32.gmra.mrb[0].mxu0 %v3381
        %v3383 = vpop.f32.mrb[0].mxu0
        %v3384 = vadd.f32 0.0, %v3383
        %v3385 = vpop.f32.mrb[0].mxu0
        %v3386 = vadd.f32 0.0, %v3385
        %3387 = vdwg.mxu0
        %3388 = vmatprep.subr.mxu0 0.0
        %v3389 = vand.u32 %v3089, 4294901760
        %v3390 = vsub.f32 %v3089, %v3389
        %v3391 = vand.u32 %v3390, 4294901760
        %v3392 = vsub.f32 %v3390, %v3391
        %v3393 = vand.u32 %v3392, 4294901760
        %3394 = vmatpush1.xpose.msra.mxu0 %v3393
        %3395 = vmatprep.subr.mxu0 0.0
        %v3396 = vand.u32 %v3092, 4294901760
        %v3397 = vsub.f32 %v3092, %v3396
        %v3398 = vand.u32 %v3397, 4294901760
        %v3399 = vsub.f32 %v3397, %v3398
        %v3400 = vand.u32 %v3399, 4294901760
        %3401 = vmatpush1.xpose.msra.mxu0 %v3400
        %3402 = vmatprep.subr.mxu0 0.0
        %v3403 = vand.u32 %v3095, 4294901760
        %v3404 = vsub.f32 %v3095, %v3403
        %v3405 = vand.u32 %v3404, 4294901760
        %v3406 = vsub.f32 %v3404, %v3405
        %v3407 = vand.u32 %v3406, 4294901760
        %3408 = vmatpush1.xpose.msra.mxu0 %v3407
        %3409 = vmatprep.subr.mxu0 0.0
        %v3410 = vand.u32 %v3098, 4294901760
        %v3411 = vsub.f32 %v3098, %v3410
        %v3412 = vand.u32 %v3411, 4294901760
        %v3413 = vsub.f32 %v3411, %v3412
        %v3414 = vand.u32 %v3413, 4294901760
        %3415 = vmatpush1.xpose.msra.mxu0 %v3414
        %3416 = vmatprep.subr.mxu0 0.0
        %v3417 = vand.u32 %v3101, 4294901760
        %v3418 = vsub.f32 %v3101, %v3417
        %v3419 = vand.u32 %v3418, 4294901760
        %v3420 = vsub.f32 %v3418, %v3419
        %v3421 = vand.u32 %v3420, 4294901760
        %3422 = vmatpush1.xpose.msra.mxu0 %v3421
        %3423 = vmatprep.subr.mxu0 0.0
        %v3424 = vand.u32 %v3104, 4294901760
        %v3425 = vsub.f32 %v3104, %v3424
        %v3426 = vand.u32 %v3425, 4294901760
        %v3427 = vsub.f32 %v3425, %v3426
        %v3428 = vand.u32 %v3427, 4294901760
        %3429 = vmatpush1.xpose.msra.mxu0 %v3428
        %3430 = vmatprep.subr.mxu0 0.0
        %v3431 = vand.u32 %v3107, 4294901760
        %v3432 = vsub.f32 %v3107, %v3431
        %v3433 = vand.u32 %v3432, 4294901760
        %v3434 = vsub.f32 %v3432, %v3433
        %v3435 = vand.u32 %v3434, 4294901760
        %3436 = vmatpush1.xpose.msra.mxu0 %v3435
        %3437 = vmatprep.subr.mxu0 0.0
        %v3438 = vand.u32 %v3110, 4294901760
        %v3439 = vsub.f32 %v3110, %v3438
        %v3440 = vand.u32 %v3439, 4294901760
        %v3441 = vsub.f32 %v3439, %v3440
        %v3442 = vand.u32 %v3441, 4294901760
        %3443 = vmatpush1.xpose.msra.mxu0 %v3442
        %3444 = vmatprep.subr.mxu0 0.0
        %v3445 = vand.u32 %v3113, 4294901760
        %v3446 = vsub.f32 %v3113, %v3445
        %v3447 = vand.u32 %v3446, 4294901760
        %v3448 = vsub.f32 %v3446, %v3447
        %v3449 = vand.u32 %v3448, 4294901760
        %3450 = vmatpush1.xpose.msra.mxu0 %v3449
        %3451 = vmatprep.subr.mxu0 0.0
        %v3452 = vand.u32 %v3116, 4294901760
        %v3453 = vsub.f32 %v3116, %v3452
        %v3454 = vand.u32 %v3453, 4294901760
        %v3455 = vsub.f32 %v3453, %v3454
        %v3456 = vand.u32 %v3455, 4294901760
        %3457 = vmatpush1.xpose.msra.mxu0 %v3456
        %3458 = vmatprep.subr.mxu0 0.0
        %v3459 = vand.u32 %v3119, 4294901760
        %v3460 = vsub.f32 %v3119, %v3459
        %v3461 = vand.u32 %v3460, 4294901760
        %v3462 = vsub.f32 %v3460, %v3461
        %v3463 = vand.u32 %v3462, 4294901760
        %3464 = vmatpush1.xpose.msra.mxu0 %v3463
        %3465 = vmatprep.subr.mxu0 0.0
        %v3466 = vand.u32 %v3122, 4294901760
        %v3467 = vsub.f32 %v3122, %v3466
        %v3468 = vand.u32 %v3467, 4294901760
        %v3469 = vsub.f32 %v3467, %v3468
        %v3470 = vand.u32 %v3469, 4294901760
        %3471 = vmatpush1.xpose.msra.mxu0 %v3470
        %3472 = vmatprep.subr.mxu0 0.0
        %v3473 = vand.u32 %v3125, 4294901760
        %v3474 = vsub.f32 %v3125, %v3473
        %v3475 = vand.u32 %v3474, 4294901760
        %v3476 = vsub.f32 %v3474, %v3475
        %v3477 = vand.u32 %v3476, 4294901760
        %3478 = vmatpush1.xpose.msra.mxu0 %v3477
        %3479 = vmatprep.subr.mxu0 0.0
        %v3480 = vand.u32 %v3128, 4294901760
        %v3481 = vsub.f32 %v3128, %v3480
        %v3482 = vand.u32 %v3481, 4294901760
        %v3483 = vsub.f32 %v3481, %v3482
        %v3484 = vand.u32 %v3483, 4294901760
        %3485 = vmatpush1.xpose.msra.mxu0 %v3484
        %3486 = vmatprep.subr.mxu0 0.0
        %v3487 = vand.u32 %v3131, 4294901760
        %v3488 = vsub.f32 %v3131, %v3487
        %v3489 = vand.u32 %v3488, 4294901760
        %v3490 = vsub.f32 %v3488, %v3489
        %v3491 = vand.u32 %v3490, 4294901760
        %3492 = vmatpush1.xpose.msra.mxu0 %v3491
        %3493 = vmatprep.subr.mxu0 0.0
        %v3494 = vand.u32 %v3134, 4294901760
        %v3495 = vsub.f32 %v3134, %v3494
        %v3496 = vand.u32 %v3495, 4294901760
        %v3497 = vsub.f32 %v3495, %v3496
        %v3498 = vand.u32 %v3497, 4294901760
        %3499 = vmatpush1.xpose.msra.mxu0 %v3498
        %3500 = vmatprep.subr.mxu0 0.0
        %v3501 = vand.u32 %v3137, 4294901760
        %v3502 = vsub.f32 %v3137, %v3501
        %v3503 = vand.u32 %v3502, 4294901760
        %v3504 = vsub.f32 %v3502, %v3503
        %v3505 = vand.u32 %v3504, 4294901760
        %3506 = vmatpush1.xpose.msra.mxu0 %v3505
        %3507 = vmatprep.subr.mxu0 0.0
        %v3508 = vand.u32 %v3140, 4294901760
        %v3509 = vsub.f32 %v3140, %v3508
        %v3510 = vand.u32 %v3509, 4294901760
        %v3511 = vsub.f32 %v3509, %v3510
        %v3512 = vand.u32 %v3511, 4294901760
        %3513 = vmatpush1.xpose.msra.mxu0 %v3512
        %3514 = vmatprep.subr.mxu0 0.0
        %v3515 = vand.u32 %v3143, 4294901760
        %v3516 = vsub.f32 %v3143, %v3515
        %v3517 = vand.u32 %v3516, 4294901760
        %v3518 = vsub.f32 %v3516, %v3517
        %v3519 = vand.u32 %v3518, 4294901760
        %3520 = vmatpush1.xpose.msra.mxu0 %v3519
        %3521 = vmatprep.subr.mxu0 0.0
        %v3522 = vand.u32 %v3146, 4294901760
        %v3523 = vsub.f32 %v3146, %v3522
        %v3524 = vand.u32 %v3523, 4294901760
        %v3525 = vsub.f32 %v3523, %v3524
        %v3526 = vand.u32 %v3525, 4294901760
        %3527 = vmatpush1.xpose.msra.mxu0 %v3526
        %3528 = vmatprep.subr.mxu0 0.0
        %v3529 = vand.u32 %v3149, 4294901760
        %v3530 = vsub.f32 %v3149, %v3529
        %v3531 = vand.u32 %v3530, 4294901760
        %v3532 = vsub.f32 %v3530, %v3531
        %v3533 = vand.u32 %v3532, 4294901760
        %3534 = vmatpush1.xpose.msra.mxu0 %v3533
        %3535 = vmatprep.subr.mxu0 0.0
        %v3536 = vand.u32 %v3152, 4294901760
        %v3537 = vsub.f32 %v3152, %v3536
        %v3538 = vand.u32 %v3537, 4294901760
        %v3539 = vsub.f32 %v3537, %v3538
        %v3540 = vand.u32 %v3539, 4294901760
        %3541 = vmatpush1.xpose.msra.mxu0 %v3540
        %3542 = vmatprep.subr.mxu0 0.0
        %v3543 = vand.u32 %v3155, 4294901760
        %v3544 = vsub.f32 %v3155, %v3543
        %v3545 = vand.u32 %v3544, 4294901760
        %v3546 = vsub.f32 %v3544, %v3545
        %v3547 = vand.u32 %v3546, 4294901760
        %3548 = vmatpush1.xpose.msra.mxu0 %v3547
        %3549 = vmatprep.subr.mxu0 0.0
        %v3550 = vand.u32 %v3158, 4294901760
        %v3551 = vsub.f32 %v3158, %v3550
        %v3552 = vand.u32 %v3551, 4294901760
        %v3553 = vsub.f32 %v3551, %v3552
        %v3554 = vand.u32 %v3553, 4294901760
        %3555 = vmatpush1.xpose.msra.mxu0 %v3554
        %3556 = vmatprep.subr.mxu0 0.0
        %v3557 = vand.u32 %v3161, 4294901760
        %v3558 = vsub.f32 %v3161, %v3557
        %v3559 = vand.u32 %v3558, 4294901760
        %v3560 = vsub.f32 %v3558, %v3559
        %v3561 = vand.u32 %v3560, 4294901760
        %3562 = vmatpush1.xpose.msra.mxu0 %v3561
        %3563 = vmatprep.subr.mxu0 0.0
        %v3564 = vand.u32 %v3164, 4294901760
        %v3565 = vsub.f32 %v3164, %v3564
        %v3566 = vand.u32 %v3565, 4294901760
        %v3567 = vsub.f32 %v3565, %v3566
        %v3568 = vand.u32 %v3567, 4294901760
        %3569 = vmatpush1.xpose.msra.mxu0 %v3568
        %3570 = vmatprep.subr.mxu0 0.0
        %v3571 = vand.u32 %v3167, 4294901760
        %v3572 = vsub.f32 %v3167, %v3571
        %v3573 = vand.u32 %v3572, 4294901760
        %v3574 = vsub.f32 %v3572, %v3573
        %v3575 = vand.u32 %v3574, 4294901760
        %3576 = vmatpush1.xpose.msra.mxu0 %v3575
        %3577 = vmatprep.subr.mxu0 0.0
        %v3578 = vand.u32 %v3170, 4294901760
        %v3579 = vsub.f32 %v3170, %v3578
        %v3580 = vand.u32 %v3579, 4294901760
        %v3581 = vsub.f32 %v3579, %v3580
        %v3582 = vand.u32 %v3581, 4294901760
        %3583 = vmatpush1.xpose.msra.mxu0 %v3582
        %3584 = vmatprep.subr.mxu0 0.0
        %v3585 = vand.u32 %v3173, 4294901760
        %v3586 = vsub.f32 %v3173, %v3585
        %v3587 = vand.u32 %v3586, 4294901760
        %v3588 = vsub.f32 %v3586, %v3587
        %v3589 = vand.u32 %v3588, 4294901760
        %3590 = vmatpush1.xpose.msra.mxu0 %v3589
        %3591 = vmatprep.subr.mxu0 0.0
        %v3592 = vand.u32 %v3176, 4294901760
        %v3593 = vsub.f32 %v3176, %v3592
        %v3594 = vand.u32 %v3593, 4294901760
        %v3595 = vsub.f32 %v3593, %v3594
        %v3596 = vand.u32 %v3595, 4294901760
        %3597 = vmatpush1.xpose.msra.mxu0 %v3596
        %3598 = vmatprep.subr.mxu0 0.0
        %v3599 = vand.u32 %v3179, 4294901760
        %v3600 = vsub.f32 %v3179, %v3599
        %v3601 = vand.u32 %v3600, 4294901760
        %v3602 = vsub.f32 %v3600, %v3601
        %v3603 = vand.u32 %v3602, 4294901760
        %3604 = vmatpush1.xpose.msra.mxu0 %v3603
        %3605 = vmatprep.subr.mxu0 0.0
        %v3606 = vand.u32 %v3182, 4294901760
        %v3607 = vsub.f32 %v3182, %v3606
        %v3608 = vand.u32 %v3607, 4294901760
        %v3609 = vsub.f32 %v3607, %v3608
        %v3610 = vand.u32 %v3609, 4294901760
        %3611 = vmatpush1.xpose.msra.mxu0 %v3610
        %3612 = vmatprep.mubr.f32.mxu0 0.0
        %v3613 = vand.u32 %v927, 4294901760
        %3614 = vmatmul.mubr.f32.gmra.mrb[0].mxu0 %v3613
        %v3615 = vpop.f32.mrb[0].mxu0
        %v3616 = vadd.f32 %v3384, %v3615
        %v3617 = vpop.f32.mrb[0].mxu0
        %v3618 = vadd.f32 %v3386, %v3617
        %3619 = vdwg.mxu0
        %3620 = vmatprep.subr.mxu0 0.0
        %v3621 = vand.u32 %v3089, 4294901760
        %v3622 = vsub.f32 %v3089, %v3621
        %3623 = vmatpush1.xpose.msra.mxu0 %v3622
        %3624 = vmatprep.subr.mxu0 0.0
        %v3625 = vand.u32 %v3092, 4294901760
        %v3626 = vsub.f32 %v3092, %v3625
        %3627 = vmatpush1.xpose.msra.mxu0 %v3626
        %3628 = vmatprep.subr.mxu0 0.0
        %v3629 = vand.u32 %v3095, 4294901760
        %v3630 = vsub.f32 %v3095, %v3629
        %3631 = vmatpush1.xpose.msra.mxu0 %v3630
        %3632 = vmatprep.subr.mxu0 0.0
        %v3633 = vand.u32 %v3098, 4294901760
        %v3634 = vsub.f32 %v3098, %v3633
        %3635 = vmatpush1.xpose.msra.mxu0 %v3634
        %3636 = vmatprep.subr.mxu0 0.0
        %v3637 = vand.u32 %v3101, 4294901760
        %v3638 = vsub.f32 %v3101, %v3637
        %3639 = vmatpush1.xpose.msra.mxu0 %v3638
        %3640 = vmatprep.subr.mxu0 0.0
        %v3641 = vand.u32 %v3104, 4294901760
        %v3642 = vsub.f32 %v3104, %v3641
        %3643 = vmatpush1.xpose.msra.mxu0 %v3642
        %3644 = vmatprep.subr.mxu0 0.0
        %v3645 = vand.u32 %v3107, 4294901760
        %v3646 = vsub.f32 %v3107, %v3645
        %3647 = vmatpush1.xpose.msra.mxu0 %v3646
        %3648 = vmatprep.subr.mxu0 0.0
        %v3649 = vand.u32 %v3110, 4294901760
        %v3650 = vsub.f32 %v3110, %v3649
        %3651 = vmatpush1.xpose.msra.mxu0 %v3650
        %3652 = vmatprep.subr.mxu0 0.0
        %v3653 = vand.u32 %v3113, 4294901760
        %v3654 = vsub.f32 %v3113, %v3653
        %3655 = vmatpush1.xpose.msra.mxu0 %v3654
        %3656 = vmatprep.subr.mxu0 0.0
        %v3657 = vand.u32 %v3116, 4294901760
        %v3658 = vsub.f32 %v3116, %v3657
        %3659 = vmatpush1.xpose.msra.mxu0 %v3658
        %3660 = vmatprep.subr.mxu0 0.0
        %v3661 = vand.u32 %v3119, 4294901760
        %v3662 = vsub.f32 %v3119, %v3661
        %3663 = vmatpush1.xpose.msra.mxu0 %v3662
        %3664 = vmatprep.subr.mxu0 0.0
        %v3665 = vand.u32 %v3122, 4294901760
        %v3666 = vsub.f32 %v3122, %v3665
        %3667 = vmatpush1.xpose.msra.mxu0 %v3666
        %3668 = vmatprep.subr.mxu0 0.0
        %v3669 = vand.u32 %v3125, 4294901760
        %v3670 = vsub.f32 %v3125, %v3669
        %3671 = vmatpush1.xpose.msra.mxu0 %v3670
        %3672 = vmatprep.subr.mxu0 0.0
        %v3673 = vand.u32 %v3128, 4294901760
        %v3674 = vsub.f32 %v3128, %v3673
        %3675 = vmatpush1.xpose.msra.mxu0 %v3674
        %3676 = vmatprep.subr.mxu0 0.0
        %v3677 = vand.u32 %v3131, 4294901760
        %v3678 = vsub.f32 %v3131, %v3677
        %3679 = vmatpush1.xpose.msra.mxu0 %v3678
        %3680 = vmatprep.subr.mxu0 0.0
        %v3681 = vand.u32 %v3134, 4294901760
        %v3682 = vsub.f32 %v3134, %v3681
        %3683 = vmatpush1.xpose.msra.mxu0 %v3682
        %3684 = vmatprep.subr.mxu0 0.0
        %v3685 = vand.u32 %v3137, 4294901760
        %v3686 = vsub.f32 %v3137, %v3685
        %3687 = vmatpush1.xpose.msra.mxu0 %v3686
        %3688 = vmatprep.subr.mxu0 0.0
        %v3689 = vand.u32 %v3140, 4294901760
        %v3690 = vsub.f32 %v3140, %v3689
        %3691 = vmatpush1.xpose.msra.mxu0 %v3690
        %3692 = vmatprep.subr.mxu0 0.0
        %v3693 = vand.u32 %v3143, 4294901760
        %v3694 = vsub.f32 %v3143, %v3693
        %3695 = vmatpush1.xpose.msra.mxu0 %v3694
        %3696 = vmatprep.subr.mxu0 0.0
        %v3697 = vand.u32 %v3146, 4294901760
        %v3698 = vsub.f32 %v3146, %v3697
        %3699 = vmatpush1.xpose.msra.mxu0 %v3698
        %3700 = vmatprep.subr.mxu0 0.0
        %v3701 = vand.u32 %v3149, 4294901760
        %v3702 = vsub.f32 %v3149, %v3701
        %3703 = vmatpush1.xpose.msra.mxu0 %v3702
        %3704 = vmatprep.subr.mxu0 0.0
        %v3705 = vand.u32 %v3152, 4294901760
        %v3706 = vsub.f32 %v3152, %v3705
        %3707 = vmatpush1.xpose.msra.mxu0 %v3706
        %3708 = vmatprep.subr.mxu0 0.0
        %v3709 = vand.u32 %v3155, 4294901760
        %v3710 = vsub.f32 %v3155, %v3709
        %3711 = vmatpush1.xpose.msra.mxu0 %v3710
        %3712 = vmatprep.subr.mxu0 0.0
        %v3713 = vand.u32 %v3158, 4294901760
        %v3714 = vsub.f32 %v3158, %v3713
        %3715 = vmatpush1.xpose.msra.mxu0 %v3714
        %3716 = vmatprep.subr.mxu0 0.0
        %v3717 = vand.u32 %v3161, 4294901760
        %v3718 = vsub.f32 %v3161, %v3717
        %3719 = vmatpush1.xpose.msra.mxu0 %v3718
        %3720 = vmatprep.subr.mxu0 0.0
        %v3721 = vand.u32 %v3164, 4294901760
        %v3722 = vsub.f32 %v3164, %v3721
        %3723 = vmatpush1.xpose.msra.mxu0 %v3722
        %3724 = vmatprep.subr.mxu0 0.0
        %v3725 = vand.u32 %v3167, 4294901760
        %v3726 = vsub.f32 %v3167, %v3725
        %3727 = vmatpush1.xpose.msra.mxu0 %v3726
        %3728 = vmatprep.subr.mxu0 0.0
        %v3729 = vand.u32 %v3170, 4294901760
        %v3730 = vsub.f32 %v3170, %v3729
        %3731 = vmatpush1.xpose.msra.mxu0 %v3730
        %3732 = vmatprep.subr.mxu0 0.0
        %v3733 = vand.u32 %v3173, 4294901760
        %v3734 = vsub.f32 %v3173, %v3733
        %3735 = vmatpush1.xpose.msra.mxu0 %v3734
        %3736 = vmatprep.subr.mxu0 0.0
        %v3737 = vand.u32 %v3176, 4294901760
        %v3738 = vsub.f32 %v3176, %v3737
        %3739 = vmatpush1.xpose.msra.mxu0 %v3738
        %3740 = vmatprep.subr.mxu0 0.0
        %v3741 = vand.u32 %v3179, 4294901760
        %v3742 = vsub.f32 %v3179, %v3741
        %3743 = vmatpush1.xpose.msra.mxu0 %v3742
        %3744 = vmatprep.subr.mxu0 0.0
        %v3745 = vand.u32 %v3182, 4294901760
        %v3746 = vsub.f32 %v3182, %v3745
        %3747 = vmatpush1.xpose.msra.mxu0 %v3746
        %3748 = vmatprep.mubr.f32.mxu0 0.0
        %v3749 = vand.u32 %v927, 4294901760
        %v3750 = vsub.f32 %v927, %v3749
        %3751 = vmatmul.mubr.f32.gmra.mrb[0].mxu0 %v3750
        %v3752 = vpop.f32.mrb[0].mxu0
        %v3753 = vadd.f32 %v3616, %v3752
        %v3754 = vpop.f32.mrb[0].mxu0
        %v3755 = vadd.f32 %v3618, %v3754
        %3756 = vdwg.mxu0
        %3757 = vmatprep.subr.mxu0 0.0
        %v3758 = vand.u32 %v3089, 4294901760
        %3759 = vmatpush1.xpose.msra.mxu0 %v3758
        %3760 = vmatprep.subr.mxu0 0.0
        %v3761 = vand.u32 %v3092, 4294901760
        %3762 = vmatpush1.xpose.msra.mxu0 %v3761
        %3763 = vmatprep.subr.mxu0 0.0
        %v3764 = vand.u32 %v3095, 4294901760
        %3765 = vmatpush1.xpose.msra.mxu0 %v3764
        %3766 = vmatprep.subr.mxu0 0.0
        %v3767 = vand.u32 %v3098, 4294901760
        %3768 = vmatpush1.xpose.msra.mxu0 %v3767
        %3769 = vmatprep.subr.mxu0 0.0
        %v3770 = vand.u32 %v3101, 4294901760
        %3771 = vmatpush1.xpose.msra.mxu0 %v3770
        %3772 = vmatprep.subr.mxu0 0.0
        %v3773 = vand.u32 %v3104, 4294901760
        %3774 = vmatpush1.xpose.msra.mxu0 %v3773
        %3775 = vmatprep.subr.mxu0 0.0
        %v3776 = vand.u32 %v3107, 4294901760
        %3777 = vmatpush1.xpose.msra.mxu0 %v3776
        %3778 = vmatprep.subr.mxu0 0.0
        %v3779 = vand.u32 %v3110, 4294901760
        %3780 = vmatpush1.xpose.msra.mxu0 %v3779
        %3781 = vmatprep.subr.mxu0 0.0
        %v3782 = vand.u32 %v3113, 4294901760
        %3783 = vmatpush1.xpose.msra.mxu0 %v3782
        %3784 = vmatprep.subr.mxu0 0.0
        %v3785 = vand.u32 %v3116, 4294901760
        %3786 = vmatpush1.xpose.msra.mxu0 %v3785
        %3787 = vmatprep.subr.mxu0 0.0
        %v3788 = vand.u32 %v3119, 4294901760
        %3789 = vmatpush1.xpose.msra.mxu0 %v3788
        %3790 = vmatprep.subr.mxu0 0.0
        %v3791 = vand.u32 %v3122, 4294901760
        %3792 = vmatpush1.xpose.msra.mxu0 %v3791
        %3793 = vmatprep.subr.mxu0 0.0
        %v3794 = vand.u32 %v3125, 4294901760
        %3795 = vmatpush1.xpose.msra.mxu0 %v3794
        %3796 = vmatprep.subr.mxu0 0.0
        %v3797 = vand.u32 %v3128, 4294901760
        %3798 = vmatpush1.xpose.msra.mxu0 %v3797
        %3799 = vmatprep.subr.mxu0 0.0
        %v3800 = vand.u32 %v3131, 4294901760
        %3801 = vmatpush1.xpose.msra.mxu0 %v3800
        %3802 = vmatprep.subr.mxu0 0.0
        %v3803 = vand.u32 %v3134, 4294901760
        %3804 = vmatpush1.xpose.msra.mxu0 %v3803
        %3805 = vmatprep.subr.mxu0 0.0
        %v3806 = vand.u32 %v3137, 4294901760
        %3807 = vmatpush1.xpose.msra.mxu0 %v3806
        %3808 = vmatprep.subr.mxu0 0.0
        %v3809 = vand.u32 %v3140, 4294901760
        %3810 = vmatpush1.xpose.msra.mxu0 %v3809
        %3811 = vmatprep.subr.mxu0 0.0
        %v3812 = vand.u32 %v3143, 4294901760
        %3813 = vmatpush1.xpose.msra.mxu0 %v3812
        %3814 = vmatprep.subr.mxu0 0.0
        %v3815 = vand.u32 %v3146, 4294901760
        %3816 = vmatpush1.xpose.msra.mxu0 %v3815
        %3817 = vmatprep.subr.mxu0 0.0
        %v3818 = vand.u32 %v3149, 4294901760
        %3819 = vmatpush1.xpose.msra.mxu0 %v3818
        %3820 = vmatprep.subr.mxu0 0.0
        %v3821 = vand.u32 %v3152, 4294901760
        %3822 = vmatpush1.xpose.msra.mxu0 %v3821
        %3823 = vmatprep.subr.mxu0 0.0
        %v3824 = vand.u32 %v3155, 4294901760
        %3825 = vmatpush1.xpose.msra.mxu0 %v3824
        %3826 = vmatprep.subr.mxu0 0.0
        %v3827 = vand.u32 %v3158, 4294901760
        %3828 = vmatpush1.xpose.msra.mxu0 %v3827
        %3829 = vmatprep.subr.mxu0 0.0
        %v3830 = vand.u32 %v3161, 4294901760
        %3831 = vmatpush1.xpose.msra.mxu0 %v3830
        %3832 = vmatprep.subr.mxu0 0.0
        %v3833 = vand.u32 %v3164, 4294901760
        %3834 = vmatpush1.xpose.msra.mxu0 %v3833
        %3835 = vmatprep.subr.mxu0 0.0
        %v3836 = vand.u32 %v3167, 4294901760
        %3837 = vmatpush1.xpose.msra.mxu0 %v3836
        %3838 = vmatprep.subr.mxu0 0.0
        %v3839 = vand.u32 %v3170, 4294901760
        %3840 = vmatpush1.xpose.msra.mxu0 %v3839
        %3841 = vmatprep.subr.mxu0 0.0
        %v3842 = vand.u32 %v3173, 4294901760
        %3843 = vmatpush1.xpose.msra.mxu0 %v3842
        %3844 = vmatprep.subr.mxu0 0.0
        %v3845 = vand.u32 %v3176, 4294901760
        %3846 = vmatpush1.xpose.msra.mxu0 %v3845
        %3847 = vmatprep.subr.mxu0 0.0
        %v3848 = vand.u32 %v3179, 4294901760
        %3849 = vmatpush1.xpose.msra.mxu0 %v3848
        %3850 = vmatprep.subr.mxu0 0.0
        %v3851 = vand.u32 %v3182, 4294901760
        %3852 = vmatpush1.xpose.msra.mxu0 %v3851
        %3853 = vmatprep.mubr.f32.mxu0 0.0
        %v3854 = vand.u32 %v927, 4294901760
        %v3855 = vsub.f32 %v927, %v3854
        %v3856 = vand.u32 %v3855, 4294901760
        %3857 = vmatmul.mubr.f32.gmra.mrb[0].mxu0 %v3856
        %v3858 = vpop.f32.mrb[0].mxu0
        %v3859 = vadd.f32 %v3753, %v3858
        %v3860 = vpop.f32.mrb[0].mxu0
        %v3861 = vadd.f32 %v3755, %v3860
        %3862 = vdwg.mxu0
        %3863 = vmatprep.subr.mxu0 0.0
        %v3864 = vand.u32 %v3089, 4294901760
        %v3865 = vsub.f32 %v3089, %v3864
        %v3866 = vand.u32 %v3865, 4294901760
        %3867 = vmatpush1.xpose.msra.mxu0 %v3866
        %3868 = vmatprep.subr.mxu0 0.0
        %v3869 = vand.u32 %v3092, 4294901760
        %v3870 = vsub.f32 %v3092, %v3869
        %v3871 = vand.u32 %v3870, 4294901760
        %3872 = vmatpush1.xpose.msra.mxu0 %v3871
        %3873 = vmatprep.subr.mxu0 0.0
        %v3874 = vand.u32 %v3095, 4294901760
        %v3875 = vsub.f32 %v3095, %v3874
        %v3876 = vand.u32 %v3875, 4294901760
        %3877 = vmatpush1.xpose.msra.mxu0 %v3876
        %3878 = vmatprep.subr.mxu0 0.0
        %v3879 = vand.u32 %v3098, 4294901760
        %v3880 = vsub.f32 %v3098, %v3879
        %v3881 = vand.u32 %v3880, 4294901760
        %3882 = vmatpush1.xpose.msra.mxu0 %v3881
        %3883 = vmatprep.subr.mxu0 0.0
        %v3884 = vand.u32 %v3101, 4294901760
        %v3885 = vsub.f32 %v3101, %v3884
        %v3886 = vand.u32 %v3885, 4294901760
        %3887 = vmatpush1.xpose.msra.mxu0 %v3886
        %3888 = vmatprep.subr.mxu0 0.0
        %v3889 = vand.u32 %v3104, 4294901760
        %v3890 = vsub.f32 %v3104, %v3889
        %v3891 = vand.u32 %v3890, 4294901760
        %3892 = vmatpush1.xpose.msra.mxu0 %v3891
        %3893 = vmatprep.subr.mxu0 0.0
        %v3894 = vand.u32 %v3107, 4294901760
        %v3895 = vsub.f32 %v3107, %v3894
        %v3896 = vand.u32 %v3895, 4294901760
        %3897 = vmatpush1.xpose.msra.mxu0 %v3896
        %3898 = vmatprep.subr.mxu0 0.0
        %v3899 = vand.u32 %v3110, 4294901760
        %v3900 = vsub.f32 %v3110, %v3899
        %v3901 = vand.u32 %v3900, 4294901760
        %3902 = vmatpush1.xpose.msra.mxu0 %v3901
        %3903 = vmatprep.subr.mxu0 0.0
        %v3904 = vand.u32 %v3113, 4294901760
        %v3905 = vsub.f32 %v3113, %v3904
        %v3906 = vand.u32 %v3905, 4294901760
        %3907 = vmatpush1.xpose.msra.mxu0 %v3906
        %3908 = vmatprep.subr.mxu0 0.0
        %v3909 = vand.u32 %v3116, 4294901760
        %v3910 = vsub.f32 %v3116, %v3909
        %v3911 = vand.u32 %v3910, 4294901760
        %3912 = vmatpush1.xpose.msra.mxu0 %v3911
        %3913 = vmatprep.subr.mxu0 0.0
        %v3914 = vand.u32 %v3119, 4294901760
        %v3915 = vsub.f32 %v3119, %v3914
        %v3916 = vand.u32 %v3915, 4294901760
        %3917 = vmatpush1.xpose.msra.mxu0 %v3916
        %3918 = vmatprep.subr.mxu0 0.0
        %v3919 = vand.u32 %v3122, 4294901760
        %v3920 = vsub.f32 %v3122, %v3919
        %v3921 = vand.u32 %v3920, 4294901760
        %3922 = vmatpush1.xpose.msra.mxu0 %v3921
        %3923 = vmatprep.subr.mxu0 0.0
        %v3924 = vand.u32 %v3125, 4294901760
        %v3925 = vsub.f32 %v3125, %v3924
        %v3926 = vand.u32 %v3925, 4294901760
        %3927 = vmatpush1.xpose.msra.mxu0 %v3926
        %3928 = vmatprep.subr.mxu0 0.0
        %v3929 = vand.u32 %v3128, 4294901760
        %v3930 = vsub.f32 %v3128, %v3929
        %v3931 = vand.u32 %v3930, 4294901760
        %3932 = vmatpush1.xpose.msra.mxu0 %v3931
        %3933 = vmatprep.subr.mxu0 0.0
        %v3934 = vand.u32 %v3131, 4294901760
        %v3935 = vsub.f32 %v3131, %v3934
        %v3936 = vand.u32 %v3935, 4294901760
        %3937 = vmatpush1.xpose.msra.mxu0 %v3936
        %3938 = vmatprep.subr.mxu0 0.0
        %v3939 = vand.u32 %v3134, 4294901760
        %v3940 = vsub.f32 %v3134, %v3939
        %v3941 = vand.u32 %v3940, 4294901760
        %3942 = vmatpush1.xpose.msra.mxu0 %v3941
        %3943 = vmatprep.subr.mxu0 0.0
        %v3944 = vand.u32 %v3137, 4294901760
        %v3945 = vsub.f32 %v3137, %v3944
        %v3946 = vand.u32 %v3945, 4294901760
        %3947 = vmatpush1.xpose.msra.mxu0 %v3946
        %3948 = vmatprep.subr.mxu0 0.0
        %v3949 = vand.u32 %v3140, 4294901760
        %v3950 = vsub.f32 %v3140, %v3949
        %v3951 = vand.u32 %v3950, 4294901760
        %3952 = vmatpush1.xpose.msra.mxu0 %v3951
        %3953 = vmatprep.subr.mxu0 0.0
        %v3954 = vand.u32 %v3143, 4294901760
        %v3955 = vsub.f32 %v3143, %v3954
        %v3956 = vand.u32 %v3955, 4294901760
        %3957 = vmatpush1.xpose.msra.mxu0 %v3956
        %3958 = vmatprep.subr.mxu0 0.0
        %v3959 = vand.u32 %v3146, 4294901760
        %v3960 = vsub.f32 %v3146, %v3959
        %v3961 = vand.u32 %v3960, 4294901760
        %3962 = vmatpush1.xpose.msra.mxu0 %v3961
        %3963 = vmatprep.subr.mxu0 0.0
        %v3964 = vand.u32 %v3149, 4294901760
        %v3965 = vsub.f32 %v3149, %v3964
        %v3966 = vand.u32 %v3965, 4294901760
        %3967 = vmatpush1.xpose.msra.mxu0 %v3966
        %3968 = vmatprep.subr.mxu0 0.0
        %v3969 = vand.u32 %v3152, 4294901760
        %v3970 = vsub.f32 %v3152, %v3969
        %v3971 = vand.u32 %v3970, 4294901760
        %3972 = vmatpush1.xpose.msra.mxu0 %v3971
        %3973 = vmatprep.subr.mxu0 0.0
        %v3974 = vand.u32 %v3155, 4294901760
        %v3975 = vsub.f32 %v3155, %v3974
        %v3976 = vand.u32 %v3975, 4294901760
        %3977 = vmatpush1.xpose.msra.mxu0 %v3976
        %3978 = vmatprep.subr.mxu0 0.0
        %v3979 = vand.u32 %v3158, 4294901760
        %v3980 = vsub.f32 %v3158, %v3979
        %v3981 = vand.u32 %v3980, 4294901760
        %3982 = vmatpush1.xpose.msra.mxu0 %v3981
        %3983 = vmatprep.subr.mxu0 0.0
        %v3984 = vand.u32 %v3161, 4294901760
        %v3985 = vsub.f32 %v3161, %v3984
        %v3986 = vand.u32 %v3985, 4294901760
        %3987 = vmatpush1.xpose.msra.mxu0 %v3986
        %3988 = vmatprep.subr.mxu0 0.0
        %v3989 = vand.u32 %v3164, 4294901760
        %v3990 = vsub.f32 %v3164, %v3989
        %v3991 = vand.u32 %v3990, 4294901760
        %3992 = vmatpush1.xpose.msra.mxu0 %v3991
        %3993 = vmatprep.subr.mxu0 0.0
        %v3994 = vand.u32 %v3167, 4294901760
        %v3995 = vsub.f32 %v3167, %v3994
        %v3996 = vand.u32 %v3995, 4294901760
        %3997 = vmatpush1.xpose.msra.mxu0 %v3996
        %3998 = vmatprep.subr.mxu0 0.0
        %v3999 = vand.u32 %v3170, 4294901760
        %v4000 = vsub.f32 %v3170, %v3999
        %v4001 = vand.u32 %v4000, 4294901760
        %4002 = vmatpush1.xpose.msra.mxu0 %v4001
        %4003 = vmatprep.subr.mxu0 0.0
        %v4004 = vand.u32 %v3173, 4294901760
        %v4005 = vsub.f32 %v3173, %v4004
        %v4006 = vand.u32 %v4005, 4294901760
        %4007 = vmatpush1.xpose.msra.mxu0 %v4006
        %4008 = vmatprep.subr.mxu0 0.0
        %v4009 = vand.u32 %v3176, 4294901760
        %v4010 = vsub.f32 %v3176, %v4009
        %v4011 = vand.u32 %v4010, 4294901760
        %4012 = vmatpush1.xpose.msra.mxu0 %v4011
        %4013 = vmatprep.subr.mxu0 0.0
        %v4014 = vand.u32 %v3179, 4294901760
        %v4015 = vsub.f32 %v3179, %v4014
        %v4016 = vand.u32 %v4015, 4294901760
        %4017 = vmatpush1.xpose.msra.mxu0 %v4016
        %4018 = vmatprep.subr.mxu0 0.0
        %v4019 = vand.u32 %v3182, 4294901760
        %v4020 = vsub.f32 %v3182, %v4019
        %v4021 = vand.u32 %v4020, 4294901760
        %4022 = vmatpush1.xpose.msra.mxu0 %v4021
        %4023 = vmatprep.mubr.f32.mxu0 0.0
        %v4024 = vand.u32 %v927, 4294901760
        %4025 = vmatmul.mubr.f32.gmra.mrb[0].mxu0 %v4024
        %v4026 = vpop.f32.mrb[0].mxu0
        %v4027 = vadd.f32 %v3859, %v4026
        %v4028 = vpop.f32.mrb[0].mxu0
        %v4029 = vadd.f32 %v3861, %v4028
        %4030 = vdwg.mxu0
        %4031 = vmatprep.subr.mxu0 0.0
        %v4032 = vand.u32 %v3089, 4294901760
        %4033 = vmatpush1.xpose.msra.mxu0 %v4032
        %4034 = vmatprep.subr.mxu0 0.0
        %v4035 = vand.u32 %v3092, 4294901760
        %4036 = vmatpush1.xpose.msra.mxu0 %v4035
        %4037 = vmatprep.subr.mxu0 0.0
        %v4038 = vand.u32 %v3095, 4294901760
        %4039 = vmatpush1.xpose.msra.mxu0 %v4038
        %4040 = vmatprep.subr.mxu0 0.0
        %v4041 = vand.u32 %v3098, 4294901760
        %4042 = vmatpush1.xpose.msra.mxu0 %v4041
        %4043 = vmatprep.subr.mxu0 0.0
        %v4044 = vand.u32 %v3101, 4294901760
        %4045 = vmatpush1.xpose.msra.mxu0 %v4044
        %4046 = vmatprep.subr.mxu0 0.0
        %v4047 = vand.u32 %v3104, 4294901760
        %4048 = vmatpush1.xpose.msra.mxu0 %v4047
        %4049 = vmatprep.subr.mxu0 0.0
        %v4050 = vand.u32 %v3107, 4294901760
        %4051 = vmatpush1.xpose.msra.mxu0 %v4050
        %4052 = vmatprep.subr.mxu0 0.0
        %v4053 = vand.u32 %v3110, 4294901760
        %4054 = vmatpush1.xpose.msra.mxu0 %v4053
        %4055 = vmatprep.subr.mxu0 0.0
        %v4056 = vand.u32 %v3113, 4294901760
        %4057 = vmatpush1.xpose.msra.mxu0 %v4056
        %4058 = vmatprep.subr.mxu0 0.0
        %v4059 = vand.u32 %v3116, 4294901760
        %4060 = vmatpush1.xpose.msra.mxu0 %v4059
        %4061 = vmatprep.subr.mxu0 0.0
        %v4062 = vand.u32 %v3119, 4294901760
        %4063 = vmatpush1.xpose.msra.mxu0 %v4062
        %4064 = vmatprep.subr.mxu0 0.0
        %v4065 = vand.u32 %v3122, 4294901760
        %4066 = vmatpush1.xpose.msra.mxu0 %v4065
        %4067 = vmatprep.subr.mxu0 0.0
        %v4068 = vand.u32 %v3125, 4294901760
        %4069 = vmatpush1.xpose.msra.mxu0 %v4068
        %4070 = vmatprep.subr.mxu0 0.0
        %v4071 = vand.u32 %v3128, 4294901760
        %4072 = vmatpush1.xpose.msra.mxu0 %v4071
        %4073 = vmatprep.subr.mxu0 0.0
        %v4074 = vand.u32 %v3131, 4294901760
        %4075 = vmatpush1.xpose.msra.mxu0 %v4074
        %4076 = vmatprep.subr.mxu0 0.0
        %v4077 = vand.u32 %v3134, 4294901760
        %4078 = vmatpush1.xpose.msra.mxu0 %v4077
        %4079 = vmatprep.subr.mxu0 0.0
        %v4080 = vand.u32 %v3137, 4294901760
        %4081 = vmatpush1.xpose.msra.mxu0 %v4080
        %4082 = vmatprep.subr.mxu0 0.0
        %v4083 = vand.u32 %v3140, 4294901760
        %4084 = vmatpush1.xpose.msra.mxu0 %v4083
        %4085 = vmatprep.subr.mxu0 0.0
        %v4086 = vand.u32 %v3143, 4294901760
        %4087 = vmatpush1.xpose.msra.mxu0 %v4086
        %4088 = vmatprep.subr.mxu0 0.0
        %v4089 = vand.u32 %v3146, 4294901760
        %4090 = vmatpush1.xpose.msra.mxu0 %v4089
        %4091 = vmatprep.subr.mxu0 0.0
        %v4092 = vand.u32 %v3149, 4294901760
        %4093 = vmatpush1.xpose.msra.mxu0 %v4092
        %4094 = vmatprep.subr.mxu0 0.0
        %v4095 = vand.u32 %v3152, 4294901760
        %4096 = vmatpush1.xpose.msra.mxu0 %v4095
        %4097 = vmatprep.subr.mxu0 0.0
        %v4098 = vand.u32 %v3155, 4294901760
        %4099 = vmatpush1.xpose.msra.mxu0 %v4098
        %4100 = vmatprep.subr.mxu0 0.0
        %v4101 = vand.u32 %v3158, 4294901760
        %4102 = vmatpush1.xpose.msra.mxu0 %v4101
        %4103 = vmatprep.subr.mxu0 0.0
        %v4104 = vand.u32 %v3161, 4294901760
        %4105 = vmatpush1.xpose.msra.mxu0 %v4104
        %4106 = vmatprep.subr.mxu0 0.0
        %v4107 = vand.u32 %v3164, 4294901760
        %4108 = vmatpush1.xpose.msra.mxu0 %v4107
        %4109 = vmatprep.subr.mxu0 0.0
        %v4110 = vand.u32 %v3167, 4294901760
        %4111 = vmatpush1.xpose.msra.mxu0 %v4110
        %4112 = vmatprep.subr.mxu0 0.0
        %v4113 = vand.u32 %v3170, 4294901760
        %4114 = vmatpush1.xpose.msra.mxu0 %v4113
        %4115 = vmatprep.subr.mxu0 0.0
        %v4116 = vand.u32 %v3173, 4294901760
        %4117 = vmatpush1.xpose.msra.mxu0 %v4116
        %4118 = vmatprep.subr.mxu0 0.0
        %v4119 = vand.u32 %v3176, 4294901760
        %4120 = vmatpush1.xpose.msra.mxu0 %v4119
        %4121 = vmatprep.subr.mxu0 0.0
        %v4122 = vand.u32 %v3179, 4294901760
        %4123 = vmatpush1.xpose.msra.mxu0 %v4122
        %4124 = vmatprep.subr.mxu0 0.0
        %v4125 = vand.u32 %v3182, 4294901760
        %4126 = vmatpush1.xpose.msra.mxu0 %v4125
        %4127 = vmatprep.mubr.f32.mxu0 0.0
        %v4128 = vand.u32 %v927, 4294901760
        %4129 = vmatmul.mubr.f32.gmra.mrb[0].mxu0 %v4128
        %v4130 = vpop.f32.mrb[0].mxu0
        %v4131 = vadd.f32 %v4027, %v4130
        %v4132 = vpop.f32.mrb[0].mxu0
        %v4133 = vadd.f32 %v4029, %v4132
        %4134 = vdwg.mxu0
        %4135 = vmatprep.subr.mxu0 0.0
        %v4136 = vand.u32 %v3185, 4294901760
        %4137 = vmatpush1.xpose.msra.mxu0 %v4136
        %4138 = vmatprep.subr.mxu0 0.0
        %v4139 = vand.u32 %v3188, 4294901760
        %4140 = vmatpush1.xpose.msra.mxu0 %v4139
        %4141 = vmatprep.subr.mxu0 0.0
        %v4142 = vand.u32 %v3191, 4294901760
        %4143 = vmatpush1.xpose.msra.mxu0 %v4142
        %4144 = vmatprep.subr.mxu0 0.0
        %v4145 = vand.u32 %v3194, 4294901760
        %4146 = vmatpush1.xpose.msra.mxu0 %v4145
        %4147 = vmatprep.subr.mxu0 0.0
        %v4148 = vand.u32 %v3197, 4294901760
        %4149 = vmatpush1.xpose.msra.mxu0 %v4148
        %4150 = vmatprep.subr.mxu0 0.0
        %v4151 = vand.u32 %v3200, 4294901760
        %4152 = vmatpush1.xpose.msra.mxu0 %v4151
        %4153 = vmatprep.subr.mxu0 0.0
        %v4154 = vand.u32 %v3203, 4294901760
        %4155 = vmatpush1.xpose.msra.mxu0 %v4154
        %4156 = vmatprep.subr.mxu0 0.0
        %v4157 = vand.u32 %v3206, 4294901760
        %4158 = vmatpush1.xpose.msra.mxu0 %v4157
        %4159 = vmatprep.subr.mxu0 0.0
        %v4160 = vand.u32 %v3209, 4294901760
        %4161 = vmatpush1.xpose.msra.mxu0 %v4160
        %4162 = vmatprep.subr.mxu0 0.0
        %v4163 = vand.u32 %v3212, 4294901760
        %4164 = vmatpush1.xpose.msra.mxu0 %v4163
        %4165 = vmatprep.subr.mxu0 0.0
        %v4166 = vand.u32 %v3215, 4294901760
        %4167 = vmatpush1.xpose.msra.mxu0 %v4166
        %4168 = vmatprep.subr.mxu0 0.0
        %v4169 = vand.u32 %v3218, 4294901760
        %4170 = vmatpush1.xpose.msra.mxu0 %v4169
        %4171 = vmatprep.subr.mxu0 0.0
        %v4172 = vand.u32 %v3221, 4294901760
        %4173 = vmatpush1.xpose.msra.mxu0 %v4172
        %4174 = vmatprep.subr.mxu0 0.0
        %v4175 = vand.u32 %v3224, 4294901760
        %4176 = vmatpush1.xpose.msra.mxu0 %v4175
        %4177 = vmatprep.subr.mxu0 0.0
        %v4178 = vand.u32 %v3227, 4294901760
        %4179 = vmatpush1.xpose.msra.mxu0 %v4178
        %4180 = vmatprep.subr.mxu0 0.0
        %v4181 = vand.u32 %v3230, 4294901760
        %4182 = vmatpush1.xpose.msra.mxu0 %v4181
        %4183 = vmatprep.subr.mxu0 0.0
        %v4184 = vand.u32 %v3233, 4294901760
        %4185 = vmatpush1.xpose.msra.mxu0 %v4184
        %4186 = vmatprep.subr.mxu0 0.0
        %v4187 = vand.u32 %v3236, 4294901760
        %4188 = vmatpush1.xpose.msra.mxu0 %v4187
        %4189 = vmatprep.subr.mxu0 0.0
        %v4190 = vand.u32 %v3239, 4294901760
        %4191 = vmatpush1.xpose.msra.mxu0 %v4190
        %4192 = vmatprep.subr.mxu0 0.0
        %v4193 = vand.u32 %v3242, 4294901760
        %4194 = vmatpush1.xpose.msra.mxu0 %v4193
        %4195 = vmatprep.subr.mxu0 0.0
        %v4196 = vand.u32 %v3245, 4294901760
        %4197 = vmatpush1.xpose.msra.mxu0 %v4196
        %4198 = vmatprep.subr.mxu0 0.0
        %v4199 = vand.u32 %v3248, 4294901760
        %4200 = vmatpush1.xpose.msra.mxu0 %v4199
        %4201 = vmatprep.subr.mxu0 0.0
        %v4202 = vand.u32 %v3251, 4294901760
        %4203 = vmatpush1.xpose.msra.mxu0 %v4202
        %4204 = vmatprep.subr.mxu0 0.0
        %v4205 = vand.u32 %v3254, 4294901760
        %4206 = vmatpush1.xpose.msra.mxu0 %v4205
        %4207 = vmatprep.subr.mxu0 0.0
        %v4208 = vand.u32 %v3257, 4294901760
        %4209 = vmatpush1.xpose.msra.mxu0 %v4208
        %4210 = vmatprep.subr.mxu0 0.0
        %v4211 = vand.u32 %v3260, 4294901760
        %4212 = vmatpush1.xpose.msra.mxu0 %v4211
        %4213 = vmatprep.subr.mxu0 0.0
        %v4214 = vand.u32 %v3263, 4294901760
        %4215 = vmatpush1.xpose.msra.mxu0 %v4214
        %4216 = vmatprep.subr.mxu0 0.0
        %v4217 = vand.u32 %v3266, 4294901760
        %4218 = vmatpush1.xpose.msra.mxu0 %v4217
        %4219 = vmatprep.subr.mxu0 0.0
        %v4220 = vand.u32 %v3269, 4294901760
        %4221 = vmatpush1.xpose.msra.mxu0 %v4220
        %4222 = vmatprep.subr.mxu0 0.0
        %v4223 = vand.u32 %v3272, 4294901760
        %4224 = vmatpush1.xpose.msra.mxu0 %v4223
        %4225 = vmatprep.subr.mxu0 0.0
        %v4226 = vand.u32 %v3275, 4294901760
        %4227 = vmatpush1.xpose.msra.mxu0 %v4226
        %4228 = vmatprep.subr.mxu0 0.0
        %v4229 = vand.u32 %v3278, 4294901760
        %4230 = vmatpush1.xpose.msra.mxu0 %v4229
        %4231 = vmatprep.mubr.f32.mxu0 0.0
        %v4232 = vand.u32 %v927, 4294901760
        %v4233 = vsub.f32 %v927, %v4232
        %v4234 = vand.u32 %v4233, 4294901760
        %v4235 = vsub.f32 %v4233, %v4234
        %v4236 = vand.u32 %v4235, 4294901760
        %4237 = vmatmul.mubr.f32.gmra.mrb[0].mxu0 %v4236
        %v4238 = vpop.f32.mrb[0].mxu0
        %v4239 = vadd.f32 0.0, %v4238
        %v4240 = vpop.f32.mrb[0].mxu0
        %v4241 = vadd.f32 0.0, %v4240
        %4242 = vdwg.mxu0
        %4243 = vmatprep.subr.mxu0 0.0
        %v4244 = vand.u32 %v3185, 4294901760
        %v4245 = vsub.f32 %v3185, %v4244
        %v4246 = vand.u32 %v4245, 4294901760
        %v4247 = vsub.f32 %v4245, %v4246
        %v4248 = vand.u32 %v4247, 4294901760
        %4249 = vmatpush1.xpose.msra.mxu0 %v4248
        %4250 = vmatprep.subr.mxu0 0.0
        %v4251 = vand.u32 %v3188, 4294901760
        %v4252 = vsub.f32 %v3188, %v4251
        %v4253 = vand.u32 %v4252, 4294901760
        %v4254 = vsub.f32 %v4252, %v4253
        %v4255 = vand.u32 %v4254, 4294901760
        %4256 = vmatpush1.xpose.msra.mxu0 %v4255
        %4257 = vmatprep.subr.mxu0 0.0
        %v4258 = vand.u32 %v3191, 4294901760
        %v4259 = vsub.f32 %v3191, %v4258
        %v4260 = vand.u32 %v4259, 4294901760
        %v4261 = vsub.f32 %v4259, %v4260
        %v4262 = vand.u32 %v4261, 4294901760
        %4263 = vmatpush1.xpose.msra.mxu0 %v4262
        %4264 = vmatprep.subr.mxu0 0.0
        %v4265 = vand.u32 %v3194, 4294901760
        %v4266 = vsub.f32 %v3194, %v4265
        %v4267 = vand.u32 %v4266, 4294901760
        %v4268 = vsub.f32 %v4266, %v4267
        %v4269 = vand.u32 %v4268, 4294901760
        %4270 = vmatpush1.xpose.msra.mxu0 %v4269
        %4271 = vmatprep.subr.mxu0 0.0
        %v4272 = vand.u32 %v3197, 4294901760
        %v4273 = vsub.f32 %v3197, %v4272
        %v4274 = vand.u32 %v4273, 4294901760
        %v4275 = vsub.f32 %v4273, %v4274
        %v4276 = vand.u32 %v4275, 4294901760
        %4277 = vmatpush1.xpose.msra.mxu0 %v4276
        %4278 = vmatprep.subr.mxu0 0.0
        %v4279 = vand.u32 %v3200, 4294901760
        %v4280 = vsub.f32 %v3200, %v4279
        %v4281 = vand.u32 %v4280, 4294901760
        %v4282 = vsub.f32 %v4280, %v4281
        %v4283 = vand.u32 %v4282, 4294901760
        %4284 = vmatpush1.xpose.msra.mxu0 %v4283
        %4285 = vmatprep.subr.mxu0 0.0
        %v4286 = vand.u32 %v3203, 4294901760
        %v4287 = vsub.f32 %v3203, %v4286
        %v4288 = vand.u32 %v4287, 4294901760
        %v4289 = vsub.f32 %v4287, %v4288
        %v4290 = vand.u32 %v4289, 4294901760
        %4291 = vmatpush1.xpose.msra.mxu0 %v4290
        %4292 = vmatprep.subr.mxu0 0.0
        %v4293 = vand.u32 %v3206, 4294901760
        %v4294 = vsub.f32 %v3206, %v4293
        %v4295 = vand.u32 %v4294, 4294901760
        %v4296 = vsub.f32 %v4294, %v4295
        %v4297 = vand.u32 %v4296, 4294901760
        %4298 = vmatpush1.xpose.msra.mxu0 %v4297
        %4299 = vmatprep.subr.mxu0 0.0
        %v4300 = vand.u32 %v3209, 4294901760
        %v4301 = vsub.f32 %v3209, %v4300
        %v4302 = vand.u32 %v4301, 4294901760
        %v4303 = vsub.f32 %v4301, %v4302
        %v4304 = vand.u32 %v4303, 4294901760
        %4305 = vmatpush1.xpose.msra.mxu0 %v4304
        %4306 = vmatprep.subr.mxu0 0.0
        %v4307 = vand.u32 %v3212, 4294901760
        %v4308 = vsub.f32 %v3212, %v4307
        %v4309 = vand.u32 %v4308, 4294901760
        %v4310 = vsub.f32 %v4308, %v4309
        %v4311 = vand.u32 %v4310, 4294901760
        %4312 = vmatpush1.xpose.msra.mxu0 %v4311
        %4313 = vmatprep.subr.mxu0 0.0
        %v4314 = vand.u32 %v3215, 4294901760
        %v4315 = vsub.f32 %v3215, %v4314
        %v4316 = vand.u32 %v4315, 4294901760
        %v4317 = vsub.f32 %v4315, %v4316
        %v4318 = vand.u32 %v4317, 4294901760
        %4319 = vmatpush1.xpose.msra.mxu0 %v4318
        %4320 = vmatprep.subr.mxu0 0.0
        %v4321 = vand.u32 %v3218, 4294901760
        %v4322 = vsub.f32 %v3218, %v4321
        %v4323 = vand.u32 %v4322, 4294901760
        %v4324 = vsub.f32 %v4322, %v4323
        %v4325 = vand.u32 %v4324, 4294901760
        %4326 = vmatpush1.xpose.msra.mxu0 %v4325
        %4327 = vmatprep.subr.mxu0 0.0
        %v4328 = vand.u32 %v3221, 4294901760
        %v4329 = vsub.f32 %v3221, %v4328
        %v4330 = vand.u32 %v4329, 4294901760
        %v4331 = vsub.f32 %v4329, %v4330
        %v4332 = vand.u32 %v4331, 4294901760
        %4333 = vmatpush1.xpose.msra.mxu0 %v4332
        %4334 = vmatprep.subr.mxu0 0.0
        %v4335 = vand.u32 %v3224, 4294901760
        %v4336 = vsub.f32 %v3224, %v4335
        %v4337 = vand.u32 %v4336, 4294901760
        %v4338 = vsub.f32 %v4336, %v4337
        %v4339 = vand.u32 %v4338, 4294901760
        %4340 = vmatpush1.xpose.msra.mxu0 %v4339
        %4341 = vmatprep.subr.mxu0 0.0
        %v4342 = vand.u32 %v3227, 4294901760
        %v4343 = vsub.f32 %v3227, %v4342
        %v4344 = vand.u32 %v4343, 4294901760
        %v4345 = vsub.f32 %v4343, %v4344
        %v4346 = vand.u32 %v4345, 4294901760
        %4347 = vmatpush1.xpose.msra.mxu0 %v4346
        %4348 = vmatprep.subr.mxu0 0.0
        %v4349 = vand.u32 %v3230, 4294901760
        %v4350 = vsub.f32 %v3230, %v4349
        %v4351 = vand.u32 %v4350, 4294901760
        %v4352 = vsub.f32 %v4350, %v4351
        %v4353 = vand.u32 %v4352, 4294901760
        %4354 = vmatpush1.xpose.msra.mxu0 %v4353
        %4355 = vmatprep.subr.mxu0 0.0
        %v4356 = vand.u32 %v3233, 4294901760
        %v4357 = vsub.f32 %v3233, %v4356
        %v4358 = vand.u32 %v4357, 4294901760
        %v4359 = vsub.f32 %v4357, %v4358
        %v4360 = vand.u32 %v4359, 4294901760
        %4361 = vmatpush1.xpose.msra.mxu0 %v4360
        %4362 = vmatprep.subr.mxu0 0.0
        %v4363 = vand.u32 %v3236, 4294901760
        %v4364 = vsub.f32 %v3236, %v4363
        %v4365 = vand.u32 %v4364, 4294901760
        %v4366 = vsub.f32 %v4364, %v4365
        %v4367 = vand.u32 %v4366, 4294901760
        %4368 = vmatpush1.xpose.msra.mxu0 %v4367
        %4369 = vmatprep.subr.mxu0 0.0
        %v4370 = vand.u32 %v3239, 4294901760
        %v4371 = vsub.f32 %v3239, %v4370
        %v4372 = vand.u32 %v4371, 4294901760
        %v4373 = vsub.f32 %v4371, %v4372
        %v4374 = vand.u32 %v4373, 4294901760
        %4375 = vmatpush1.xpose.msra.mxu0 %v4374
        %4376 = vmatprep.subr.mxu0 0.0
        %v4377 = vand.u32 %v3242, 4294901760
        %v4378 = vsub.f32 %v3242, %v4377
        %v4379 = vand.u32 %v4378, 4294901760
        %v4380 = vsub.f32 %v4378, %v4379
        %v4381 = vand.u32 %v4380, 4294901760
        %4382 = vmatpush1.xpose.msra.mxu0 %v4381
        %4383 = vmatprep.subr.mxu0 0.0
        %v4384 = vand.u32 %v3245, 4294901760
        %v4385 = vsub.f32 %v3245, %v4384
        %v4386 = vand.u32 %v4385, 4294901760
        %v4387 = vsub.f32 %v4385, %v4386
        %v4388 = vand.u32 %v4387, 4294901760
        %4389 = vmatpush1.xpose.msra.mxu0 %v4388
        %4390 = vmatprep.subr.mxu0 0.0
        %v4391 = vand.u32 %v3248, 4294901760
        %v4392 = vsub.f32 %v3248, %v4391
        %v4393 = vand.u32 %v4392, 4294901760
        %v4394 = vsub.f32 %v4392, %v4393
        %v4395 = vand.u32 %v4394, 4294901760
        %4396 = vmatpush1.xpose.msra.mxu0 %v4395
        %4397 = vmatprep.subr.mxu0 0.0
        %v4398 = vand.u32 %v3251, 4294901760
        %v4399 = vsub.f32 %v3251, %v4398
        %v4400 = vand.u32 %v4399, 4294901760
        %v4401 = vsub.f32 %v4399, %v4400
        %v4402 = vand.u32 %v4401, 4294901760
        %4403 = vmatpush1.xpose.msra.mxu0 %v4402
        %4404 = vmatprep.subr.mxu0 0.0
        %v4405 = vand.u32 %v3254, 4294901760
        %v4406 = vsub.f32 %v3254, %v4405
        %v4407 = vand.u32 %v4406, 4294901760
        %v4408 = vsub.f32 %v4406, %v4407
        %v4409 = vand.u32 %v4408, 4294901760
        %4410 = vmatpush1.xpose.msra.mxu0 %v4409
        %4411 = vmatprep.subr.mxu0 0.0
        %v4412 = vand.u32 %v3257, 4294901760
        %v4413 = vsub.f32 %v3257, %v4412
        %v4414 = vand.u32 %v4413, 4294901760
        %v4415 = vsub.f32 %v4413, %v4414
        %v4416 = vand.u32 %v4415, 4294901760
        %4417 = vmatpush1.xpose.msra.mxu0 %v4416
        %4418 = vmatprep.subr.mxu0 0.0
        %v4419 = vand.u32 %v3260, 4294901760
        %v4420 = vsub.f32 %v3260, %v4419
        %v4421 = vand.u32 %v4420, 4294901760
        %v4422 = vsub.f32 %v4420, %v4421
        %v4423 = vand.u32 %v4422, 4294901760
        %4424 = vmatpush1.xpose.msra.mxu0 %v4423
        %4425 = vmatprep.subr.mxu0 0.0
        %v4426 = vand.u32 %v3263, 4294901760
        %v4427 = vsub.f32 %v3263, %v4426
        %v4428 = vand.u32 %v4427, 4294901760
        %v4429 = vsub.f32 %v4427, %v4428
        %v4430 = vand.u32 %v4429, 4294901760
        %4431 = vmatpush1.xpose.msra.mxu0 %v4430
        %4432 = vmatprep.subr.mxu0 0.0
        %v4433 = vand.u32 %v3266, 4294901760
        %v4434 = vsub.f32 %v3266, %v4433
        %v4435 = vand.u32 %v4434, 4294901760
        %v4436 = vsub.f32 %v4434, %v4435
        %v4437 = vand.u32 %v4436, 4294901760
        %4438 = vmatpush1.xpose.msra.mxu0 %v4437
        %4439 = vmatprep.subr.mxu0 0.0
        %v4440 = vand.u32 %v3269, 4294901760
        %v4441 = vsub.f32 %v3269, %v4440
        %v4442 = vand.u32 %v4441, 4294901760
        %v4443 = vsub.f32 %v4441, %v4442
        %v4444 = vand.u32 %v4443, 4294901760
        %4445 = vmatpush1.xpose.msra.mxu0 %v4444
        %4446 = vmatprep.subr.mxu0 0.0
        %v4447 = vand.u32 %v3272, 4294901760
        %v4448 = vsub.f32 %v3272, %v4447
        %v4449 = vand.u32 %v4448, 4294901760
        %v4450 = vsub.f32 %v4448, %v4449
        %v4451 = vand.u32 %v4450, 4294901760
        %4452 = vmatpush1.xpose.msra.mxu0 %v4451
        %4453 = vmatprep.subr.mxu0 0.0
        %v4454 = vand.u32 %v3275, 4294901760
        %v4455 = vsub.f32 %v3275, %v4454
        %v4456 = vand.u32 %v4455, 4294901760
        %v4457 = vsub.f32 %v4455, %v4456
        %v4458 = vand.u32 %v4457, 4294901760
        %4459 = vmatpush1.xpose.msra.mxu0 %v4458
        %4460 = vmatprep.subr.mxu0 0.0
        %v4461 = vand.u32 %v3278, 4294901760
        %v4462 = vsub.f32 %v3278, %v4461
        %v4463 = vand.u32 %v4462, 4294901760
        %v4464 = vsub.f32 %v4462, %v4463
        %v4465 = vand.u32 %v4464, 4294901760
        %4466 = vmatpush1.xpose.msra.mxu0 %v4465
        %4467 = vmatprep.mubr.f32.mxu0 0.0
        %v4468 = vand.u32 %v927, 4294901760
        %4469 = vmatmul.mubr.f32.gmra.mrb[0].mxu0 %v4468
        %v4470 = vpop.f32.mrb[0].mxu0
        %v4471 = vadd.f32 %v4239, %v4470
        %v4472 = vpop.f32.mrb[0].mxu0
        %v4473 = vadd.f32 %v4241, %v4472
        %4474 = vdwg.mxu0
        %4475 = vmatprep.subr.mxu0 0.0
        %v4476 = vand.u32 %v3185, 4294901760
        %v4477 = vsub.f32 %v3185, %v4476
        %4478 = vmatpush1.xpose.msra.mxu0 %v4477
        %4479 = vmatprep.subr.mxu0 0.0
        %v4480 = vand.u32 %v3188, 4294901760
        %v4481 = vsub.f32 %v3188, %v4480
        %4482 = vmatpush1.xpose.msra.mxu0 %v4481
        %4483 = vmatprep.subr.mxu0 0.0
        %v4484 = vand.u32 %v3191, 4294901760
        %v4485 = vsub.f32 %v3191, %v4484
        %4486 = vmatpush1.xpose.msra.mxu0 %v4485
        %4487 = vmatprep.subr.mxu0 0.0
        %v4488 = vand.u32 %v3194, 4294901760
        %v4489 = vsub.f32 %v3194, %v4488
        %4490 = vmatpush1.xpose.msra.mxu0 %v4489
        %4491 = vmatprep.subr.mxu0 0.0
        %v4492 = vand.u32 %v3197, 4294901760
        %v4493 = vsub.f32 %v3197, %v4492
        %4494 = vmatpush1.xpose.msra.mxu0 %v4493
        %4495 = vmatprep.subr.mxu0 0.0
        %v4496 = vand.u32 %v3200, 4294901760
        %v4497 = vsub.f32 %v3200, %v4496
        %4498 = vmatpush1.xpose.msra.mxu0 %v4497
        %4499 = vmatprep.subr.mxu0 0.0
        %v4500 = vand.u32 %v3203, 4294901760
        %v4501 = vsub.f32 %v3203, %v4500
        %4502 = vmatpush1.xpose.msra.mxu0 %v4501
        %4503 = vmatprep.subr.mxu0 0.0
        %v4504 = vand.u32 %v3206, 4294901760
        %v4505 = vsub.f32 %v3206, %v4504
        %4506 = vmatpush1.xpose.msra.mxu0 %v4505
        %4507 = vmatprep.subr.mxu0 0.0
        %v4508 = vand.u32 %v3209, 4294901760
        %v4509 = vsub.f32 %v3209, %v4508
        %4510 = vmatpush1.xpose.msra.mxu0 %v4509
        %4511 = vmatprep.subr.mxu0 0.0
        %v4512 = vand.u32 %v3212, 4294901760
        %v4513 = vsub.f32 %v3212, %v4512
        %4514 = vmatpush1.xpose.msra.mxu0 %v4513
        %4515 = vmatprep.subr.mxu0 0.0
        %v4516 = vand.u32 %v3215, 4294901760
        %v4517 = vsub.f32 %v3215, %v4516
        %4518 = vmatpush1.xpose.msra.mxu0 %v4517
        %4519 = vmatprep.subr.mxu0 0.0
        %v4520 = vand.u32 %v3218, 4294901760
        %v4521 = vsub.f32 %v3218, %v4520
        %4522 = vmatpush1.xpose.msra.mxu0 %v4521
        %4523 = vmatprep.subr.mxu0 0.0
        %v4524 = vand.u32 %v3221, 4294901760
        %v4525 = vsub.f32 %v3221, %v4524
        %4526 = vmatpush1.xpose.msra.mxu0 %v4525
        %4527 = vmatprep.subr.mxu0 0.0
        %v4528 = vand.u32 %v3224, 4294901760
        %v4529 = vsub.f32 %v3224, %v4528
        %4530 = vmatpush1.xpose.msra.mxu0 %v4529
        %4531 = vmatprep.subr.mxu0 0.0
        %v4532 = vand.u32 %v3227, 4294901760
        %v4533 = vsub.f32 %v3227, %v4532
        %4534 = vmatpush1.xpose.msra.mxu0 %v4533
        %4535 = vmatprep.subr.mxu0 0.0
        %v4536 = vand.u32 %v3230, 4294901760
        %v4537 = vsub.f32 %v3230, %v4536
        %4538 = vmatpush1.xpose.msra.mxu0 %v4537
        %4539 = vmatprep.subr.mxu0 0.0
        %v4540 = vand.u32 %v3233, 4294901760
        %v4541 = vsub.f32 %v3233, %v4540
        %4542 = vmatpush1.xpose.msra.mxu0 %v4541
        %4543 = vmatprep.subr.mxu0 0.0
        %v4544 = vand.u32 %v3236, 4294901760
        %v4545 = vsub.f32 %v3236, %v4544
        %4546 = vmatpush1.xpose.msra.mxu0 %v4545
        %4547 = vmatprep.subr.mxu0 0.0
        %v4548 = vand.u32 %v3239, 4294901760
        %v4549 = vsub.f32 %v3239, %v4548
        %4550 = vmatpush1.xpose.msra.mxu0 %v4549
        %4551 = vmatprep.subr.mxu0 0.0
        %v4552 = vand.u32 %v3242, 4294901760
        %v4553 = vsub.f32 %v3242, %v4552
        %4554 = vmatpush1.xpose.msra.mxu0 %v4553
        %4555 = vmatprep.subr.mxu0 0.0
        %v4556 = vand.u32 %v3245, 4294901760
        %v4557 = vsub.f32 %v3245, %v4556
        %4558 = vmatpush1.xpose.msra.mxu0 %v4557
        %4559 = vmatprep.subr.mxu0 0.0
        %v4560 = vand.u32 %v3248, 4294901760
        %v4561 = vsub.f32 %v3248, %v4560
        %4562 = vmatpush1.xpose.msra.mxu0 %v4561
        %4563 = vmatprep.subr.mxu0 0.0
        %v4564 = vand.u32 %v3251, 4294901760
        %v4565 = vsub.f32 %v3251, %v4564
        %4566 = vmatpush1.xpose.msra.mxu0 %v4565
        %4567 = vmatprep.subr.mxu0 0.0
        %v4568 = vand.u32 %v3254, 4294901760
        %v4569 = vsub.f32 %v3254, %v4568
        %4570 = vmatpush1.xpose.msra.mxu0 %v4569
        %4571 = vmatprep.subr.mxu0 0.0
        %v4572 = vand.u32 %v3257, 4294901760
        %v4573 = vsub.f32 %v3257, %v4572
        %4574 = vmatpush1.xpose.msra.mxu0 %v4573
        %4575 = vmatprep.subr.mxu0 0.0
        %v4576 = vand.u32 %v3260, 4294901760
        %v4577 = vsub.f32 %v3260, %v4576
        %4578 = vmatpush1.xpose.msra.mxu0 %v4577
        %4579 = vmatprep.subr.mxu0 0.0
        %v4580 = vand.u32 %v3263, 4294901760
        %v4581 = vsub.f32 %v3263, %v4580
        %4582 = vmatpush1.xpose.msra.mxu0 %v4581
        %4583 = vmatprep.subr.mxu0 0.0
        %v4584 = vand.u32 %v3266, 4294901760
        %v4585 = vsub.f32 %v3266, %v4584
        %4586 = vmatpush1.xpose.msra.mxu0 %v4585
        %4587 = vmatprep.subr.mxu0 0.0
        %v4588 = vand.u32 %v3269, 4294901760
        %v4589 = vsub.f32 %v3269, %v4588
        %4590 = vmatpush1.xpose.msra.mxu0 %v4589
        %4591 = vmatprep.subr.mxu0 0.0
        %v4592 = vand.u32 %v3272, 4294901760
        %v4593 = vsub.f32 %v3272, %v4592
        %4594 = vmatpush1.xpose.msra.mxu0 %v4593
        %4595 = vmatprep.subr.mxu0 0.0
        %v4596 = vand.u32 %v3275, 4294901760
        %v4597 = vsub.f32 %v3275, %v4596
        %4598 = vmatpush1.xpose.msra.mxu0 %v4597
        %4599 = vmatprep.subr.mxu0 0.0
        %v4600 = vand.u32 %v3278, 4294901760
        %v4601 = vsub.f32 %v3278, %v4600
        %4602 = vmatpush1.xpose.msra.mxu0 %v4601
        %4603 = vmatprep.mubr.f32.mxu0 0.0
        %v4604 = vand.u32 %v927, 4294901760
        %v4605 = vsub.f32 %v927, %v4604
        %4606 = vmatmul.mubr.f32.gmra.mrb[0].mxu0 %v4605
        %v4607 = vpop.f32.mrb[0].mxu0
        %v4608 = vadd.f32 %v4471, %v4607
        %v4609 = vpop.f32.mrb[0].mxu0
        %v4610 = vadd.f32 %v4473, %v4609
        %4611 = vdwg.mxu0
        %4612 = vmatprep.subr.mxu0 0.0
        %v4613 = vand.u32 %v3185, 4294901760
        %4614 = vmatpush1.xpose.msra.mxu0 %v4613
        %4615 = vmatprep.subr.mxu0 0.0
        %v4616 = vand.u32 %v3188, 4294901760
        %4617 = vmatpush1.xpose.msra.mxu0 %v4616
        %4618 = vmatprep.subr.mxu0 0.0
        %v4619 = vand.u32 %v3191, 4294901760
        %4620 = vmatpush1.xpose.msra.mxu0 %v4619
        %4621 = vmatprep.subr.mxu0 0.0
        %v4622 = vand.u32 %v3194, 4294901760
        %4623 = vmatpush1.xpose.msra.mxu0 %v4622
        %4624 = vmatprep.subr.mxu0 0.0
        %v4625 = vand.u32 %v3197, 4294901760
        %4626 = vmatpush1.xpose.msra.mxu0 %v4625
        %4627 = vmatprep.subr.mxu0 0.0
        %v4628 = vand.u32 %v3200, 4294901760
        %4629 = vmatpush1.xpose.msra.mxu0 %v4628
        %4630 = vmatprep.subr.mxu0 0.0
        %v4631 = vand.u32 %v3203, 4294901760
        %4632 = vmatpush1.xpose.msra.mxu0 %v4631
        %4633 = vmatprep.subr.mxu0 0.0
        %v4634 = vand.u32 %v3206, 4294901760
        %4635 = vmatpush1.xpose.msra.mxu0 %v4634
        %4636 = vmatprep.subr.mxu0 0.0
        %v4637 = vand.u32 %v3209, 4294901760
        %4638 = vmatpush1.xpose.msra.mxu0 %v4637
        %4639 = vmatprep.subr.mxu0 0.0
        %v4640 = vand.u32 %v3212, 4294901760
        %4641 = vmatpush1.xpose.msra.mxu0 %v4640
        %4642 = vmatprep.subr.mxu0 0.0
        %v4643 = vand.u32 %v3215, 4294901760
        %4644 = vmatpush1.xpose.msra.mxu0 %v4643
        %4645 = vmatprep.subr.mxu0 0.0
        %v4646 = vand.u32 %v3218, 4294901760
        %4647 = vmatpush1.xpose.msra.mxu0 %v4646
        %4648 = vmatprep.subr.mxu0 0.0
        %v4649 = vand.u32 %v3221, 4294901760
        %4650 = vmatpush1.xpose.msra.mxu0 %v4649
        %4651 = vmatprep.subr.mxu0 0.0
        %v4652 = vand.u32 %v3224, 4294901760
        %4653 = vmatpush1.xpose.msra.mxu0 %v4652
        %4654 = vmatprep.subr.mxu0 0.0
        %v4655 = vand.u32 %v3227, 4294901760
        %4656 = vmatpush1.xpose.msra.mxu0 %v4655
        %4657 = vmatprep.subr.mxu0 0.0
        %v4658 = vand.u32 %v3230, 4294901760
        %4659 = vmatpush1.xpose.msra.mxu0 %v4658
        %4660 = vmatprep.subr.mxu0 0.0
        %v4661 = vand.u32 %v3233, 4294901760
        %4662 = vmatpush1.xpose.msra.mxu0 %v4661
        %4663 = vmatprep.subr.mxu0 0.0
        %v4664 = vand.u32 %v3236, 4294901760
        %4665 = vmatpush1.xpose.msra.mxu0 %v4664
        %4666 = vmatprep.subr.mxu0 0.0
        %v4667 = vand.u32 %v3239, 4294901760
        %4668 = vmatpush1.xpose.msra.mxu0 %v4667
        %4669 = vmatprep.subr.mxu0 0.0
        %v4670 = vand.u32 %v3242, 4294901760
        %4671 = vmatpush1.xpose.msra.mxu0 %v4670
        %4672 = vmatprep.subr.mxu0 0.0
        %v4673 = vand.u32 %v3245, 4294901760
        %4674 = vmatpush1.xpose.msra.mxu0 %v4673
        %4675 = vmatprep.subr.mxu0 0.0
        %v4676 = vand.u32 %v3248, 4294901760
        %4677 = vmatpush1.xpose.msra.mxu0 %v4676
        %4678 = vmatprep.subr.mxu0 0.0
        %v4679 = vand.u32 %v3251, 4294901760
        %4680 = vmatpush1.xpose.msra.mxu0 %v4679
        %4681 = vmatprep.subr.mxu0 0.0
        %v4682 = vand.u32 %v3254, 4294901760
        %4683 = vmatpush1.xpose.msra.mxu0 %v4682
        %4684 = vmatprep.subr.mxu0 0.0
        %v4685 = vand.u32 %v3257, 4294901760
        %4686 = vmatpush1.xpose.msra.mxu0 %v4685
        %4687 = vmatprep.subr.mxu0 0.0
        %v4688 = vand.u32 %v3260, 4294901760
        %4689 = vmatpush1.xpose.msra.mxu0 %v4688
        %4690 = vmatprep.subr.mxu0 0.0
        %v4691 = vand.u32 %v3263, 4294901760
        %4692 = vmatpush1.xpose.msra.mxu0 %v4691
        %4693 = vmatprep.subr.mxu0 0.0
        %v4694 = vand.u32 %v3266, 4294901760
        %4695 = vmatpush1.xpose.msra.mxu0 %v4694
        %4696 = vmatprep.subr.mxu0 0.0
        %v4697 = vand.u32 %v3269, 4294901760
        %4698 = vmatpush1.xpose.msra.mxu0 %v4697
        %4699 = vmatprep.subr.mxu0 0.0
        %v4700 = vand.u32 %v3272, 4294901760
        %4701 = vmatpush1.xpose.msra.mxu0 %v4700
        %4702 = vmatprep.subr.mxu0 0.0
        %v4703 = vand.u32 %v3275, 4294901760
        %4704 = vmatpush1.xpose.msra.mxu0 %v4703
        %4705 = vmatprep.subr.mxu0 0.0
        %v4706 = vand.u32 %v3278, 4294901760
        %4707 = vmatpush1.xpose.msra.mxu0 %v4706
        %4708 = vmatprep.mubr.f32.mxu0 0.0
        %v4709 = vand.u32 %v927, 4294901760
        %v4710 = vsub.f32 %v927, %v4709
        %v4711 = vand.u32 %v4710, 4294901760
        %4712 = vmatmul.mubr.f32.gmra.mrb[0].mxu0 %v4711
        %v4713 = vpop.f32.mrb[0].mxu0
        %v4714 = vadd.f32 %v4608, %v4713
        %v4715 = vpop.f32.mrb[0].mxu0
        %v4716 = vadd.f32 %v4610, %v4715
        %4717 = vdwg.mxu0
        %4718 = vmatprep.subr.mxu0 0.0
        %v4719 = vand.u32 %v3185, 4294901760
        %v4720 = vsub.f32 %v3185, %v4719
        %v4721 = vand.u32 %v4720, 4294901760
        %4722 = vmatpush1.xpose.msra.mxu0 %v4721
        %4723 = vmatprep.subr.mxu0 0.0
        %v4724 = vand.u32 %v3188, 4294901760
        %v4725 = vsub.f32 %v3188, %v4724
        %v4726 = vand.u32 %v4725, 4294901760
        %4727 = vmatpush1.xpose.msra.mxu0 %v4726
        %4728 = vmatprep.subr.mxu0 0.0
        %v4729 = vand.u32 %v3191, 4294901760
        %v4730 = vsub.f32 %v3191, %v4729
        %v4731 = vand.u32 %v4730, 4294901760
        %4732 = vmatpush1.xpose.msra.mxu0 %v4731
        %4733 = vmatprep.subr.mxu0 0.0
        %v4734 = vand.u32 %v3194, 4294901760
        %v4735 = vsub.f32 %v3194, %v4734
        %v4736 = vand.u32 %v4735, 4294901760
        %4737 = vmatpush1.xpose.msra.mxu0 %v4736
        %4738 = vmatprep.subr.mxu0 0.0
        %v4739 = vand.u32 %v3197, 4294901760
        %v4740 = vsub.f32 %v3197, %v4739
        %v4741 = vand.u32 %v4740, 4294901760
        %4742 = vmatpush1.xpose.msra.mxu0 %v4741
        %4743 = vmatprep.subr.mxu0 0.0
        %v4744 = vand.u32 %v3200, 4294901760
        %v4745 = vsub.f32 %v3200, %v4744
        %v4746 = vand.u32 %v4745, 4294901760
        %4747 = vmatpush1.xpose.msra.mxu0 %v4746
        %4748 = vmatprep.subr.mxu0 0.0
        %v4749 = vand.u32 %v3203, 4294901760
        %v4750 = vsub.f32 %v3203, %v4749
        %v4751 = vand.u32 %v4750, 4294901760
        %4752 = vmatpush1.xpose.msra.mxu0 %v4751
        %4753 = vmatprep.subr.mxu0 0.0
        %v4754 = vand.u32 %v3206, 4294901760
        %v4755 = vsub.f32 %v3206, %v4754
        %v4756 = vand.u32 %v4755, 4294901760
        %4757 = vmatpush1.xpose.msra.mxu0 %v4756
        %4758 = vmatprep.subr.mxu0 0.0
        %v4759 = vand.u32 %v3209, 4294901760
        %v4760 = vsub.f32 %v3209, %v4759
        %v4761 = vand.u32 %v4760, 4294901760
        %4762 = vmatpush1.xpose.msra.mxu0 %v4761
        %4763 = vmatprep.subr.mxu0 0.0
        %v4764 = vand.u32 %v3212, 4294901760
        %v4765 = vsub.f32 %v3212, %v4764
        %v4766 = vand.u32 %v4765, 4294901760
        %4767 = vmatpush1.xpose.msra.mxu0 %v4766
        %4768 = vmatprep.subr.mxu0 0.0
        %v4769 = vand.u32 %v3215, 4294901760
        %v4770 = vsub.f32 %v3215, %v4769
        %v4771 = vand.u32 %v4770, 4294901760
        %4772 = vmatpush1.xpose.msra.mxu0 %v4771
        %4773 = vmatprep.subr.mxu0 0.0
        %v4774 = vand.u32 %v3218, 4294901760
        %v4775 = vsub.f32 %v3218, %v4774
        %v4776 = vand.u32 %v4775, 4294901760
        %4777 = vmatpush1.xpose.msra.mxu0 %v4776
        %4778 = vmatprep.subr.mxu0 0.0
        %v4779 = vand.u32 %v3221, 4294901760
        %v4780 = vsub.f32 %v3221, %v4779
        %v4781 = vand.u32 %v4780, 4294901760
        %4782 = vmatpush1.xpose.msra.mxu0 %v4781
        %4783 = vmatprep.subr.mxu0 0.0
        %v4784 = vand.u32 %v3224, 4294901760
        %v4785 = vsub.f32 %v3224, %v4784
        %v4786 = vand.u32 %v4785, 4294901760
        %4787 = vmatpush1.xpose.msra.mxu0 %v4786
        %4788 = vmatprep.subr.mxu0 0.0
        %v4789 = vand.u32 %v3227, 4294901760
        %v4790 = vsub.f32 %v3227, %v4789
        %v4791 = vand.u32 %v4790, 4294901760
        %4792 = vmatpush1.xpose.msra.mxu0 %v4791
        %4793 = vmatprep.subr.mxu0 0.0
        %v4794 = vand.u32 %v3230, 4294901760
        %v4795 = vsub.f32 %v3230, %v4794
        %v4796 = vand.u32 %v4795, 4294901760
        %4797 = vmatpush1.xpose.msra.mxu0 %v4796
        %4798 = vmatprep.subr.mxu0 0.0
        %v4799 = vand.u32 %v3233, 4294901760
        %v4800 = vsub.f32 %v3233, %v4799
        %v4801 = vand.u32 %v4800, 4294901760
        %4802 = vmatpush1.xpose.msra.mxu0 %v4801
        %4803 = vmatprep.subr.mxu0 0.0
        %v4804 = vand.u32 %v3236, 4294901760
        %v4805 = vsub.f32 %v3236, %v4804
        %v4806 = vand.u32 %v4805, 4294901760
        %4807 = vmatpush1.xpose.msra.mxu0 %v4806
        %4808 = vmatprep.subr.mxu0 0.0
        %v4809 = vand.u32 %v3239, 4294901760
        %v4810 = vsub.f32 %v3239, %v4809
        %v4811 = vand.u32 %v4810, 4294901760
        %4812 = vmatpush1.xpose.msra.mxu0 %v4811
        %4813 = vmatprep.subr.mxu0 0.0
        %v4814 = vand.u32 %v3242, 4294901760
        %v4815 = vsub.f32 %v3242, %v4814
        %v4816 = vand.u32 %v4815, 4294901760
        %4817 = vmatpush1.xpose.msra.mxu0 %v4816
        %4818 = vmatprep.subr.mxu0 0.0
        %v4819 = vand.u32 %v3245, 4294901760
        %v4820 = vsub.f32 %v3245, %v4819
        %v4821 = vand.u32 %v4820, 4294901760
        %4822 = vmatpush1.xpose.msra.mxu0 %v4821
        %4823 = vmatprep.subr.mxu0 0.0
        %v4824 = vand.u32 %v3248, 4294901760
        %v4825 = vsub.f32 %v3248, %v4824
        %v4826 = vand.u32 %v4825, 4294901760
        %4827 = vmatpush1.xpose.msra.mxu0 %v4826
        %4828 = vmatprep.subr.mxu0 0.0
        %v4829 = vand.u32 %v3251, 4294901760
        %v4830 = vsub.f32 %v3251, %v4829
        %v4831 = vand.u32 %v4830, 4294901760
        %4832 = vmatpush1.xpose.msra.mxu0 %v4831
        %4833 = vmatprep.subr.mxu0 0.0
        %v4834 = vand.u32 %v3254, 4294901760
        %v4835 = vsub.f32 %v3254, %v4834
        %v4836 = vand.u32 %v4835, 4294901760
        %4837 = vmatpush1.xpose.msra.mxu0 %v4836
        %4838 = vmatprep.subr.mxu0 0.0
        %v4839 = vand.u32 %v3257, 4294901760
        %v4840 = vsub.f32 %v3257, %v4839
        %v4841 = vand.u32 %v4840, 4294901760
        %4842 = vmatpush1.xpose.msra.mxu0 %v4841
        %4843 = vmatprep.subr.mxu0 0.0
        %v4844 = vand.u32 %v3260, 4294901760
        %v4845 = vsub.f32 %v3260, %v4844
        %v4846 = vand.u32 %v4845, 4294901760
        %4847 = vmatpush1.xpose.msra.mxu0 %v4846
        %4848 = vmatprep.subr.mxu0 0.0
        %v4849 = vand.u32 %v3263, 4294901760
        %v4850 = vsub.f32 %v3263, %v4849
        %v4851 = vand.u32 %v4850, 4294901760
        %4852 = vmatpush1.xpose.msra.mxu0 %v4851
        %4853 = vmatprep.subr.mxu0 0.0
        %v4854 = vand.u32 %v3266, 4294901760
        %v4855 = vsub.f32 %v3266, %v4854
        %v4856 = vand.u32 %v4855, 4294901760
        %4857 = vmatpush1.xpose.msra.mxu0 %v4856
        %4858 = vmatprep.subr.mxu0 0.0
        %v4859 = vand.u32 %v3269, 4294901760
        %v4860 = vsub.f32 %v3269, %v4859
        %v4861 = vand.u32 %v4860, 4294901760
        %4862 = vmatpush1.xpose.msra.mxu0 %v4861
        %4863 = vmatprep.subr.mxu0 0.0
        %v4864 = vand.u32 %v3272, 4294901760
        %v4865 = vsub.f32 %v3272, %v4864
        %v4866 = vand.u32 %v4865, 4294901760
        %4867 = vmatpush1.xpose.msra.mxu0 %v4866
        %4868 = vmatprep.subr.mxu0 0.0
        %v4869 = vand.u32 %v3275, 4294901760
        %v4870 = vsub.f32 %v3275, %v4869
        %v4871 = vand.u32 %v4870, 4294901760
        %4872 = vmatpush1.xpose.msra.mxu0 %v4871
        %4873 = vmatprep.subr.mxu0 0.0
        %v4874 = vand.u32 %v3278, 4294901760
        %v4875 = vsub.f32 %v3278, %v4874
        %v4876 = vand.u32 %v4875, 4294901760
        %4877 = vmatpush1.xpose.msra.mxu0 %v4876
        %4878 = vmatprep.mubr.f32.mxu0 0.0
        %v4879 = vand.u32 %v927, 4294901760
        %4880 = vmatmul.mubr.f32.gmra.mrb[0].mxu0 %v4879
        %v4881 = vpop.f32.mrb[0].mxu0
        %v4882 = vadd.f32 %v4714, %v4881
        %v4883 = vpop.f32.mrb[0].mxu0
        %v4884 = vadd.f32 %v4716, %v4883
        %4885 = vdwg.mxu0
        %4886 = vmatprep.subr.mxu0 0.0
        %v4887 = vand.u32 %v3185, 4294901760
        %4888 = vmatpush1.xpose.msra.mxu0 %v4887
        %4889 = vmatprep.subr.mxu0 0.0
        %v4890 = vand.u32 %v3188, 4294901760
        %4891 = vmatpush1.xpose.msra.mxu0 %v4890
        %4892 = vmatprep.subr.mxu0 0.0
        %v4893 = vand.u32 %v3191, 4294901760
        %4894 = vmatpush1.xpose.msra.mxu0 %v4893
        %4895 = vmatprep.subr.mxu0 0.0
        %v4896 = vand.u32 %v3194, 4294901760
        %4897 = vmatpush1.xpose.msra.mxu0 %v4896
        %4898 = vmatprep.subr.mxu0 0.0
        %v4899 = vand.u32 %v3197, 4294901760
        %4900 = vmatpush1.xpose.msra.mxu0 %v4899
        %4901 = vmatprep.subr.mxu0 0.0
        %v4902 = vand.u32 %v3200, 4294901760
        %4903 = vmatpush1.xpose.msra.mxu0 %v4902
        %4904 = vmatprep.subr.mxu0 0.0
        %v4905 = vand.u32 %v3203, 4294901760
        %4906 = vmatpush1.xpose.msra.mxu0 %v4905
        %4907 = vmatprep.subr.mxu0 0.0
        %v4908 = vand.u32 %v3206, 4294901760
        %4909 = vmatpush1.xpose.msra.mxu0 %v4908
        %4910 = vmatprep.subr.mxu0 0.0
        %v4911 = vand.u32 %v3209, 4294901760
        %4912 = vmatpush1.xpose.msra.mxu0 %v4911
        %4913 = vmatprep.subr.mxu0 0.0
        %v4914 = vand.u32 %v3212, 4294901760
        %4915 = vmatpush1.xpose.msra.mxu0 %v4914
        %4916 = vmatprep.subr.mxu0 0.0
        %v4917 = vand.u32 %v3215, 4294901760
        %4918 = vmatpush1.xpose.msra.mxu0 %v4917
        %4919 = vmatprep.subr.mxu0 0.0
        %v4920 = vand.u32 %v3218, 4294901760
        %4921 = vmatpush1.xpose.msra.mxu0 %v4920
        %4922 = vmatprep.subr.mxu0 0.0
        %v4923 = vand.u32 %v3221, 4294901760
        %4924 = vmatpush1.xpose.msra.mxu0 %v4923
        %4925 = vmatprep.subr.mxu0 0.0
        %v4926 = vand.u32 %v3224, 4294901760
        %4927 = vmatpush1.xpose.msra.mxu0 %v4926
        %4928 = vmatprep.subr.mxu0 0.0
        %v4929 = vand.u32 %v3227, 4294901760
        %4930 = vmatpush1.xpose.msra.mxu0 %v4929
        %4931 = vmatprep.subr.mxu0 0.0
        %v4932 = vand.u32 %v3230, 4294901760
        %4933 = vmatpush1.xpose.msra.mxu0 %v4932
        %4934 = vmatprep.subr.mxu0 0.0
        %v4935 = vand.u32 %v3233, 4294901760
        %4936 = vmatpush1.xpose.msra.mxu0 %v4935
        %4937 = vmatprep.subr.mxu0 0.0
        %v4938 = vand.u32 %v3236, 4294901760
        %4939 = vmatpush1.xpose.msra.mxu0 %v4938
        %4940 = vmatprep.subr.mxu0 0.0
        %v4941 = vand.u32 %v3239, 4294901760
        %4942 = vmatpush1.xpose.msra.mxu0 %v4941
        %4943 = vmatprep.subr.mxu0 0.0
        %v4944 = vand.u32 %v3242, 4294901760
        %4945 = vmatpush1.xpose.msra.mxu0 %v4944
        %4946 = vmatprep.subr.mxu0 0.0
        %v4947 = vand.u32 %v3245, 4294901760
        %4948 = vmatpush1.xpose.msra.mxu0 %v4947
        %4949 = vmatprep.subr.mxu0 0.0
        %v4950 = vand.u32 %v3248, 4294901760
        %4951 = vmatpush1.xpose.msra.mxu0 %v4950
        %4952 = vmatprep.subr.mxu0 0.0
        %v4953 = vand.u32 %v3251, 4294901760
        %4954 = vmatpush1.xpose.msra.mxu0 %v4953
        %4955 = vmatprep.subr.mxu0 0.0
        %v4956 = vand.u32 %v3254, 4294901760
        %4957 = vmatpush1.xpose.msra.mxu0 %v4956
        %4958 = vmatprep.subr.mxu0 0.0
        %v4959 = vand.u32 %v3257, 4294901760
        %4960 = vmatpush1.xpose.msra.mxu0 %v4959
        %4961 = vmatprep.subr.mxu0 0.0
        %v4962 = vand.u32 %v3260, 4294901760
        %4963 = vmatpush1.xpose.msra.mxu0 %v4962
        %4964 = vmatprep.subr.mxu0 0.0
        %v4965 = vand.u32 %v3263, 4294901760
        %4966 = vmatpush1.xpose.msra.mxu0 %v4965
        %4967 = vmatprep.subr.mxu0 0.0
        %v4968 = vand.u32 %v3266, 4294901760
        %4969 = vmatpush1.xpose.msra.mxu0 %v4968
        %4970 = vmatprep.subr.mxu0 0.0
        %v4971 = vand.u32 %v3269, 4294901760
        %4972 = vmatpush1.xpose.msra.mxu0 %v4971
        %4973 = vmatprep.subr.mxu0 0.0
        %v4974 = vand.u32 %v3272, 4294901760
        %4975 = vmatpush1.xpose.msra.mxu0 %v4974
        %4976 = vmatprep.subr.mxu0 0.0
        %v4977 = vand.u32 %v3275, 4294901760
        %4978 = vmatpush1.xpose.msra.mxu0 %v4977
        %4979 = vmatprep.subr.mxu0 0.0
        %v4980 = vand.u32 %v3278, 4294901760
        %4981 = vmatpush1.xpose.msra.mxu0 %v4980
        %4982 = vmatprep.mubr.f32.mxu0 0.0
        %v4983 = vand.u32 %v927, 4294901760
        %4984 = vmatmul.mubr.f32.gmra.mrb[0].mxu0 %v4983
        %v4985 = vpop.f32.mrb[0].mxu0
        %v4986 = vadd.f32 %v4882, %v4985
        %v4987 = vpop.f32.mrb[0].mxu0
        %v4988 = vadd.f32 %v4884, %v4987
        %4989 = vdwg.mxu0
        %v4994 = vrot.slane %v4131, 7
        %v4995 = vrot.slane %v4133, 7
        %v4996 = vrot.slane %v4986, 7
        %v4997 = vrot.slane %v4988, 7
        %vm5002 = vcmask 1040384
        %v5003 = vsel %vm5002, %v1972, %v4994
        %v5004 = vsel %vm5002, %v1974, %v4995
        %v5005 = vsel %vm5002, %v2827, %v4996
        %v5006 = vsel %vm5002, %v2829, %v4997
        %vm5007 = vcmp.gt.f32.partialorder %v5003, 8.589935e+08
        %vm5008 = vcmp.gt.f32.partialorder %v5004, 8.589935e+08
        %vm5009 = vcmp.gt.f32.partialorder %v5005, 8.589935e+08
        %vm5010 = vcmp.gt.f32.partialorder %v5006, 8.589935e+08
        %vm5011 = vmpackc.low %vm5007, %vm5007
        %vm5012 = vmpackc.even %vm5011, %vm5011
        %vm5013 = vmpackc.low %vm5008, %vm5008
        %vm5014 = vmpackc.even %vm5013, %vm5013
        %vm5015 = vmpackc.low %vm5009, %vm5009
        %vm5016 = vmpackc.even %vm5015, %vm5015
        %vm5017 = vmpackc.low %vm5010, %vm5010
        %vm5018 = vmpackc.even %vm5017, %vm5017
        %v5019 = vsel %vm5012, 16843009, 0
        %v5020 = vsel %vm5014, 16843009, 0
        %v5021 = vsel %vm5016, 16843009, 0
        %v5022 = vsel %vm5018, 16843009, 0
        %v5023 = vcombine.low %v5019, %v5020
        %v5024 = vcombine.low %v5021, %v5022
        %v5026 = vunpack.c.l.s4 1966171168
        %v5027 = vunpack.c.0.s8 %v5026
        %v5028 = vlaneseq
        %v5029 = vshrl.u32 %v5028, 7
        %v5030 = vsub.s32 %v5027, %v5029
        %v5031 = vrot.slane %v5023, %v5030
        %v5033 = vunpack.c.l.s4 1966171168
        %v5034 = vunpack.c.0.s8 %v5033
        %v5035 = vlaneseq
        %v5036 = vshrl.u32 %v5035, 7
        %v5037 = vsub.s32 %v5034, %v5036
        %v5038 = vrot.slane %v5024, %v5037
        %v5039 = vcombine.low %v5031, %v5038
        %v5041 = vunpack.c.l.s4 1966171168
        %v5042 = vunpack.c.0.s8 %v5041
        %v5043 = vlaneseq
        %v5044 = vshrl.u32 %v5043, 7
        %v5045 = vsub.s32 %v5042, %v5044
        %v5046 = vrot.slane %v5039, %v5045
        %vm5047 = vcmask 1040384
        %vm5048 = vsmask.f32 256
        %vm5049 = vmand %vm5047, %vm5048
        %vm5050 = vcmask 1041409
        %vm5051 = vsmask.f32 1280
        %vm5052 = vmand %vm5050, %vm5051
        %vm5053 = vmor %vm5052, %vm5049
        %vm5054 = vcmask 1042434
        %vm5055 = vsmask.f32 2304
        %vm5056 = vmand %vm5054, %vm5055
        %vm5057 = vmor %vm5056, %vm5053
        %vm5058 = vcmask 1043459
        %vm5059 = vsmask.f32 3328
        %vm5060 = vmand %vm5058, %vm5059
        %vm5061 = vmor %vm5060, %vm5057
        %v5062 = vld [vmem:[%s664] sm:$0xf]
        %v5063 = vsel %vm5061, %v5046, %v5062
        %5064 = vst [vmem:[%s664] sm:$0xf] %v5063
        %s5065 = sand.u32 %s49, 1
        %s5066 = scalar_lea.sflag [#allocation4], %s5065
        %s5067 = sand.u32 %s49, 1
        %s5068 = smul.addr %s5067, 4
        %s5069 = scalar_lea.vmem [#allocation3], %s5068
        // Predicated region
        $region66: #{_framed_vad.1} parent=60 // pred_check
          %p5070 = pneg %p59
        $region67: #{_framed_vad.1} parent=60 // pred_check_branch
          %5072 = sbr.rel (%p5070) target = $region69
        $region68: #{_framed_vad.1} parent=60 // pred_region
          %s5073 = smul.u32 4, %s15
          %s5075 = ssub.s32 64, 64
          %5076 = vsyncadd %s5066, %s5075
          %s5077 = smul.addr %s5073, 16
          %s5078 = scalar_lea.hbm %s1, %s5077
          %s5080 = sshll.u32 %s5069, 4
          %s5081 = int_to_ptr.vmem [resolvable:$true] %s5080
          %5083 = dma.vmem_to_hbm [thread:$0]  %s5081, 64, %s5078, %s5066
        $region69: #{_framed_vad.1} parent=60 // pred_fallthru
          _
      $region61: #{_framed_vad.1} parent=5 // pred_fallthru
        _
      %p5084 = scmp.le.s32.totalorder 2, %s10
      // Predicated region
      $region70: #{_framed_vad.1} parent=5 // pred_check
        %p5085 = pneg %p5084
      $region71: #{_framed_vad.1} parent=5 // pred_check_branch
        %5087 = sbr.rel (%p5085) target = $region73
      $region72: #{_framed_vad.1} parent=5 // pred_region
        %s5088 = ssub.s32 %s10, 2
        // Predicated region
        $region74: #{_framed_vad.1} parent=72 // pred_check
          %p5089 = pneg %p65
        $region75: #{_framed_vad.1} parent=72 // pred_check_branch
          %5091 = sbr.rel (%p5089) target = $region77
        $region76: #{_framed_vad.1} parent=72 // pred_region
          %s5092 = sand.u32 %s50, 1
          %s5093 = scalar_lea.sflag [#allocation4], %s5092
          %s5094 = sand.u32 %s50, 1
          %s5095 = smul.addr %s5094, 4
          %s5096 = scalar_lea.vmem [#allocation3], %s5095
          %5097 = dma.done %s5093, 64
        $region77: #{_framed_vad.1} parent=72 // pred_fallthru
          _
      $region73: #{_framed_vad.1} parent=5 // pred_fallthru
        _
    $region6: #{_framed_vad.1} parent=1 // loop_footer
      %s14 = sadd.s32 1, %s10
    $region7: #{_framed_vad.1} parent=1 // loop_footer_branch
      %9 = sbr.rel target = $region3
    $region8: #{_framed_vad.1} parent=1 // loop_exit
      _
    %5098 = vsyncpa [#allocation4], 1
    %s5099 = scalar_lea.sflag [#allocation4], 1
    %5100 = vsyncpa %s5099, 1

</llo_original>
